<compile_context>
chip_gen: v7x
topology: tpu7x:2x2x1
jax: 0.10.0
libtpu: 0.0.40
codegen_flags: <defaults>
</compile_context>

<pallas_src>
import math

import numpy as np

import jax
import jax.numpy as jnp
from jax import lax
from jax.experimental import pallas as pl
from jax.experimental.pallas import tpu as pltpu

# ---- fixed module geometry -------------------------------------------------
N = 2                              # batch
H = 50                             # sequence length (conv50 requires H >= 50)
EMB = 300                          # embedding width (fixed by conv kernel widths)
K_USED = 7                         # only conv1..conv7 survive the second cat
N_ROWS = (N * K_USED) // K_USED    # rows of .view(-1, 7)  (== N)
FC0_IN = K_USED                    # TODO(synk): module declares 15000 (incompatible)
FC0_OUT = 300
FC1_OUT = 30
FC6_OUT = 30

# ---- packing geometry -------------------------------------------------------
CONV_FLAT = N * K_USED * EMB       # 4200 flattened (n, p, e) conv-window input
XDIM = CONV_FLAT + 8               # + ones element (conv-bias fold) + pad
NCAT = N * K_USED                  # 14 = len(torch.cat((x1..x7), 0))
NCAT_PAD = 16                      # padded cat width
ONES_IDX = NCAT_PAD - 1            # carrier lane planted in the cat vector
L = 304                            # FC lane width (300 real + 4 pad)
CARRIER = FC0_OUT                  # carrier column (= 300) in the FC slab
FC1_OFF = N_ROWS * NCAT_PAD        # row offsets of the blocks inside the FC slab
FC6_OFF = FC1_OFF + L
FCW_ROWS = FC6_OFF + L             # 32 + 304 + 304 = 640


# -----------------------------------------------------------------------------
# Kernel: conv features -> cat/view permutation -> fc0 -> relu -> fc1 -> relu
#         -> fc6, all fused, all biases folded into the matmuls.
# -----------------------------------------------------------------------------
def _fused_kernel(x_ref, convw_ref, fcw_ref, o_ref):
    # conv1..7 (+ folded biases) in ONE matmul, directly in torch.cat flat order:
    # cat[0, i] = <x[i%N, 0, :k, :], W_k> + b_k   with  k = i//N + 1
    cat = jnp.dot(x_ref[...], convw_ref[...],
                  preferred_element_type=jnp.float32)              # (1, 16) f32
    cat = jnp.abs(jnp.tanh(cat))                                   # pads -> 0
    # plant the ones carrier the folded FC biases ride on (EUP/VPU work stays f32)
    lane = lax.broadcasted_iota(jnp.int32, (1, NCAT_PAD), 1)
    cat = jnp.where(lane == ONES_IDX, 1.0, cat).astype(jnp.bfloat16)

    # fc0 with the cat().view(-1, 7) permutation folded into the packed weights:
    # one (16, L) block per view row, then a single iota-select stacks the rows.
    parts = [
        jnp.dot(cat, fcw_ref[r * NCAT_PAD:(r + 1) * NCAT_PAD, :],
                preferred_element_type=jnp.float32)                # (1, L)
        for r in range(N_ROWS)
    ]
    row = lax.broadcasted_iota(jnp.int32, (N_ROWS, L), 0)
    h0 = parts[0]
    for r in range(1, N_ROWS):
        h0 = jnp.where(row == r, parts[r], h0)                     # (N_ROWS, L)
    h0 = jnp.maximum(h0, 0.0)                                      # relu(fc0)
    # dropout(0.3) == identity at inference

    w1 = fcw_ref[FC1_OFF:FC1_OFF + L, :]                           # (L, L)
    h1 = jnp.maximum(jnp.dot(h0.astype(jnp.bfloat16), w1,
                             preferred_element_type=jnp.float32), 0.0)
    # dropout(0.3) == identity at inference

    w6 = fcw_ref[FC6_OFF:FC6_OFF + L, :]                           # (L, L)
    o_ref[...] = jnp.dot(h1.astype(jnp.bfloat16), w6,
                         preferred_element_type=jnp.float32)       # (N_ROWS, L)


# -----------------------------------------------------------------------------
# Deterministic parameter init (PyTorch-style uniform bounds) + host packing.
# -----------------------------------------------------------------------------
def init_params(key):
    keys = jax.random.split(key, K_USED + 3)

    conv_w, conv_b = [], []
    for k in range(1, K_USED + 1):
        kw, kb = jax.random.split(keys[k - 1])
        bound = 1.0 / math.sqrt(k * EMB)
        conv_w.append(jax.random.uniform(kw, (k, EMB), jnp.float32, -bound, bound))
        conv_b.append(jax.random.uniform(kb, (), jnp.float32, -bound, bound))

    def linear(key, fan_in, fan_out):
        kw, kb = jax.random.split(key)
        bound = 1.0 / math.sqrt(fan_in)
        w_t = jax.random.uniform(kw, (fan_in, fan_out), jnp.float32, -bound, bound)
        b = jax.random.uniform(kb, (fan_out,), jnp.float32, -bound, bound)
        return w_t, b

    w0t, b0 = linear(keys[K_USED + 0], FC0_IN, FC0_OUT)   # (7, 300),  (300,)
    w1t, b1 = linear(keys[K_USED + 1], FC0_OUT, FC1_OUT)  # (300, 30), (30,)
    w6t, b6 = linear(keys[K_USED + 2], FC1_OUT, FC6_OUT)  # (30, 30),  (30,)

    # bf16-rounded copies: exactly what the kernel multiplies with (also used by
    # the pure-JAX reference so the correctness check is tolerance-tight).
    to_bf = lambda a: np.asarray(jnp.asarray(a, jnp.bfloat16).astype(jnp.float32))
    conv_w_r = [to_bf(w) for w in conv_w]
    conv_b_r = [float(to_bf(b)) for b in conv_b]
    w0t_r, b0_r = to_bf(w0t), to_bf(b0)
    w1t_r, b1_r = to_bf(w1t), to_bf(b1)
    w6t_r, b6_r = to_bf(w6t), to_bf(b6)

    # ---- conv slab: one matmul emits torch.cat((x1..x7), 0) flat order --------
    conv_pack = np.zeros((XDIM, NCAT_PAD), np.float32)
    for i in range(NCAT):
        k = i // N + 1                      # conv index of cat element i
        n = i % N                           # batch example of cat element i
        base = n * K_USED * EMB
        conv_pack[base:base + k * EMB, i] = conv_w_r[k - 1].reshape(-1)
        conv_pack[CONV_FLAT, i] = conv_b_r[k - 1]   # rides on the ones element

    # ---- fc slab: fc0 (permutation-folded, one block per view row), fc1, fc6 --
    fc_pack = np.zeros((FCW_ROWS, L), np.float32)
    for r in range(N_ROWS):
        blk = fc_pack[r * NCAT_PAD:(r + 1) * NCAT_PAD]
        for c in range(K_USED):
            blk[r * K_USED + c, :FC0_OUT] = w0t_r[c]   # rows[r, c] -> fc0 weight
        blk[ONES_IDX, :FC0_OUT] = b0_r                 # fc0 bias (folded)
        blk[ONES_IDX, CARRIER] = 1.0                   # keep carrier alive in h0
    fc_pack[FC1_OFF:FC1_OFF + FC0_OUT, :FC1_OUT] = w1t_r
    fc_pack[FC1_OFF + CARRIER, :FC1_OUT] = b1_r        # fc1 bias (folded)
    fc_pack[FC1_OFF + CARRIER, CARRIER] = 1.0          # keep carrier alive in h1
    fc_pack[FC6_OFF:FC6_OFF + FC1_OUT, :FC6_OUT] = w6t_r
    fc_pack[FC6_OFF + CARRIER, :FC6_OUT] = b6_r        # fc6 bias (folded)

    params = {
        "conv_pack": jnp.asarray(conv_pack, jnp.bfloat16),
        "fc_pack": jnp.asarray(fc_pack, jnp.bfloat16),
    }
    ref = {
        "conv_w": conv_w_r, "conv_b": conv_b_r,
        "w0t": w0t_r, "b0": b0_r,
        "w1t": w1t_r, "b1": b1_r,
        "w6t": w6t_r, "b6": b6_r,
    }
    return params, ref


# -----------------------------------------------------------------------------
# Wrapper: one fused pallas_call.
# -----------------------------------------------------------------------------
@jax.jit
def net_forward(x, params):
    # Flatten the only contributing window of x (rows 0..6) once, cast to bf16
    # once, and append the ones element the folded conv biases ride on.
    x_win = x[:, 0, :K_USED, :].astype(jnp.bfloat16).reshape(1, CONV_FLAT)
    tail = jnp.zeros((1, XDIM - CONV_FLAT), jnp.bfloat16).at[0, 0].set(1)
    x_in = jnp.concatenate([x_win, tail], axis=1)                  # (1, XDIM)

    out = pl.pallas_call(
        _fused_kernel,
        out_shape=jax.ShapeDtypeStruct((N_ROWS, L), jnp.float32),
        grid=(1,),
        in_specs=[
            pl.BlockSpec((1, XDIM), lambda i: (0, 0)),             # x (bf16)
            pl.BlockSpec((XDIM, NCAT_PAD), lambda i: (0, 0)),      # conv slab
            pl.BlockSpec((FCW_ROWS, L), lambda i: (0, 0)),         # fc slab
        ],
        out_specs=pl.BlockSpec((N_ROWS, L), lambda i: (0, 0)),
        compiler_params=pltpu.CompilerParams(
            dimension_semantics=("arbitrary",)),
    )(x_in, params["conv_pack"], params["fc_pack"])
    # only lanes 0..29 are real fc6 outputs (rest are structural-zero padding)
    return out[:, :FC6_OUT]


# -----------------------------------------------------------------------------
# Pure-JAX reference with the same bf16 rounding points (for validation).
# -----------------------------------------------------------------------------
def reference_forward(x, ref):
    xw = x[:, 0, :K_USED, :].astype(jnp.bfloat16).astype(jnp.float32)  # (N,7,300)
    feats = []
    for k in range(1, K_USED + 1):
        wk = jnp.asarray(ref["conv_w"][k - 1])                         # (k, 300)
        pre = jnp.sum(xw[:, :k, :] * wk[None, :, :], axis=(1, 2)) + ref["conv_b"][k - 1]
        feats.append(jnp.abs(jnp.tanh(pre)))                           # (N,)
    cat = jnp.concatenate(feats, axis=0)          # torch.cat((x1..x7), 0) order
    rows = cat.reshape(N_ROWS, K_USED)            # torch .view(-1, 7)
    rows = rows.astype(jnp.bfloat16).astype(jnp.float32)
    h0 = jnp.maximum(rows @ jnp.asarray(ref["w0t"]) + jnp.asarray(ref["b0"]), 0.0)
    h0 = h0.astype(jnp.bfloat16).astype(jnp.float32)
    h1 = jnp.maximum(h0 @ jnp.asarray(ref["w1t"]) + jnp.asarray(ref["b1"]), 0.0)
    h1 = h1.astype(jnp.bfloat16).astype(jnp.float32)
    return h1 @ jnp.asarray(ref["w6t"]) + jnp.asarray(ref["b6"])


if __name__ == "__main__":
    key = jax.random.PRNGKey(0)
    kx, kp = jax.random.split(key)
    x = jax.random.normal(kx, (N, 1, H, EMB), jnp.float32)
    params, ref = init_params(kp)

    out = net_forward(x, params)
    out = jax.block_until_ready(out)

    assert out.shape == (N, FC6_OUT), out.shape
    assert bool(jnp.all(jnp.isfinite(out)))

    expected = reference_forward(x, ref)
    assert float(jnp.max(jnp.abs(out - expected))) < 3e-2

    print("KERNEL_OK")
</pallas_src>

<mosaic_0001>
module attributes {stable_mosaic.version = 11 : i64} {
  func.func @_fused_kernel(%arg0: i32, %arg1: memref<1x4208xbf16, #tpu.memory_space<vmem>>, %arg2: memref<4208x16xbf16, #tpu.memory_space<vmem>>, %arg3: memref<640x304xbf16, #tpu.memory_space<vmem>>, %arg4: memref<2x304xf32, #tpu.memory_space<vmem>>) attributes {dimension_semantics = [#tpu.dimension_semantics<arbitrary>], iteration_bounds = array<i64: 1>, scalar_prefetch = 0 : i64, scratch_operands = 0 : i64, tpu.core_type = #tpu.core_type<tc>, window_params = [{pipeline_mode = #tpu.pipeline_mode<synchronous>, transform_indices = @transform_0, window_bounds = array<i64: 1, 4208>}, {pipeline_mode = #tpu.pipeline_mode<synchronous>, transform_indices = @transform_1, window_bounds = array<i64: 4208, 16>}, {pipeline_mode = #tpu.pipeline_mode<synchronous>, transform_indices = @transform_2, window_bounds = array<i64: 640, 304>}, {pipeline_mode = #tpu.pipeline_mode<synchronous>, transform_indices = @transform_3, window_bounds = array<i64: 2, 304>}]} {
    %c0 = arith.constant 0 : index
    %c0_0 = arith.constant 0 : index
    %0 = vector.load %arg1[%c0, %c0_0] : memref<1x4208xbf16, #tpu.memory_space<vmem>>, vector<1x4208xbf16>
    %c0_1 = arith.constant 0 : index
    %c0_2 = arith.constant 0 : index
    %1 = vector.load %arg2[%c0_1, %c0_2] : memref<4208x16xbf16, #tpu.memory_space<vmem>>, vector<4208x16xbf16>
    %cst = arith.constant dense<0.000000e+00> : vector<1x16xf32>
    %2 = tpu.matmul %0, %1, %cst {dimension_numbers = #tpu.dot_dimension_numbers<[1], [0], [0], [1], [0, 0, 1, 1], [], []>} : vector<1x4208xbf16>, vector<4208x16xbf16>, vector<1x16xf32> -> vector<1x16xf32>
    %3 = math.tanh %2 : vector<1x16xf32>
    %4 = math.absf %3 : vector<1x16xf32>
    %5 = tpu.iota {dimensions = array<i32: 1>} : vector<1x16xi32>
    %c15_i32 = arith.constant 15 : i32
    %6 = vector.broadcast %c15_i32 : i32 to vector<1x16xi32>
    %7 = arith.cmpi eq, %5, %6 : vector<1x16xi32>
    %cst_3 = arith.constant 1.000000e+00 : f32
    %8 = vector.broadcast %cst_3 : f32 to vector<1x16xf32>
    %9 = arith.select %7, %8, %4 : vector<1x16xi1>, vector<1x16xf32>
    %10 = arith.truncf %9 : vector<1x16xf32> to vector<1x16xbf16>
    %c0_4 = arith.constant 0 : index
    %c0_5 = arith.constant 0 : index
    %11 = vector.load %arg3[%c0_4, %c0_5] : memref<640x304xbf16, #tpu.memory_space<vmem>>, vector<16x304xbf16>
    %cst_6 = arith.constant dense<0.000000e+00> : vector<1x304xf32>
    %12 = tpu.matmul %10, %11, %cst_6 {dimension_numbers = #tpu.dot_dimension_numbers<[1], [0], [0], [1], [0, 0, 1, 1], [], []>} : vector<1x16xbf16>, vector<16x304xbf16>, vector<1x304xf32> -> vector<1x304xf32>
    %c16 = arith.constant 16 : index
    %c0_7 = arith.constant 0 : index
    %13 = vector.load %arg3[%c16, %c0_7] : memref<640x304xbf16, #tpu.memory_space<vmem>>, vector<16x304xbf16>
    %cst_8 = arith.constant dense<0.000000e+00> : vector<1x304xf32>
    %14 = tpu.matmul %10, %13, %cst_8 {dimension_numbers = #tpu.dot_dimension_numbers<[1], [0], [0], [1], [0, 0, 1, 1], [], []>} : vector<1x16xbf16>, vector<16x304xbf16>, vector<1x304xf32> -> vector<1x304xf32>
    %15 = tpu.iota {dimensions = array<i32: 0>} : vector<2x304xi32>
    %c1_i32 = arith.constant 1 : i32
    %16 = vector.broadcast %c1_i32 : i32 to vector<2x304xi32>
    %17 = arith.cmpi eq, %15, %16 : vector<2x304xi32>
    %18 = vector.shape_cast %14 : vector<1x304xf32> to vector<1x304xf32>
    %19 = vector.broadcast %18 : vector<1x304xf32> to vector<2x304xf32>
    %20 = vector.shape_cast %12 : vector<1x304xf32> to vector<1x304xf32>
    %21 = vector.broadcast %20 : vector<1x304xf32> to vector<2x304xf32>
    %22 = arith.select %17, %19, %21 : vector<2x304xi1>, vector<2x304xf32>
    %cst_9 = arith.constant 0.000000e+00 : f32
    %23 = vector.broadcast %cst_9 : f32 to vector<2x304xf32>
    %24 = arith.maximumf %22, %23 : vector<2x304xf32>
    %c32 = arith.constant 32 : index
    %c0_10 = arith.constant 0 : index
    %25 = vector.load %arg3[%c32, %c0_10] : memref<640x304xbf16, #tpu.memory_space<vmem>>, vector<304x304xbf16>
    %26 = arith.truncf %24 : vector<2x304xf32> to vector<2x304xbf16>
    %cst_11 = arith.constant dense<0.000000e+00> : vector<2x304xf32>
    %27 = tpu.matmul %26, %25, %cst_11 {dimension_numbers = #tpu.dot_dimension_numbers<[1], [0], [0], [1], [0, 0, 1, 1], [], []>} : vector<2x304xbf16>, vector<304x304xbf16>, vector<2x304xf32> -> vector<2x304xf32>
    %cst_12 = arith.constant 0.000000e+00 : f32
    %28 = vector.broadcast %cst_12 : f32 to vector<2x304xf32>
    %29 = arith.maximumf %27, %28 : vector<2x304xf32>
    %c336 = arith.constant 336 : index
    %c0_13 = arith.constant 0 : index
    %30 = vector.load %arg3[%c336, %c0_13] : memref<640x304xbf16, #tpu.memory_space<vmem>>, vector<304x304xbf16>
    %31 = arith.truncf %29 : vector<2x304xf32> to vector<2x304xbf16>
    %cst_14 = arith.constant dense<0.000000e+00> : vector<2x304xf32>
    %32 = tpu.matmul %31, %30, %cst_14 {dimension_numbers = #tpu.dot_dimension_numbers<[1], [0], [0], [1], [0, 0, 1, 1], [], []>} : vector<2x304xbf16>, vector<304x304xbf16>, vector<2x304xf32> -> vector<2x304xf32>
    %c0_15 = arith.constant 0 : index
    %c0_16 = arith.constant 0 : index
    %33 = vector.load %arg4[%c0_15, %c0_16] : memref<2x304xf32, #tpu.memory_space<vmem>>, vector<2x304xf32>
    tpu.vector_store %arg4[%c0_15, %c0_16], %32 {strides = array<i32>} : memref<2x304xf32, #tpu.memory_space<vmem>>, vector<2x304xf32>,
    return
  }
  func.func @transform_0(%arg0: i32) -> (i32, i32) {
    %c0_i32 = arith.constant 0 : i32
    %c0_i32_0 = arith.constant 0 : i32
    %c0_i32_1 = arith.constant 0 : i32
    return %c0_i32, %c0_i32_0 : i32, i32
  }
  func.func @transform_1(%arg0: i32) -> (i32, i32) {
    %c0_i32 = arith.constant 0 : i32
    %c0_i32_0 = arith.constant 0 : i32
    %c0_i32_1 = arith.constant 0 : i32
    return %c0_i32, %c0_i32_0 : i32, i32
  }
  func.func @transform_2(%arg0: i32) -> (i32, i32) {
    %c0_i32 = arith.constant 0 : i32
    %c0_i32_0 = arith.constant 0 : i32
    %c0_i32_1 = arith.constant 0 : i32
    return %c0_i32, %c0_i32_0 : i32, i32
  }
  func.func @transform_3(%arg0: i32) -> (i32, i32) {
    %c0_i32 = arith.constant 0 : i32
    %c0_i32_0 = arith.constant 0 : i32
    %c0_i32_1 = arith.constant 0 : i32
    return %c0_i32, %c0_i32_0 : i32, i32
  }
}

</mosaic_0001>

<llo_original>
// kernel: net_forward.1
$region0: #{net_forward.1}
  #allocation0 [shape = 'u32[]', space=smem, size = 0x4, offset = 0x4, fixed_abs, tag = 'smem constant byte address 0x4 - core index']
  #allocation1 [shape = 'u32[144,128]{1,0:T(1,128)}', space=vmem, size = 0x12000, scoped, tag = 'internal scratch']
  %s0 = inlined_call_operand.vmem [shape: bf16[1,4208], index: 0, kind: input, shape index: {}]
  %s1 = inlined_call_operand.vmem [shape: bf16[4208,16], index: 1, kind: input, shape index: {}]
  %s2 = inlined_call_operand.vmem [shape: bf16[640,304], index: 2, kind: input, shape index: {}]
  %s3 = inlined_call_operand.vmem [shape: f32[2,304], index: 3, kind: output, shape index: {}]
  %s4 = sld [smem:[#allocation0]]
  $region22: #{net_forward.1} parent=0
    _
  %s6 = ssub.s32 1, %s4
  %s7 = scalar_select 0, %s6, %s4
  // Predicated region
  $region2: #{net_forward.1} parent=0 // pred_check
    _
  $region3: #{net_forward.1} parent=0 // pred_check_branch
    %9 = sbr.rel (0) target = $region5
  $region4: #{net_forward.1} parent=0 // pred_region
    _
  $region5: #{net_forward.1} parent=0 // pred_fallthru
    _
  // Predicated region
  $region6: #{net_forward.1} parent=0 // pred_check
    _
  $region7: #{net_forward.1} parent=0 // pred_check_branch
    %11 = sbr.rel (0) target = $region9
  $region8: #{net_forward.1} parent=0 // pred_region
    _
  $region9: #{net_forward.1} parent=0 // pred_fallthru
    _
  // Predicated region
  $region10: #{net_forward.1} parent=0 // pred_check
    _
  $region11: #{net_forward.1} parent=0 // pred_check_branch
    %13 = sbr.rel (0) target = $region13
  $region12: #{net_forward.1} parent=0 // pred_region
    _
  $region13: #{net_forward.1} parent=0 // pred_fallthru
    _
  %v15 = vld [vmem:[%s0] sm:$0xff]
  %v16 = vld [vmem:[%s0 + $0x8] sm:$0xff]
  %v17 = vld [vmem:[%s0 + $0x10] sm:$0xff]
  %v18 = vld [vmem:[%s0 + $0x18] sm:$0xff]
  %v19 = vld [vmem:[%s0 + $0x20] sm:$0x1]
  %v20 = vld [vmem:[%s1] sm:$0xf]
  %v21 = vld [vmem:[%s1 + $0x4] sm:$0xf]
  %v22 = vld [vmem:[%s1 + $0x8] sm:$0xf]
  %v23 = vld [vmem:[%s1 + $0xc] sm:$0xf]
  %v24 = vld [vmem:[%s1 + $0x10] sm:$0xf]
  %v25 = vld [vmem:[%s1 + $0x14] sm:$0xf]
  %v26 = vld [vmem:[%s1 + $0x18] sm:$0xf]
  %v27 = vld [vmem:[%s1 + $0x1c] sm:$0xf]
  %v28 = vld [vmem:[%s1 + $0x20] sm:$0xf]
  %v29 = vld [vmem:[%s1 + $0x24] sm:$0xf]
  %v30 = vld [vmem:[%s1 + $0x28] sm:$0xf]
  %v31 = vld [vmem:[%s1 + $0x2c] sm:$0xf]
  %v32 = vld [vmem:[%s1 + $0x30] sm:$0xf]
  %v33 = vld [vmem:[%s1 + $0x34] sm:$0xf]
  %v34 = vld [vmem:[%s1 + $0x38] sm:$0xf]
  %v35 = vld [vmem:[%s1 + $0x3c] sm:$0xf]
  %v36 = vld [vmem:[%s1 + $0x40] sm:$0xf]
  %v37 = vld [vmem:[%s1 + $0x44] sm:$0xf]
  %v38 = vld [vmem:[%s1 + $0x48] sm:$0xf]
  %v39 = vld [vmem:[%s1 + $0x4c] sm:$0xf]
  %v40 = vld [vmem:[%s1 + $0x50] sm:$0xf]
  %v41 = vld [vmem:[%s1 + $0x54] sm:$0xf]
  %v42 = vld [vmem:[%s1 + $0x58] sm:$0xf]
  %v43 = vld [vmem:[%s1 + $0x5c] sm:$0xf]
  %v44 = vld [vmem:[%s1 + $0x60] sm:$0xf]
  %v45 = vld [vmem:[%s1 + $0x64] sm:$0xf]
  %v46 = vld [vmem:[%s1 + $0x68] sm:$0xf]
  %v47 = vld [vmem:[%s1 + $0x6c] sm:$0xf]
  %v48 = vld [vmem:[%s1 + $0x70] sm:$0xf]
  %v49 = vld [vmem:[%s1 + $0x74] sm:$0xf]
  %v50 = vld [vmem:[%s1 + $0x78] sm:$0xf]
  %v51 = vld [vmem:[%s1 + $0x7c] sm:$0xf]
  %v52 = vld [vmem:[%s1 + $0x80] sm:$0xf]
  %v53 = vld [vmem:[%s1 + $0x84] sm:$0xf]
  %v54 = vld [vmem:[%s1 + $0x88] sm:$0xf]
  %v55 = vld [vmem:[%s1 + $0x8c] sm:$0xf]
  %v56 = vld [vmem:[%s1 + $0x90] sm:$0xf]
  %v57 = vld [vmem:[%s1 + $0x94] sm:$0xf]
  %v58 = vld [vmem:[%s1 + $0x98] sm:$0xf]
  %v59 = vld [vmem:[%s1 + $0x9c] sm:$0xf]
  %v60 = vld [vmem:[%s1 + $0xa0] sm:$0xf]
  %v61 = vld [vmem:[%s1 + $0xa4] sm:$0xf]
  %v62 = vld [vmem:[%s1 + $0xa8] sm:$0xf]
  %v63 = vld [vmem:[%s1 + $0xac] sm:$0xf]
  %v64 = vld [vmem:[%s1 + $0xb0] sm:$0xf]
  %v65 = vld [vmem:[%s1 + $0xb4] sm:$0xf]
  %v66 = vld [vmem:[%s1 + $0xb8] sm:$0xf]
  %v67 = vld [vmem:[%s1 + $0xbc] sm:$0xf]
  %v68 = vld [vmem:[%s1 + $0xc0] sm:$0xf]
  %v69 = vld [vmem:[%s1 + $0xc4] sm:$0xf]
  %v70 = vld [vmem:[%s1 + $0xc8] sm:$0xf]
  %v71 = vld [vmem:[%s1 + $0xcc] sm:$0xf]
  %v72 = vld [vmem:[%s1 + $0xd0] sm:$0xf]
  %v73 = vld [vmem:[%s1 + $0xd4] sm:$0xf]
  %v74 = vld [vmem:[%s1 + $0xd8] sm:$0xf]
  %v75 = vld [vmem:[%s1 + $0xdc] sm:$0xf]
  %v76 = vld [vmem:[%s1 + $0xe0] sm:$0xf]
  %v77 = vld [vmem:[%s1 + $0xe4] sm:$0xf]
  %v78 = vld [vmem:[%s1 + $0xe8] sm:$0xf]
  %v79 = vld [vmem:[%s1 + $0xec] sm:$0xf]
  %v80 = vld [vmem:[%s1 + $0xf0] sm:$0xf]
  %v81 = vld [vmem:[%s1 + $0xf4] sm:$0xf]
  %v82 = vld [vmem:[%s1 + $0xf8] sm:$0xf]
  %v83 = vld [vmem:[%s1 + $0xfc] sm:$0xf]
  %v84 = vld [vmem:[%s1 + $0x100] sm:$0xf]
  %v85 = vld [vmem:[%s1 + $0x104] sm:$0xf]
  %v86 = vld [vmem:[%s1 + $0x108] sm:$0xf]
  %v87 = vld [vmem:[%s1 + $0x10c] sm:$0xf]
  %v88 = vld [vmem:[%s1 + $0x110] sm:$0xf]
  %v89 = vld [vmem:[%s1 + $0x114] sm:$0xf]
  %v90 = vld [vmem:[%s1 + $0x118] sm:$0xf]
  %v91 = vld [vmem:[%s1 + $0x11c] sm:$0xf]
  %v92 = vld [vmem:[%s1 + $0x120] sm:$0xf]
  %v93 = vld [vmem:[%s1 + $0x124] sm:$0xf]
  %v94 = vld [vmem:[%s1 + $0x128] sm:$0xf]
  %v95 = vld [vmem:[%s1 + $0x12c] sm:$0xf]
  %v96 = vld [vmem:[%s1 + $0x130] sm:$0xf]
  %v97 = vld [vmem:[%s1 + $0x134] sm:$0xf]
  %v98 = vld [vmem:[%s1 + $0x138] sm:$0xf]
  %v99 = vld [vmem:[%s1 + $0x13c] sm:$0xf]
  %v100 = vld [vmem:[%s1 + $0x140] sm:$0xf]
  %v101 = vld [vmem:[%s1 + $0x144] sm:$0xf]
  %v102 = vld [vmem:[%s1 + $0x148] sm:$0xf]
  %v103 = vld [vmem:[%s1 + $0x14c] sm:$0xf]
  %v104 = vld [vmem:[%s1 + $0x150] sm:$0xf]
  %v105 = vld [vmem:[%s1 + $0x154] sm:$0xf]
  %v106 = vld [vmem:[%s1 + $0x158] sm:$0xf]
  %v107 = vld [vmem:[%s1 + $0x15c] sm:$0xf]
  %v108 = vld [vmem:[%s1 + $0x160] sm:$0xf]
  %v109 = vld [vmem:[%s1 + $0x164] sm:$0xf]
  %v110 = vld [vmem:[%s1 + $0x168] sm:$0xf]
  %v111 = vld [vmem:[%s1 + $0x16c] sm:$0xf]
  %v112 = vld [vmem:[%s1 + $0x170] sm:$0xf]
  %v113 = vld [vmem:[%s1 + $0x174] sm:$0xf]
  %v114 = vld [vmem:[%s1 + $0x178] sm:$0xf]
  %v115 = vld [vmem:[%s1 + $0x17c] sm:$0xf]
  %v116 = vld [vmem:[%s1 + $0x180] sm:$0xf]
  %v117 = vld [vmem:[%s1 + $0x184] sm:$0xf]
  %v118 = vld [vmem:[%s1 + $0x188] sm:$0xf]
  %v119 = vld [vmem:[%s1 + $0x18c] sm:$0xf]
  %v120 = vld [vmem:[%s1 + $0x190] sm:$0xf]
  %v121 = vld [vmem:[%s1 + $0x194] sm:$0xf]
  %v122 = vld [vmem:[%s1 + $0x198] sm:$0xf]
  %v123 = vld [vmem:[%s1 + $0x19c] sm:$0xf]
  %v124 = vld [vmem:[%s1 + $0x1a0] sm:$0xf]
  %v125 = vld [vmem:[%s1 + $0x1a4] sm:$0xf]
  %v126 = vld [vmem:[%s1 + $0x1a8] sm:$0xf]
  %v127 = vld [vmem:[%s1 + $0x1ac] sm:$0xf]
  %v128 = vld [vmem:[%s1 + $0x1b0] sm:$0xf]
  %v129 = vld [vmem:[%s1 + $0x1b4] sm:$0xf]
  %v130 = vld [vmem:[%s1 + $0x1b8] sm:$0xf]
  %v131 = vld [vmem:[%s1 + $0x1bc] sm:$0xf]
  %v132 = vld [vmem:[%s1 + $0x1c0] sm:$0xf]
  %v133 = vld [vmem:[%s1 + $0x1c4] sm:$0xf]
  %v134 = vld [vmem:[%s1 + $0x1c8] sm:$0xf]
  %v135 = vld [vmem:[%s1 + $0x1cc] sm:$0xf]
  %v136 = vld [vmem:[%s1 + $0x1d0] sm:$0xf]
  %v137 = vld [vmem:[%s1 + $0x1d4] sm:$0xf]
  %v138 = vld [vmem:[%s1 + $0x1d8] sm:$0xf]
  %v139 = vld [vmem:[%s1 + $0x1dc] sm:$0xf]
  %v140 = vld [vmem:[%s1 + $0x1e0] sm:$0xf]
  %v141 = vld [vmem:[%s1 + $0x1e4] sm:$0xf]
  %v142 = vld [vmem:[%s1 + $0x1e8] sm:$0xf]
  %v143 = vld [vmem:[%s1 + $0x1ec] sm:$0xf]
  %v144 = vld [vmem:[%s1 + $0x1f0] sm:$0xf]
  %v145 = vld [vmem:[%s1 + $0x1f4] sm:$0xf]
  %v146 = vld [vmem:[%s1 + $0x1f8] sm:$0xf]
  %v147 = vld [vmem:[%s1 + $0x1fc] sm:$0xf]
  %v148 = vld [vmem:[%s1 + $0x200] sm:$0xf]
  %v149 = vld [vmem:[%s1 + $0x204] sm:$0xf]
  %v150 = vld [vmem:[%s1 + $0x208] sm:$0xf]
  %v151 = vld [vmem:[%s1 + $0x20c] sm:$0xf]
  %v152 = vld [vmem:[%s1 + $0x210] sm:$0xf]
  %v153 = vld [vmem:[%s1 + $0x214] sm:$0xf]
  %v154 = vld [vmem:[%s1 + $0x218] sm:$0xf]
  %v155 = vld [vmem:[%s1 + $0x21c] sm:$0xf]
  %v156 = vld [vmem:[%s1 + $0x220] sm:$0xf]
  %v157 = vld [vmem:[%s1 + $0x224] sm:$0xf]
  %v158 = vld [vmem:[%s1 + $0x228] sm:$0xf]
  %v159 = vld [vmem:[%s1 + $0x22c] sm:$0xf]
  %v160 = vld [vmem:[%s1 + $0x230] sm:$0xf]
  %v161 = vld [vmem:[%s1 + $0x234] sm:$0xf]
  %v162 = vld [vmem:[%s1 + $0x238] sm:$0xf]
  %v163 = vld [vmem:[%s1 + $0x23c] sm:$0xf]
  %v164 = vld [vmem:[%s1 + $0x240] sm:$0xf]
  %v165 = vld [vmem:[%s1 + $0x244] sm:$0xf]
  %v166 = vld [vmem:[%s1 + $0x248] sm:$0xf]
  %v167 = vld [vmem:[%s1 + $0x24c] sm:$0xf]
  %v168 = vld [vmem:[%s1 + $0x250] sm:$0xf]
  %v169 = vld [vmem:[%s1 + $0x254] sm:$0xf]
  %v170 = vld [vmem:[%s1 + $0x258] sm:$0xf]
  %v171 = vld [vmem:[%s1 + $0x25c] sm:$0xf]
  %v172 = vld [vmem:[%s1 + $0x260] sm:$0xf]
  %v173 = vld [vmem:[%s1 + $0x264] sm:$0xf]
  %v174 = vld [vmem:[%s1 + $0x268] sm:$0xf]
  %v175 = vld [vmem:[%s1 + $0x26c] sm:$0xf]
  %v176 = vld [vmem:[%s1 + $0x270] sm:$0xf]
  %v177 = vld [vmem:[%s1 + $0x274] sm:$0xf]
  %v178 = vld [vmem:[%s1 + $0x278] sm:$0xf]
  %v179 = vld [vmem:[%s1 + $0x27c] sm:$0xf]
  %v180 = vld [vmem:[%s1 + $0x280] sm:$0xf]
  %v181 = vld [vmem:[%s1 + $0x284] sm:$0xf]
  %v182 = vld [vmem:[%s1 + $0x288] sm:$0xf]
  %v183 = vld [vmem:[%s1 + $0x28c] sm:$0xf]
  %v184 = vld [vmem:[%s1 + $0x290] sm:$0xf]
  %v185 = vld [vmem:[%s1 + $0x294] sm:$0xf]
  %v186 = vld [vmem:[%s1 + $0x298] sm:$0xf]
  %v187 = vld [vmem:[%s1 + $0x29c] sm:$0xf]
  %v188 = vld [vmem:[%s1 + $0x2a0] sm:$0xf]
  %v189 = vld [vmem:[%s1 + $0x2a4] sm:$0xf]
  %v190 = vld [vmem:[%s1 + $0x2a8] sm:$0xf]
  %v191 = vld [vmem:[%s1 + $0x2ac] sm:$0xf]
  %v192 = vld [vmem:[%s1 + $0x2b0] sm:$0xf]
  %v193 = vld [vmem:[%s1 + $0x2b4] sm:$0xf]
  %v194 = vld [vmem:[%s1 + $0x2b8] sm:$0xf]
  %v195 = vld [vmem:[%s1 + $0x2bc] sm:$0xf]
  %v196 = vld [vmem:[%s1 + $0x2c0] sm:$0xf]
  %v197 = vld [vmem:[%s1 + $0x2c4] sm:$0xf]
  %v198 = vld [vmem:[%s1 + $0x2c8] sm:$0xf]
  %v199 = vld [vmem:[%s1 + $0x2cc] sm:$0xf]
  %v200 = vld [vmem:[%s1 + $0x2d0] sm:$0xf]
  %v201 = vld [vmem:[%s1 + $0x2d4] sm:$0xf]
  %v202 = vld [vmem:[%s1 + $0x2d8] sm:$0xf]
  %v203 = vld [vmem:[%s1 + $0x2dc] sm:$0xf]
  %v204 = vld [vmem:[%s1 + $0x2e0] sm:$0xf]
  %v205 = vld [vmem:[%s1 + $0x2e4] sm:$0xf]
  %v206 = vld [vmem:[%s1 + $0x2e8] sm:$0xf]
  %v207 = vld [vmem:[%s1 + $0x2ec] sm:$0xf]
  %v208 = vld [vmem:[%s1 + $0x2f0] sm:$0xf]
  %v209 = vld [vmem:[%s1 + $0x2f4] sm:$0xf]
  %v210 = vld [vmem:[%s1 + $0x2f8] sm:$0xf]
  %v211 = vld [vmem:[%s1 + $0x2fc] sm:$0xf]
  %v212 = vld [vmem:[%s1 + $0x300] sm:$0xf]
  %v213 = vld [vmem:[%s1 + $0x304] sm:$0xf]
  %v214 = vld [vmem:[%s1 + $0x308] sm:$0xf]
  %v215 = vld [vmem:[%s1 + $0x30c] sm:$0xf]
  %v216 = vld [vmem:[%s1 + $0x310] sm:$0xf]
  %v217 = vld [vmem:[%s1 + $0x314] sm:$0xf]
  %v218 = vld [vmem:[%s1 + $0x318] sm:$0xf]
  %v219 = vld [vmem:[%s1 + $0x31c] sm:$0xf]
  %v220 = vld [vmem:[%s1 + $0x320] sm:$0xf]
  %v221 = vld [vmem:[%s1 + $0x324] sm:$0xf]
  %v222 = vld [vmem:[%s1 + $0x328] sm:$0xf]
  %v223 = vld [vmem:[%s1 + $0x32c] sm:$0xf]
  %v224 = vld [vmem:[%s1 + $0x330] sm:$0xf]
  %v225 = vld [vmem:[%s1 + $0x334] sm:$0xf]
  %v226 = vld [vmem:[%s1 + $0x338] sm:$0xf]
  %v227 = vld [vmem:[%s1 + $0x33c] sm:$0xf]
  %v228 = vld [vmem:[%s1 + $0x340] sm:$0xf]
  %v229 = vld [vmem:[%s1 + $0x344] sm:$0xf]
  %v230 = vld [vmem:[%s1 + $0x348] sm:$0xf]
  %v231 = vld [vmem:[%s1 + $0x34c] sm:$0xf]
  %v232 = vld [vmem:[%s1 + $0x350] sm:$0xf]
  %v233 = vld [vmem:[%s1 + $0x354] sm:$0xf]
  %v234 = vld [vmem:[%s1 + $0x358] sm:$0xf]
  %v235 = vld [vmem:[%s1 + $0x35c] sm:$0xf]
  %v236 = vld [vmem:[%s1 + $0x360] sm:$0xf]
  %v237 = vld [vmem:[%s1 + $0x364] sm:$0xf]
  %v238 = vld [vmem:[%s1 + $0x368] sm:$0xf]
  %v239 = vld [vmem:[%s1 + $0x36c] sm:$0xf]
  %v240 = vld [vmem:[%s1 + $0x370] sm:$0xf]
  %v241 = vld [vmem:[%s1 + $0x374] sm:$0xf]
  %v242 = vld [vmem:[%s1 + $0x378] sm:$0xf]
  %v243 = vld [vmem:[%s1 + $0x37c] sm:$0xf]
  %v244 = vld [vmem:[%s1 + $0x380] sm:$0xf]
  %v245 = vld [vmem:[%s1 + $0x384] sm:$0xf]
  %v246 = vld [vmem:[%s1 + $0x388] sm:$0xf]
  %v247 = vld [vmem:[%s1 + $0x38c] sm:$0xf]
  %v248 = vld [vmem:[%s1 + $0x390] sm:$0xf]
  %v249 = vld [vmem:[%s1 + $0x394] sm:$0xf]
  %v250 = vld [vmem:[%s1 + $0x398] sm:$0xf]
  %v251 = vld [vmem:[%s1 + $0x39c] sm:$0xf]
  %v252 = vld [vmem:[%s1 + $0x3a0] sm:$0xf]
  %v253 = vld [vmem:[%s1 + $0x3a4] sm:$0xf]
  %v254 = vld [vmem:[%s1 + $0x3a8] sm:$0xf]
  %v255 = vld [vmem:[%s1 + $0x3ac] sm:$0xf]
  %v256 = vld [vmem:[%s1 + $0x3b0] sm:$0xf]
  %v257 = vld [vmem:[%s1 + $0x3b4] sm:$0xf]
  %v258 = vld [vmem:[%s1 + $0x3b8] sm:$0xf]
  %v259 = vld [vmem:[%s1 + $0x3bc] sm:$0xf]
  %v260 = vld [vmem:[%s1 + $0x3c0] sm:$0xf]
  %v261 = vld [vmem:[%s1 + $0x3c4] sm:$0xf]
  %v262 = vld [vmem:[%s1 + $0x3c8] sm:$0xf]
  %v263 = vld [vmem:[%s1 + $0x3cc] sm:$0xf]
  %v264 = vld [vmem:[%s1 + $0x3d0] sm:$0xf]
  %v265 = vld [vmem:[%s1 + $0x3d4] sm:$0xf]
  %v266 = vld [vmem:[%s1 + $0x3d8] sm:$0xf]
  %v267 = vld [vmem:[%s1 + $0x3dc] sm:$0xf]
  %v268 = vld [vmem:[%s1 + $0x3e0] sm:$0xf]
  %v269 = vld [vmem:[%s1 + $0x3e4] sm:$0xf]
  %v270 = vld [vmem:[%s1 + $0x3e8] sm:$0xf]
  %v271 = vld [vmem:[%s1 + $0x3ec] sm:$0xf]
  %v272 = vld [vmem:[%s1 + $0x3f0] sm:$0xf]
  %v273 = vld [vmem:[%s1 + $0x3f4] sm:$0xf]
  %v274 = vld [vmem:[%s1 + $0x3f8] sm:$0xf]
  %v275 = vld [vmem:[%s1 + $0x3fc] sm:$0xf]
  %v276 = vld [vmem:[%s1 + $0x400] sm:$0xf]
  %v277 = vld [vmem:[%s1 + $0x404] sm:$0xf]
  %v278 = vld [vmem:[%s1 + $0x408] sm:$0xf]
  %v279 = vld [vmem:[%s1 + $0x40c] sm:$0xf]
  %v280 = vld [vmem:[%s1 + $0x410] sm:$0xf]
  %v281 = vld [vmem:[%s1 + $0x414] sm:$0xf]
  %v282 = vld [vmem:[%s1 + $0x418] sm:$0xf]
  %v283 = vld [vmem:[%s1 + $0x41c] sm:$0xf]
  %v284 = vld [vmem:[%s1 + $0x420] sm:$0xf]
  %v285 = vld [vmem:[%s1 + $0x424] sm:$0xf]
  %v286 = vld [vmem:[%s1 + $0x428] sm:$0xf]
  %v287 = vld [vmem:[%s1 + $0x42c] sm:$0xf]
  %v288 = vld [vmem:[%s1 + $0x430] sm:$0xf]
  %v289 = vld [vmem:[%s1 + $0x434] sm:$0xf]
  %v290 = vld [vmem:[%s1 + $0x438] sm:$0xf]
  %v291 = vld [vmem:[%s1 + $0x43c] sm:$0xf]
  %v292 = vld [vmem:[%s1 + $0x440] sm:$0xf]
  %v293 = vld [vmem:[%s1 + $0x444] sm:$0xf]
  %v294 = vld [vmem:[%s1 + $0x448] sm:$0xf]
  %v295 = vld [vmem:[%s1 + $0x44c] sm:$0xf]
  %v296 = vld [vmem:[%s1 + $0x450] sm:$0xf]
  %v297 = vld [vmem:[%s1 + $0x454] sm:$0xf]
  %v298 = vld [vmem:[%s1 + $0x458] sm:$0xf]
  %v299 = vld [vmem:[%s1 + $0x45c] sm:$0xf]
  %v300 = vld [vmem:[%s1 + $0x460] sm:$0xf]
  %v301 = vld [vmem:[%s1 + $0x464] sm:$0xf]
  %v302 = vld [vmem:[%s1 + $0x468] sm:$0xf]
  %v303 = vld [vmem:[%s1 + $0x46c] sm:$0xf]
  %v304 = vld [vmem:[%s1 + $0x470] sm:$0xf]
  %v305 = vld [vmem:[%s1 + $0x474] sm:$0xf]
  %v306 = vld [vmem:[%s1 + $0x478] sm:$0xf]
  %v307 = vld [vmem:[%s1 + $0x47c] sm:$0xf]
  %v308 = vld [vmem:[%s1 + $0x480] sm:$0xf]
  %v309 = vld [vmem:[%s1 + $0x484] sm:$0xf]
  %v310 = vld [vmem:[%s1 + $0x488] sm:$0xf]
  %v311 = vld [vmem:[%s1 + $0x48c] sm:$0xf]
  %v312 = vld [vmem:[%s1 + $0x490] sm:$0xf]
  %v313 = vld [vmem:[%s1 + $0x494] sm:$0xf]
  %v314 = vld [vmem:[%s1 + $0x498] sm:$0xf]
  %v315 = vld [vmem:[%s1 + $0x49c] sm:$0xf]
  %v316 = vld [vmem:[%s1 + $0x4a0] sm:$0xf]
  %v317 = vld [vmem:[%s1 + $0x4a4] sm:$0xf]
  %v318 = vld [vmem:[%s1 + $0x4a8] sm:$0xf]
  %v319 = vld [vmem:[%s1 + $0x4ac] sm:$0xf]
  %v320 = vld [vmem:[%s1 + $0x4b0] sm:$0xf]
  %v321 = vld [vmem:[%s1 + $0x4b4] sm:$0xf]
  %v322 = vld [vmem:[%s1 + $0x4b8] sm:$0xf]
  %v323 = vld [vmem:[%s1 + $0x4bc] sm:$0xf]
  %v324 = vld [vmem:[%s1 + $0x4c0] sm:$0xf]
  %v325 = vld [vmem:[%s1 + $0x4c4] sm:$0xf]
  %v326 = vld [vmem:[%s1 + $0x4c8] sm:$0xf]
  %v327 = vld [vmem:[%s1 + $0x4cc] sm:$0xf]
  %v328 = vld [vmem:[%s1 + $0x4d0] sm:$0xf]
  %v329 = vld [vmem:[%s1 + $0x4d4] sm:$0xf]
  %v330 = vld [vmem:[%s1 + $0x4d8] sm:$0xf]
  %v331 = vld [vmem:[%s1 + $0x4dc] sm:$0xf]
  %v332 = vld [vmem:[%s1 + $0x4e0] sm:$0xf]
  %v333 = vld [vmem:[%s1 + $0x4e4] sm:$0xf]
  %v334 = vld [vmem:[%s1 + $0x4e8] sm:$0xf]
  %v335 = vld [vmem:[%s1 + $0x4ec] sm:$0xf]
  %v336 = vld [vmem:[%s1 + $0x4f0] sm:$0xf]
  %v337 = vld [vmem:[%s1 + $0x4f4] sm:$0xf]
  %v338 = vld [vmem:[%s1 + $0x4f8] sm:$0xf]
  %v339 = vld [vmem:[%s1 + $0x4fc] sm:$0xf]
  %v340 = vld [vmem:[%s1 + $0x500] sm:$0xf]
  %v341 = vld [vmem:[%s1 + $0x504] sm:$0xf]
  %v342 = vld [vmem:[%s1 + $0x508] sm:$0xf]
  %v343 = vld [vmem:[%s1 + $0x50c] sm:$0xf]
  %v344 = vld [vmem:[%s1 + $0x510] sm:$0xf]
  %v345 = vld [vmem:[%s1 + $0x514] sm:$0xf]
  %v346 = vld [vmem:[%s1 + $0x518] sm:$0xf]
  %v347 = vld [vmem:[%s1 + $0x51c] sm:$0xf]
  %v348 = vld [vmem:[%s1 + $0x520] sm:$0xf]
  %v349 = vld [vmem:[%s1 + $0x524] sm:$0xf]
  %v350 = vld [vmem:[%s1 + $0x528] sm:$0xf]
  %v351 = vld [vmem:[%s1 + $0x52c] sm:$0xf]
  %v352 = vld [vmem:[%s1 + $0x530] sm:$0xf]
  %v353 = vld [vmem:[%s1 + $0x534] sm:$0xf]
  %v354 = vld [vmem:[%s1 + $0x538] sm:$0xf]
  %v355 = vld [vmem:[%s1 + $0x53c] sm:$0xf]
  %v356 = vld [vmem:[%s1 + $0x540] sm:$0xf]
  %v357 = vld [vmem:[%s1 + $0x544] sm:$0xf]
  %v358 = vld [vmem:[%s1 + $0x548] sm:$0xf]
  %v359 = vld [vmem:[%s1 + $0x54c] sm:$0xf]
  %v360 = vld [vmem:[%s1 + $0x550] sm:$0xf]
  %v361 = vld [vmem:[%s1 + $0x554] sm:$0xf]
  %v362 = vld [vmem:[%s1 + $0x558] sm:$0xf]
  %v363 = vld [vmem:[%s1 + $0x55c] sm:$0xf]
  %v364 = vld [vmem:[%s1 + $0x560] sm:$0xf]
  %v365 = vld [vmem:[%s1 + $0x564] sm:$0xf]
  %v366 = vld [vmem:[%s1 + $0x568] sm:$0xf]
  %v367 = vld [vmem:[%s1 + $0x56c] sm:$0xf]
  %v368 = vld [vmem:[%s1 + $0x570] sm:$0xf]
  %v369 = vld [vmem:[%s1 + $0x574] sm:$0xf]
  %v370 = vld [vmem:[%s1 + $0x578] sm:$0xf]
  %v371 = vld [vmem:[%s1 + $0x57c] sm:$0xf]
  %v372 = vld [vmem:[%s1 + $0x580] sm:$0xf]
  %v373 = vld [vmem:[%s1 + $0x584] sm:$0xf]
  %v374 = vld [vmem:[%s1 + $0x588] sm:$0xf]
  %v375 = vld [vmem:[%s1 + $0x58c] sm:$0xf]
  %v376 = vld [vmem:[%s1 + $0x590] sm:$0xf]
  %v377 = vld [vmem:[%s1 + $0x594] sm:$0xf]
  %v378 = vld [vmem:[%s1 + $0x598] sm:$0xf]
  %v379 = vld [vmem:[%s1 + $0x59c] sm:$0xf]
  %v380 = vld [vmem:[%s1 + $0x5a0] sm:$0xf]
  %v381 = vld [vmem:[%s1 + $0x5a4] sm:$0xf]
  %v382 = vld [vmem:[%s1 + $0x5a8] sm:$0xf]
  %v383 = vld [vmem:[%s1 + $0x5ac] sm:$0xf]
  %v384 = vld [vmem:[%s1 + $0x5b0] sm:$0xf]
  %v385 = vld [vmem:[%s1 + $0x5b4] sm:$0xf]
  %v386 = vld [vmem:[%s1 + $0x5b8] sm:$0xf]
  %v387 = vld [vmem:[%s1 + $0x5bc] sm:$0xf]
  %v388 = vld [vmem:[%s1 + $0x5c0] sm:$0xf]
  %v389 = vld [vmem:[%s1 + $0x5c4] sm:$0xf]
  %v390 = vld [vmem:[%s1 + $0x5c8] sm:$0xf]
  %v391 = vld [vmem:[%s1 + $0x5cc] sm:$0xf]
  %v392 = vld [vmem:[%s1 + $0x5d0] sm:$0xf]
  %v393 = vld [vmem:[%s1 + $0x5d4] sm:$0xf]
  %v394 = vld [vmem:[%s1 + $0x5d8] sm:$0xf]
  %v395 = vld [vmem:[%s1 + $0x5dc] sm:$0xf]
  %v396 = vld [vmem:[%s1 + $0x5e0] sm:$0xf]
  %v397 = vld [vmem:[%s1 + $0x5e4] sm:$0xf]
  %v398 = vld [vmem:[%s1 + $0x5e8] sm:$0xf]
  %v399 = vld [vmem:[%s1 + $0x5ec] sm:$0xf]
  %v400 = vld [vmem:[%s1 + $0x5f0] sm:$0xf]
  %v401 = vld [vmem:[%s1 + $0x5f4] sm:$0xf]
  %v402 = vld [vmem:[%s1 + $0x5f8] sm:$0xf]
  %v403 = vld [vmem:[%s1 + $0x5fc] sm:$0xf]
  %v404 = vld [vmem:[%s1 + $0x600] sm:$0xf]
  %v405 = vld [vmem:[%s1 + $0x604] sm:$0xf]
  %v406 = vld [vmem:[%s1 + $0x608] sm:$0xf]
  %v407 = vld [vmem:[%s1 + $0x60c] sm:$0xf]
  %v408 = vld [vmem:[%s1 + $0x610] sm:$0xf]
  %v409 = vld [vmem:[%s1 + $0x614] sm:$0xf]
  %v410 = vld [vmem:[%s1 + $0x618] sm:$0xf]
  %v411 = vld [vmem:[%s1 + $0x61c] sm:$0xf]
  %v412 = vld [vmem:[%s1 + $0x620] sm:$0xf]
  %v413 = vld [vmem:[%s1 + $0x624] sm:$0xf]
  %v414 = vld [vmem:[%s1 + $0x628] sm:$0xf]
  %v415 = vld [vmem:[%s1 + $0x62c] sm:$0xf]
  %v416 = vld [vmem:[%s1 + $0x630] sm:$0xf]
  %v417 = vld [vmem:[%s1 + $0x634] sm:$0xf]
  %v418 = vld [vmem:[%s1 + $0x638] sm:$0xf]
  %v419 = vld [vmem:[%s1 + $0x63c] sm:$0xf]
  %v420 = vld [vmem:[%s1 + $0x640] sm:$0xf]
  %v421 = vld [vmem:[%s1 + $0x644] sm:$0xf]
  %v422 = vld [vmem:[%s1 + $0x648] sm:$0xf]
  %v423 = vld [vmem:[%s1 + $0x64c] sm:$0xf]
  %v424 = vld [vmem:[%s1 + $0x650] sm:$0xf]
  %v425 = vld [vmem:[%s1 + $0x654] sm:$0xf]
  %v426 = vld [vmem:[%s1 + $0x658] sm:$0xf]
  %v427 = vld [vmem:[%s1 + $0x65c] sm:$0xf]
  %v428 = vld [vmem:[%s1 + $0x660] sm:$0xf]
  %v429 = vld [vmem:[%s1 + $0x664] sm:$0xf]
  %v430 = vld [vmem:[%s1 + $0x668] sm:$0xf]
  %v431 = vld [vmem:[%s1 + $0x66c] sm:$0xf]
  %v432 = vld [vmem:[%s1 + $0x670] sm:$0xf]
  %v433 = vld [vmem:[%s1 + $0x674] sm:$0xf]
  %v434 = vld [vmem:[%s1 + $0x678] sm:$0xf]
  %v435 = vld [vmem:[%s1 + $0x67c] sm:$0xf]
  %v436 = vld [vmem:[%s1 + $0x680] sm:$0xf]
  %v437 = vld [vmem:[%s1 + $0x684] sm:$0xf]
  %v438 = vld [vmem:[%s1 + $0x688] sm:$0xf]
  %v439 = vld [vmem:[%s1 + $0x68c] sm:$0xf]
  %v440 = vld [vmem:[%s1 + $0x690] sm:$0xf]
  %v441 = vld [vmem:[%s1 + $0x694] sm:$0xf]
  %v442 = vld [vmem:[%s1 + $0x698] sm:$0xf]
  %v443 = vld [vmem:[%s1 + $0x69c] sm:$0xf]
  %v444 = vld [vmem:[%s1 + $0x6a0] sm:$0xf]
  %v445 = vld [vmem:[%s1 + $0x6a4] sm:$0xf]
  %v446 = vld [vmem:[%s1 + $0x6a8] sm:$0xf]
  %v447 = vld [vmem:[%s1 + $0x6ac] sm:$0xf]
  %v448 = vld [vmem:[%s1 + $0x6b0] sm:$0xf]
  %v449 = vld [vmem:[%s1 + $0x6b4] sm:$0xf]
  %v450 = vld [vmem:[%s1 + $0x6b8] sm:$0xf]
  %v451 = vld [vmem:[%s1 + $0x6bc] sm:$0xf]
  %v452 = vld [vmem:[%s1 + $0x6c0] sm:$0xf]
  %v453 = vld [vmem:[%s1 + $0x6c4] sm:$0xf]
  %v454 = vld [vmem:[%s1 + $0x6c8] sm:$0xf]
  %v455 = vld [vmem:[%s1 + $0x6cc] sm:$0xf]
  %v456 = vld [vmem:[%s1 + $0x6d0] sm:$0xf]
  %v457 = vld [vmem:[%s1 + $0x6d4] sm:$0xf]
  %v458 = vld [vmem:[%s1 + $0x6d8] sm:$0xf]
  %v459 = vld [vmem:[%s1 + $0x6dc] sm:$0xf]
  %v460 = vld [vmem:[%s1 + $0x6e0] sm:$0xf]
  %v461 = vld [vmem:[%s1 + $0x6e4] sm:$0xf]
  %v462 = vld [vmem:[%s1 + $0x6e8] sm:$0xf]
  %v463 = vld [vmem:[%s1 + $0x6ec] sm:$0xf]
  %v464 = vld [vmem:[%s1 + $0x6f0] sm:$0xf]
  %v465 = vld [vmem:[%s1 + $0x6f4] sm:$0xf]
  %v466 = vld [vmem:[%s1 + $0x6f8] sm:$0xf]
  %v467 = vld [vmem:[%s1 + $0x6fc] sm:$0xf]
  %v468 = vld [vmem:[%s1 + $0x700] sm:$0xf]
  %v469 = vld [vmem:[%s1 + $0x704] sm:$0xf]
  %v470 = vld [vmem:[%s1 + $0x708] sm:$0xf]
  %v471 = vld [vmem:[%s1 + $0x70c] sm:$0xf]
  %v472 = vld [vmem:[%s1 + $0x710] sm:$0xf]
  %v473 = vld [vmem:[%s1 + $0x714] sm:$0xf]
  %v474 = vld [vmem:[%s1 + $0x718] sm:$0xf]
  %v475 = vld [vmem:[%s1 + $0x71c] sm:$0xf]
  %v476 = vld [vmem:[%s1 + $0x720] sm:$0xf]
  %v477 = vld [vmem:[%s1 + $0x724] sm:$0xf]
  %v478 = vld [vmem:[%s1 + $0x728] sm:$0xf]
  %v479 = vld [vmem:[%s1 + $0x72c] sm:$0xf]
  %v480 = vld [vmem:[%s1 + $0x730] sm:$0xf]
  %v481 = vld [vmem:[%s1 + $0x734] sm:$0xf]
  %v482 = vld [vmem:[%s1 + $0x738] sm:$0xf]
  %v483 = vld [vmem:[%s1 + $0x73c] sm:$0xf]
  %v484 = vld [vmem:[%s1 + $0x740] sm:$0xf]
  %v485 = vld [vmem:[%s1 + $0x744] sm:$0xf]
  %v486 = vld [vmem:[%s1 + $0x748] sm:$0xf]
  %v487 = vld [vmem:[%s1 + $0x74c] sm:$0xf]
  %v488 = vld [vmem:[%s1 + $0x750] sm:$0xf]
  %v489 = vld [vmem:[%s1 + $0x754] sm:$0xf]
  %v490 = vld [vmem:[%s1 + $0x758] sm:$0xf]
  %v491 = vld [vmem:[%s1 + $0x75c] sm:$0xf]
  %v492 = vld [vmem:[%s1 + $0x760] sm:$0xf]
  %v493 = vld [vmem:[%s1 + $0x764] sm:$0xf]
  %v494 = vld [vmem:[%s1 + $0x768] sm:$0xf]
  %v495 = vld [vmem:[%s1 + $0x76c] sm:$0xf]
  %v496 = vld [vmem:[%s1 + $0x770] sm:$0xf]
  %v497 = vld [vmem:[%s1 + $0x774] sm:$0xf]
  %v498 = vld [vmem:[%s1 + $0x778] sm:$0xf]
  %v499 = vld [vmem:[%s1 + $0x77c] sm:$0xf]
  %v500 = vld [vmem:[%s1 + $0x780] sm:$0xf]
  %v501 = vld [vmem:[%s1 + $0x784] sm:$0xf]
  %v502 = vld [vmem:[%s1 + $0x788] sm:$0xf]
  %v503 = vld [vmem:[%s1 + $0x78c] sm:$0xf]
  %v504 = vld [vmem:[%s1 + $0x790] sm:$0xf]
  %v505 = vld [vmem:[%s1 + $0x794] sm:$0xf]
  %v506 = vld [vmem:[%s1 + $0x798] sm:$0xf]
  %v507 = vld [vmem:[%s1 + $0x79c] sm:$0xf]
  %v508 = vld [vmem:[%s1 + $0x7a0] sm:$0xf]
  %v509 = vld [vmem:[%s1 + $0x7a4] sm:$0xf]
  %v510 = vld [vmem:[%s1 + $0x7a8] sm:$0xf]
  %v511 = vld [vmem:[%s1 + $0x7ac] sm:$0xf]
  %v512 = vld [vmem:[%s1 + $0x7b0] sm:$0xf]
  %v513 = vld [vmem:[%s1 + $0x7b4] sm:$0xf]
  %v514 = vld [vmem:[%s1 + $0x7b8] sm:$0xf]
  %v515 = vld [vmem:[%s1 + $0x7bc] sm:$0xf]
  %v516 = vld [vmem:[%s1 + $0x7c0] sm:$0xf]
  %v517 = vld [vmem:[%s1 + $0x7c4] sm:$0xf]
  %v518 = vld [vmem:[%s1 + $0x7c8] sm:$0xf]
  %v519 = vld [vmem:[%s1 + $0x7cc] sm:$0xf]
  %v520 = vld [vmem:[%s1 + $0x7d0] sm:$0xf]
  %v521 = vld [vmem:[%s1 + $0x7d4] sm:$0xf]
  %v522 = vld [vmem:[%s1 + $0x7d8] sm:$0xf]
  %v523 = vld [vmem:[%s1 + $0x7dc] sm:$0xf]
  %v524 = vld [vmem:[%s1 + $0x7e0] sm:$0xf]
  %v525 = vld [vmem:[%s1 + $0x7e4] sm:$0xf]
  %v526 = vld [vmem:[%s1 + $0x7e8] sm:$0xf]
  %v527 = vld [vmem:[%s1 + $0x7ec] sm:$0xf]
  %v528 = vld [vmem:[%s1 + $0x7f0] sm:$0xf]
  %v529 = vld [vmem:[%s1 + $0x7f4] sm:$0xf]
  %v530 = vld [vmem:[%s1 + $0x7f8] sm:$0xf]
  %v531 = vld [vmem:[%s1 + $0x7fc] sm:$0xf]
  %v532 = vld [vmem:[%s1 + $0x800] sm:$0xf]
  %v533 = vld [vmem:[%s1 + $0x804] sm:$0xf]
  %v534 = vld [vmem:[%s1 + $0x808] sm:$0xf]
  %v535 = vld [vmem:[%s1 + $0x80c] sm:$0xf]
  %v536 = vld [vmem:[%s1 + $0x810] sm:$0xf]
  %v537 = vld [vmem:[%s1 + $0x814] sm:$0xf]
  %v538 = vld [vmem:[%s1 + $0x818] sm:$0xf]
  %v539 = vld [vmem:[%s1 + $0x81c] sm:$0xf]
  %v540 = vld [vmem:[%s1 + $0x820] sm:$0xf]
  %v541 = vld [vmem:[%s1 + $0x824] sm:$0xf]
  %v542 = vld [vmem:[%s1 + $0x828] sm:$0xf]
  %v543 = vld [vmem:[%s1 + $0x82c] sm:$0xf]
  %v544 = vld [vmem:[%s1 + $0x830] sm:$0xf]
  %v545 = vld [vmem:[%s1 + $0x834] sm:$0xf]
  %v551 = vcombine.high %v15, %v15
  %v553 = vunpack.c.l.s4 1966171168
  %v554 = vunpack.c.0.s8 %v553
  %v555 = vlaneseq
  %v556 = vshrl.u32 %v555, 7
  %v557 = vsub.s32 %v554, %v556
  %v558 = vrot.slane %v15, %v557
  %v560 = vunpack.c.l.s4 1966171168
  %v561 = vunpack.c.0.s8 %v560
  %v562 = vlaneseq
  %v563 = vshrl.u32 %v562, 7
  %v564 = vsub.s32 %v561, %v563
  %v565 = vrot.slane %v551, %v564
  %v566 = vcombine.high %v558, %v558
  %v567 = vcombine.high %v565, %v565
  %v569 = vunpack.c.l.s4 1966171168
  %v570 = vunpack.c.0.s8 %v569
  %v571 = vlaneseq
  %v572 = vshrl.u32 %v571, 7
  %v573 = vsub.s32 %v570, %v572
  %v574 = vrot.slane %v558, %v573
  %v576 = vunpack.c.l.s4 1966171168
  %v577 = vunpack.c.0.s8 %v576
  %v578 = vlaneseq
  %v579 = vshrl.u32 %v578, 7
  %v580 = vsub.s32 %v577, %v579
  %v581 = vrot.slane %v565, %v580
  %v583 = vunpack.c.l.s4 1966171168
  %v584 = vunpack.c.0.s8 %v583
  %v585 = vlaneseq
  %v586 = vshrl.u32 %v585, 7
  %v587 = vsub.s32 %v584, %v586
  %v588 = vrot.slane %v566, %v587
  %v590 = vunpack.c.l.s4 1966171168
  %v591 = vunpack.c.0.s8 %v590
  %v592 = vlaneseq
  %v593 = vshrl.u32 %v592, 7
  %v594 = vsub.s32 %v591, %v593
  %v595 = vrot.slane %v567, %v594
  %v596 = vcombine.high %v574, %v574
  %v597 = vcombine.high %v581, %v581
  %v598 = vcombine.high %v588, %v588
  %v599 = vcombine.high %v595, %v595
  %v600 = vcombine.high %v16, %v16
  %v602 = vunpack.c.l.s4 1966171168
  %v603 = vunpack.c.0.s8 %v602
  %v604 = vlaneseq
  %v605 = vshrl.u32 %v604, 7
  %v606 = vsub.s32 %v603, %v605
  %v607 = vrot.slane %v16, %v606
  %v609 = vunpack.c.l.s4 1966171168
  %v610 = vunpack.c.0.s8 %v609
  %v611 = vlaneseq
  %v612 = vshrl.u32 %v611, 7
  %v613 = vsub.s32 %v610, %v612
  %v614 = vrot.slane %v600, %v613
  %v615 = vcombine.high %v607, %v607
  %v616 = vcombine.high %v614, %v614
  %v618 = vunpack.c.l.s4 1966171168
  %v619 = vunpack.c.0.s8 %v618
  %v620 = vlaneseq
  %v621 = vshrl.u32 %v620, 7
  %v622 = vsub.s32 %v619, %v621
  %v623 = vrot.slane %v607, %v622
  %v625 = vunpack.c.l.s4 1966171168
  %v626 = vunpack.c.0.s8 %v625
  %v627 = vlaneseq
  %v628 = vshrl.u32 %v627, 7
  %v629 = vsub.s32 %v626, %v628
  %v630 = vrot.slane %v614, %v629
  %v632 = vunpack.c.l.s4 1966171168
  %v633 = vunpack.c.0.s8 %v632
  %v634 = vlaneseq
  %v635 = vshrl.u32 %v634, 7
  %v636 = vsub.s32 %v633, %v635
  %v637 = vrot.slane %v615, %v636
  %v639 = vunpack.c.l.s4 1966171168
  %v640 = vunpack.c.0.s8 %v639
  %v641 = vlaneseq
  %v642 = vshrl.u32 %v641, 7
  %v643 = vsub.s32 %v640, %v642
  %v644 = vrot.slane %v616, %v643
  %v645 = vcombine.high %v623, %v623
  %v646 = vcombine.high %v630, %v630
  %v647 = vcombine.high %v637, %v637
  %v648 = vcombine.high %v644, %v644
  %v649 = vcombine.high %v17, %v17
  %v651 = vunpack.c.l.s4 1966171168
  %v652 = vunpack.c.0.s8 %v651
  %v653 = vlaneseq
  %v654 = vshrl.u32 %v653, 7
  %v655 = vsub.s32 %v652, %v654
  %v656 = vrot.slane %v17, %v655
  %v658 = vunpack.c.l.s4 1966171168
  %v659 = vunpack.c.0.s8 %v658
  %v660 = vlaneseq
  %v661 = vshrl.u32 %v660, 7
  %v662 = vsub.s32 %v659, %v661
  %v663 = vrot.slane %v649, %v662
  %v664 = vcombine.high %v656, %v656
  %v665 = vcombine.high %v663, %v663
  %v667 = vunpack.c.l.s4 1966171168
  %v668 = vunpack.c.0.s8 %v667
  %v669 = vlaneseq
  %v670 = vshrl.u32 %v669, 7
  %v671 = vsub.s32 %v668, %v670
  %v672 = vrot.slane %v656, %v671
  %v674 = vunpack.c.l.s4 1966171168
  %v675 = vunpack.c.0.s8 %v674
  %v676 = vlaneseq
  %v677 = vshrl.u32 %v676, 7
  %v678 = vsub.s32 %v675, %v677
  %v679 = vrot.slane %v663, %v678
  %v681 = vunpack.c.l.s4 1966171168
  %v682 = vunpack.c.0.s8 %v681
  %v683 = vlaneseq
  %v684 = vshrl.u32 %v683, 7
  %v685 = vsub.s32 %v682, %v684
  %v686 = vrot.slane %v664, %v685
  %v688 = vunpack.c.l.s4 1966171168
  %v689 = vunpack.c.0.s8 %v688
  %v690 = vlaneseq
  %v691 = vshrl.u32 %v690, 7
  %v692 = vsub.s32 %v689, %v691
  %v693 = vrot.slane %v665, %v692
  %v694 = vcombine.high %v672, %v672
  %v695 = vcombine.high %v679, %v679
  %v696 = vcombine.high %v686, %v686
  %v697 = vcombine.high %v693, %v693
  %v698 = vcombine.high %v18, %v18
  %v700 = vunpack.c.l.s4 1966171168
  %v701 = vunpack.c.0.s8 %v700
  %v702 = vlaneseq
  %v703 = vshrl.u32 %v702, 7
  %v704 = vsub.s32 %v701, %v703
  %v705 = vrot.slane %v18, %v704
  %v707 = vunpack.c.l.s4 1966171168
  %v708 = vunpack.c.0.s8 %v707
  %v709 = vlaneseq
  %v710 = vshrl.u32 %v709, 7
  %v711 = vsub.s32 %v708, %v710
  %v712 = vrot.slane %v698, %v711
  %v713 = vcombine.high %v705, %v705
  %v714 = vcombine.high %v712, %v712
  %v716 = vunpack.c.l.s4 1966171168
  %v717 = vunpack.c.0.s8 %v716
  %v718 = vlaneseq
  %v719 = vshrl.u32 %v718, 7
  %v720 = vsub.s32 %v717, %v719
  %v721 = vrot.slane %v705, %v720
  %v723 = vunpack.c.l.s4 1966171168
  %v724 = vunpack.c.0.s8 %v723
  %v725 = vlaneseq
  %v726 = vshrl.u32 %v725, 7
  %v727 = vsub.s32 %v724, %v726
  %v728 = vrot.slane %v712, %v727
  %v730 = vunpack.c.l.s4 1966171168
  %v731 = vunpack.c.0.s8 %v730
  %v732 = vlaneseq
  %v733 = vshrl.u32 %v732, 7
  %v734 = vsub.s32 %v731, %v733
  %v735 = vrot.slane %v713, %v734
  %v737 = vunpack.c.l.s4 1966171168
  %v738 = vunpack.c.0.s8 %v737
  %v739 = vlaneseq
  %v740 = vshrl.u32 %v739, 7
  %v741 = vsub.s32 %v738, %v740
  %v742 = vrot.slane %v714, %v741
  %v743 = vcombine.high %v721, %v721
  %v744 = vcombine.high %v728, %v728
  %v745 = vcombine.high %v735, %v735
  %v746 = vcombine.high %v742, %v742
  %v748 = vunpack.c.l.s4 1966171168
  %v749 = vunpack.c.0.s8 %v748
  %v750 = vlaneseq
  %v751 = vshrl.u32 %v750, 7
  %v752 = vsub.s32 %v749, %v751
  %v753 = vrot.slane %v19, %v752
  %v755 = vunpack.c.l.s4 1966171168
  %v756 = vunpack.c.0.s8 %v755
  %v757 = vlaneseq
  %v758 = vshrl.u32 %v757, 7
  %v759 = vsub.s32 %v756, %v758
  %v760 = vrot.slane %v753, %v759
  %v1319 = vunpack.c.l.b16 %v20
  %v1320 = vunpack.c.l.b16 %v21
  %v1321 = vunpack.c.l.b16 %v22
  %v1322 = vunpack.c.l.b16 %v23
  %v1323 = vunpack.c.l.b16 %v24
  %v1324 = vunpack.c.l.b16 %v25
  %v1325 = vunpack.c.l.b16 %v26
  %v1326 = vunpack.c.l.b16 %v27
  %v1327 = vunpack.c.l.b16 %v28
  %v1328 = vunpack.c.l.b16 %v29
  %v1329 = vunpack.c.l.b16 %v30
  %v1330 = vunpack.c.l.b16 %v31
  %v1331 = vunpack.c.l.b16 %v32
  %v1332 = vunpack.c.l.b16 %v33
  %v1333 = vunpack.c.l.b16 %v34
  %v1334 = vunpack.c.l.b16 %v35
  %v1335 = vunpack.c.l.b16 %v36
  %v1336 = vunpack.c.l.b16 %v37
  %v1337 = vunpack.c.l.b16 %v38
  %v1338 = vunpack.c.l.b16 %v39
  %v1339 = vunpack.c.l.b16 %v40
  %v1340 = vunpack.c.l.b16 %v41
  %v1341 = vunpack.c.l.b16 %v42
  %v1342 = vunpack.c.l.b16 %v43
  %v1343 = vunpack.c.l.b16 %v44
  %v1344 = vunpack.c.l.b16 %v45
  %v1345 = vunpack.c.l.b16 %v46
  %v1346 = vunpack.c.l.b16 %v47
  %v1347 = vunpack.c.l.b16 %v48
  %v1348 = vunpack.c.l.b16 %v49
  %v1349 = vunpack.c.l.b16 %v50
  %v1350 = vunpack.c.l.b16 %v51
  %v1351 = vunpack.c.l.b16 %v52
  %v1352 = vunpack.c.l.b16 %v53
  %v1353 = vunpack.c.l.b16 %v54
  %v1354 = vunpack.c.l.b16 %v55
  %v1355 = vunpack.c.l.b16 %v56
  %v1356 = vunpack.c.l.b16 %v57
  %v1357 = vunpack.c.l.b16 %v58
  %v1358 = vunpack.c.l.b16 %v59
  %v1359 = vunpack.c.l.b16 %v60
  %v1360 = vunpack.c.l.b16 %v61
  %v1361 = vunpack.c.l.b16 %v62
  %v1362 = vunpack.c.l.b16 %v63
  %v1363 = vunpack.c.l.b16 %v64
  %v1364 = vunpack.c.l.b16 %v65
  %v1365 = vunpack.c.l.b16 %v66
  %v1366 = vunpack.c.l.b16 %v67
  %v1367 = vunpack.c.l.b16 %v68
  %v1368 = vunpack.c.l.b16 %v69
  %v1369 = vunpack.c.l.b16 %v70
  %v1370 = vunpack.c.l.b16 %v71
  %v1371 = vunpack.c.l.b16 %v72
  %v1372 = vunpack.c.l.b16 %v73
  %v1373 = vunpack.c.l.b16 %v74
  %v1374 = vunpack.c.l.b16 %v75
  %v1375 = vunpack.c.l.b16 %v76
  %v1376 = vunpack.c.l.b16 %v77
  %v1377 = vunpack.c.l.b16 %v78
  %v1378 = vunpack.c.l.b16 %v79
  %v1379 = vunpack.c.l.b16 %v80
  %v1380 = vunpack.c.l.b16 %v81
  %v1381 = vunpack.c.l.b16 %v82
  %v1382 = vunpack.c.l.b16 %v83
  %v1383 = vunpack.c.l.b16 %v84
  %v1384 = vunpack.c.l.b16 %v85
  %v1385 = vunpack.c.l.b16 %v86
  %v1386 = vunpack.c.l.b16 %v87
  %v1387 = vunpack.c.l.b16 %v88
  %v1388 = vunpack.c.l.b16 %v89
  %v1389 = vunpack.c.l.b16 %v90
  %v1390 = vunpack.c.l.b16 %v91
  %v1391 = vunpack.c.l.b16 %v92
  %v1392 = vunpack.c.l.b16 %v93
  %v1393 = vunpack.c.l.b16 %v94
  %v1394 = vunpack.c.l.b16 %v95
  %v1395 = vunpack.c.l.b16 %v96
  %v1396 = vunpack.c.l.b16 %v97
  %v1397 = vunpack.c.l.b16 %v98
  %v1398 = vunpack.c.l.b16 %v99
  %v1399 = vunpack.c.l.b16 %v100
  %v1400 = vunpack.c.l.b16 %v101
  %v1401 = vunpack.c.l.b16 %v102
  %v1402 = vunpack.c.l.b16 %v103
  %v1403 = vunpack.c.l.b16 %v104
  %v1404 = vunpack.c.l.b16 %v105
  %v1405 = vunpack.c.l.b16 %v106
  %v1406 = vunpack.c.l.b16 %v107
  %v1407 = vunpack.c.l.b16 %v108
  %v1408 = vunpack.c.l.b16 %v109
  %v1409 = vunpack.c.l.b16 %v110
  %v1410 = vunpack.c.l.b16 %v111
  %v1411 = vunpack.c.l.b16 %v112
  %v1412 = vunpack.c.l.b16 %v113
  %v1413 = vunpack.c.l.b16 %v114
  %v1414 = vunpack.c.l.b16 %v115
  %v1415 = vunpack.c.l.b16 %v116
  %v1416 = vunpack.c.l.b16 %v117
  %v1417 = vunpack.c.l.b16 %v118
  %v1418 = vunpack.c.l.b16 %v119
  %v1419 = vunpack.c.l.b16 %v120
  %v1420 = vunpack.c.l.b16 %v121
  %v1421 = vunpack.c.l.b16 %v122
  %v1422 = vunpack.c.l.b16 %v123
  %v1423 = vunpack.c.l.b16 %v124
  %v1424 = vunpack.c.l.b16 %v125
  %v1425 = vunpack.c.l.b16 %v126
  %v1426 = vunpack.c.l.b16 %v127
  %v1427 = vunpack.c.l.b16 %v128
  %v1428 = vunpack.c.l.b16 %v129
  %v1429 = vunpack.c.l.b16 %v130
  %v1430 = vunpack.c.l.b16 %v131
  %v1431 = vunpack.c.l.b16 %v132
  %v1432 = vunpack.c.l.b16 %v133
  %v1433 = vunpack.c.l.b16 %v134
  %v1434 = vunpack.c.l.b16 %v135
  %v1435 = vunpack.c.l.b16 %v136
  %v1436 = vunpack.c.l.b16 %v137
  %v1437 = vunpack.c.l.b16 %v138
  %v1438 = vunpack.c.l.b16 %v139
  %v1439 = vunpack.c.l.b16 %v140
  %v1440 = vunpack.c.l.b16 %v141
  %v1441 = vunpack.c.l.b16 %v142
  %v1442 = vunpack.c.l.b16 %v143
  %v1443 = vunpack.c.l.b16 %v144
  %v1444 = vunpack.c.l.b16 %v145
  %v1445 = vunpack.c.l.b16 %v146
  %v1446 = vunpack.c.l.b16 %v147
  %v1447 = vunpack.c.l.b16 %v148
  %v1448 = vunpack.c.l.b16 %v149
  %v1449 = vunpack.c.l.b16 %v150
  %v1450 = vunpack.c.l.b16 %v151
  %v1451 = vunpack.c.l.b16 %v152
  %v1452 = vunpack.c.l.b16 %v153
  %v1453 = vunpack.c.l.b16 %v154
  %v1454 = vunpack.c.l.b16 %v155
  %v1455 = vunpack.c.l.b16 %v156
  %v1456 = vunpack.c.l.b16 %v157
  %v1457 = vunpack.c.l.b16 %v158
  %v1458 = vunpack.c.l.b16 %v159
  %v1459 = vunpack.c.l.b16 %v160
  %v1460 = vunpack.c.l.b16 %v161
  %v1461 = vunpack.c.l.b16 %v162
  %v1462 = vunpack.c.l.b16 %v163
  %v1463 = vunpack.c.l.b16 %v164
  %v1464 = vunpack.c.l.b16 %v165
  %v1465 = vunpack.c.l.b16 %v166
  %v1466 = vunpack.c.l.b16 %v167
  %v1467 = vunpack.c.l.b16 %v168
  %v1468 = vunpack.c.l.b16 %v169
  %v1469 = vunpack.c.l.b16 %v170
  %v1470 = vunpack.c.l.b16 %v171
  %v1471 = vunpack.c.l.b16 %v172
  %v1472 = vunpack.c.l.b16 %v173
  %v1473 = vunpack.c.l.b16 %v174
  %v1474 = vunpack.c.l.b16 %v175
  %v1475 = vunpack.c.l.b16 %v176
  %v1476 = vunpack.c.l.b16 %v177
  %v1477 = vunpack.c.l.b16 %v178
  %v1478 = vunpack.c.l.b16 %v179
  %v1479 = vunpack.c.l.b16 %v180
  %v1480 = vunpack.c.l.b16 %v181
  %v1481 = vunpack.c.l.b16 %v182
  %v1482 = vunpack.c.l.b16 %v183
  %v1483 = vunpack.c.l.b16 %v184
  %v1484 = vunpack.c.l.b16 %v185
  %v1485 = vunpack.c.l.b16 %v186
  %v1486 = vunpack.c.l.b16 %v187
  %v1487 = vunpack.c.l.b16 %v188
  %v1488 = vunpack.c.l.b16 %v189
  %v1489 = vunpack.c.l.b16 %v190
  %v1490 = vunpack.c.l.b16 %v191
  %v1491 = vunpack.c.l.b16 %v192
  %v1492 = vunpack.c.l.b16 %v193
  %v1493 = vunpack.c.l.b16 %v194
  %v1494 = vunpack.c.l.b16 %v195
  %v1495 = vunpack.c.l.b16 %v196
  %v1496 = vunpack.c.l.b16 %v197
  %v1497 = vunpack.c.l.b16 %v198
  %v1498 = vunpack.c.l.b16 %v199
  %v1499 = vunpack.c.l.b16 %v200
  %v1500 = vunpack.c.l.b16 %v201
  %v1501 = vunpack.c.l.b16 %v202
  %v1502 = vunpack.c.l.b16 %v203
  %v1503 = vunpack.c.l.b16 %v204
  %v1504 = vunpack.c.l.b16 %v205
  %v1505 = vunpack.c.l.b16 %v206
  %v1506 = vunpack.c.l.b16 %v207
  %v1507 = vunpack.c.l.b16 %v208
  %v1508 = vunpack.c.l.b16 %v209
  %v1509 = vunpack.c.l.b16 %v210
  %v1510 = vunpack.c.l.b16 %v211
  %v1511 = vunpack.c.l.b16 %v212
  %v1512 = vunpack.c.l.b16 %v213
  %v1513 = vunpack.c.l.b16 %v214
  %v1514 = vunpack.c.l.b16 %v215
  %v1515 = vunpack.c.l.b16 %v216
  %v1516 = vunpack.c.l.b16 %v217
  %v1517 = vunpack.c.l.b16 %v218
  %v1518 = vunpack.c.l.b16 %v219
  %v1519 = vunpack.c.l.b16 %v220
  %v1520 = vunpack.c.l.b16 %v221
  %v1521 = vunpack.c.l.b16 %v222
  %v1522 = vunpack.c.l.b16 %v223
  %v1523 = vunpack.c.l.b16 %v224
  %v1524 = vunpack.c.l.b16 %v225
  %v1525 = vunpack.c.l.b16 %v226
  %v1526 = vunpack.c.l.b16 %v227
  %v1527 = vunpack.c.l.b16 %v228
  %v1528 = vunpack.c.l.b16 %v229
  %v1529 = vunpack.c.l.b16 %v230
  %v1530 = vunpack.c.l.b16 %v231
  %v1531 = vunpack.c.l.b16 %v232
  %v1532 = vunpack.c.l.b16 %v233
  %v1533 = vunpack.c.l.b16 %v234
  %v1534 = vunpack.c.l.b16 %v235
  %v1535 = vunpack.c.l.b16 %v236
  %v1536 = vunpack.c.l.b16 %v237
  %v1537 = vunpack.c.l.b16 %v238
  %v1538 = vunpack.c.l.b16 %v239
  %v1539 = vunpack.c.l.b16 %v240
  %v1540 = vunpack.c.l.b16 %v241
  %v1541 = vunpack.c.l.b16 %v242
  %v1542 = vunpack.c.l.b16 %v243
  %v1543 = vunpack.c.l.b16 %v244
  %v1544 = vunpack.c.l.b16 %v245
  %v1545 = vunpack.c.l.b16 %v246
  %v1546 = vunpack.c.l.b16 %v247
  %v1547 = vunpack.c.l.b16 %v248
  %v1548 = vunpack.c.l.b16 %v249
  %v1549 = vunpack.c.l.b16 %v250
  %v1550 = vunpack.c.l.b16 %v251
  %v1551 = vunpack.c.l.b16 %v252
  %v1552 = vunpack.c.l.b16 %v253
  %v1553 = vunpack.c.l.b16 %v254
  %v1554 = vunpack.c.l.b16 %v255
  %v1555 = vunpack.c.l.b16 %v256
  %v1556 = vunpack.c.l.b16 %v257
  %v1557 = vunpack.c.l.b16 %v258
  %v1558 = vunpack.c.l.b16 %v259
  %v1559 = vunpack.c.l.b16 %v260
  %v1560 = vunpack.c.l.b16 %v261
  %v1561 = vunpack.c.l.b16 %v262
  %v1562 = vunpack.c.l.b16 %v263
  %v1563 = vunpack.c.l.b16 %v264
  %v1564 = vunpack.c.l.b16 %v265
  %v1565 = vunpack.c.l.b16 %v266
  %v1566 = vunpack.c.l.b16 %v267
  %v1567 = vunpack.c.l.b16 %v268
  %v1568 = vunpack.c.l.b16 %v269
  %v1569 = vunpack.c.l.b16 %v270
  %v1570 = vunpack.c.l.b16 %v271
  %v1571 = vunpack.c.l.b16 %v272
  %v1572 = vunpack.c.l.b16 %v273
  %v1573 = vunpack.c.l.b16 %v274
  %v1574 = vunpack.c.l.b16 %v275
  %v1575 = vunpack.c.l.b16 %v276
  %v1576 = vunpack.c.l.b16 %v277
  %v1577 = vunpack.c.l.b16 %v278
  %v1578 = vunpack.c.l.b16 %v279
  %v1579 = vunpack.c.l.b16 %v280
  %v1580 = vunpack.c.l.b16 %v281
  %v1581 = vunpack.c.l.b16 %v282
  %v1582 = vunpack.c.l.b16 %v283
  %v1583 = vunpack.c.l.b16 %v284
  %v1584 = vunpack.c.l.b16 %v285
  %v1585 = vunpack.c.l.b16 %v286
  %v1586 = vunpack.c.l.b16 %v287
  %v1587 = vunpack.c.l.b16 %v288
  %v1588 = vunpack.c.l.b16 %v289
  %v1589 = vunpack.c.l.b16 %v290
  %v1590 = vunpack.c.l.b16 %v291
  %v1591 = vunpack.c.l.b16 %v292
  %v1592 = vunpack.c.l.b16 %v293
  %v1593 = vunpack.c.l.b16 %v294
  %v1594 = vunpack.c.l.b16 %v295
  %v1595 = vunpack.c.l.b16 %v296
  %v1596 = vunpack.c.l.b16 %v297
  %v1597 = vunpack.c.l.b16 %v298
  %v1598 = vunpack.c.l.b16 %v299
  %v1599 = vunpack.c.l.b16 %v300
  %v1600 = vunpack.c.l.b16 %v301
  %v1601 = vunpack.c.l.b16 %v302
  %v1602 = vunpack.c.l.b16 %v303
  %v1603 = vunpack.c.l.b16 %v304
  %v1604 = vunpack.c.l.b16 %v305
  %v1605 = vunpack.c.l.b16 %v306
  %v1606 = vunpack.c.l.b16 %v307
  %v1607 = vunpack.c.l.b16 %v308
  %v1608 = vunpack.c.l.b16 %v309
  %v1609 = vunpack.c.l.b16 %v310
  %v1610 = vunpack.c.l.b16 %v311
  %v1611 = vunpack.c.l.b16 %v312
  %v1612 = vunpack.c.l.b16 %v313
  %v1613 = vunpack.c.l.b16 %v314
  %v1614 = vunpack.c.l.b16 %v315
  %v1615 = vunpack.c.l.b16 %v316
  %v1616 = vunpack.c.l.b16 %v317
  %v1617 = vunpack.c.l.b16 %v318
  %v1618 = vunpack.c.l.b16 %v319
  %v1619 = vunpack.c.l.b16 %v320
  %v1620 = vunpack.c.l.b16 %v321
  %v1621 = vunpack.c.l.b16 %v322
  %v1622 = vunpack.c.l.b16 %v323
  %v1623 = vunpack.c.l.b16 %v324
  %v1624 = vunpack.c.l.b16 %v325
  %v1625 = vunpack.c.l.b16 %v326
  %v1626 = vunpack.c.l.b16 %v327
  %v1627 = vunpack.c.l.b16 %v328
  %v1628 = vunpack.c.l.b16 %v329
  %v1629 = vunpack.c.l.b16 %v330
  %v1630 = vunpack.c.l.b16 %v331
  %v1631 = vunpack.c.l.b16 %v332
  %v1632 = vunpack.c.l.b16 %v333
  %v1633 = vunpack.c.l.b16 %v334
  %v1634 = vunpack.c.l.b16 %v335
  %v1635 = vunpack.c.l.b16 %v336
  %v1636 = vunpack.c.l.b16 %v337
  %v1637 = vunpack.c.l.b16 %v338
  %v1638 = vunpack.c.l.b16 %v339
  %v1639 = vunpack.c.l.b16 %v340
  %v1640 = vunpack.c.l.b16 %v341
  %v1641 = vunpack.c.l.b16 %v342
  %v1642 = vunpack.c.l.b16 %v343
  %v1643 = vunpack.c.l.b16 %v344
  %v1644 = vunpack.c.l.b16 %v345
  %v1645 = vunpack.c.l.b16 %v346
  %v1646 = vunpack.c.l.b16 %v347
  %v1647 = vunpack.c.l.b16 %v348
  %v1648 = vunpack.c.l.b16 %v349
  %v1649 = vunpack.c.l.b16 %v350
  %v1650 = vunpack.c.l.b16 %v351
  %v1651 = vunpack.c.l.b16 %v352
  %v1652 = vunpack.c.l.b16 %v353
  %v1653 = vunpack.c.l.b16 %v354
  %v1654 = vunpack.c.l.b16 %v355
  %v1655 = vunpack.c.l.b16 %v356
  %v1656 = vunpack.c.l.b16 %v357
  %v1657 = vunpack.c.l.b16 %v358
  %v1658 = vunpack.c.l.b16 %v359
  %v1659 = vunpack.c.l.b16 %v360
  %v1660 = vunpack.c.l.b16 %v361
  %v1661 = vunpack.c.l.b16 %v362
  %v1662 = vunpack.c.l.b16 %v363
  %v1663 = vunpack.c.l.b16 %v364
  %v1664 = vunpack.c.l.b16 %v365
  %v1665 = vunpack.c.l.b16 %v366
  %v1666 = vunpack.c.l.b16 %v367
  %v1667 = vunpack.c.l.b16 %v368
  %v1668 = vunpack.c.l.b16 %v369
  %v1669 = vunpack.c.l.b16 %v370
  %v1670 = vunpack.c.l.b16 %v371
  %v1671 = vunpack.c.l.b16 %v372
  %v1672 = vunpack.c.l.b16 %v373
  %v1673 = vunpack.c.l.b16 %v374
  %v1674 = vunpack.c.l.b16 %v375
  %v1675 = vunpack.c.l.b16 %v376
  %v1676 = vunpack.c.l.b16 %v377
  %v1677 = vunpack.c.l.b16 %v378
  %v1678 = vunpack.c.l.b16 %v379
  %v1679 = vunpack.c.l.b16 %v380
  %v1680 = vunpack.c.l.b16 %v381
  %v1681 = vunpack.c.l.b16 %v382
  %v1682 = vunpack.c.l.b16 %v383
  %v1683 = vunpack.c.l.b16 %v384
  %v1684 = vunpack.c.l.b16 %v385
  %v1685 = vunpack.c.l.b16 %v386
  %v1686 = vunpack.c.l.b16 %v387
  %v1687 = vunpack.c.l.b16 %v388
  %v1688 = vunpack.c.l.b16 %v389
  %v1689 = vunpack.c.l.b16 %v390
  %v1690 = vunpack.c.l.b16 %v391
  %v1691 = vunpack.c.l.b16 %v392
  %v1692 = vunpack.c.l.b16 %v393
  %v1693 = vunpack.c.l.b16 %v394
  %v1694 = vunpack.c.l.b16 %v395
  %v1695 = vunpack.c.l.b16 %v396
  %v1696 = vunpack.c.l.b16 %v397
  %v1697 = vunpack.c.l.b16 %v398
  %v1698 = vunpack.c.l.b16 %v399
  %v1699 = vunpack.c.l.b16 %v400
  %v1700 = vunpack.c.l.b16 %v401
  %v1701 = vunpack.c.l.b16 %v402
  %v1702 = vunpack.c.l.b16 %v403
  %v1703 = vunpack.c.l.b16 %v404
  %v1704 = vunpack.c.l.b16 %v405
  %v1705 = vunpack.c.l.b16 %v406
  %v1706 = vunpack.c.l.b16 %v407
  %v1707 = vunpack.c.l.b16 %v408
  %v1708 = vunpack.c.l.b16 %v409
  %v1709 = vunpack.c.l.b16 %v410
  %v1710 = vunpack.c.l.b16 %v411
  %v1711 = vunpack.c.l.b16 %v412
  %v1712 = vunpack.c.l.b16 %v413
  %v1713 = vunpack.c.l.b16 %v414
  %v1714 = vunpack.c.l.b16 %v415
  %v1715 = vunpack.c.l.b16 %v416
  %v1716 = vunpack.c.l.b16 %v417
  %v1717 = vunpack.c.l.b16 %v418
  %v1718 = vunpack.c.l.b16 %v419
  %v1719 = vunpack.c.l.b16 %v420
  %v1720 = vunpack.c.l.b16 %v421
  %v1721 = vunpack.c.l.b16 %v422
  %v1722 = vunpack.c.l.b16 %v423
  %v1723 = vunpack.c.l.b16 %v424
  %v1724 = vunpack.c.l.b16 %v425
  %v1725 = vunpack.c.l.b16 %v426
  %v1726 = vunpack.c.l.b16 %v427
  %v1727 = vunpack.c.l.b16 %v428
  %v1728 = vunpack.c.l.b16 %v429
  %v1729 = vunpack.c.l.b16 %v430
  %v1730 = vunpack.c.l.b16 %v431
  %v1731 = vunpack.c.l.b16 %v432
  %v1732 = vunpack.c.l.b16 %v433
  %v1733 = vunpack.c.l.b16 %v434
  %v1734 = vunpack.c.l.b16 %v435
  %v1735 = vunpack.c.l.b16 %v436
  %v1736 = vunpack.c.l.b16 %v437
  %v1737 = vunpack.c.l.b16 %v438
  %v1738 = vunpack.c.l.b16 %v439
  %v1739 = vunpack.c.l.b16 %v440
  %v1740 = vunpack.c.l.b16 %v441
  %v1741 = vunpack.c.l.b16 %v442
  %v1742 = vunpack.c.l.b16 %v443
  %v1743 = vunpack.c.l.b16 %v444
  %v1744 = vunpack.c.l.b16 %v445
  %v1745 = vunpack.c.l.b16 %v446
  %v1746 = vunpack.c.l.b16 %v447
  %v1747 = vunpack.c.l.b16 %v448
  %v1748 = vunpack.c.l.b16 %v449
  %v1749 = vunpack.c.l.b16 %v450
  %v1750 = vunpack.c.l.b16 %v451
  %v1751 = vunpack.c.l.b16 %v452
  %v1752 = vunpack.c.l.b16 %v453
  %v1753 = vunpack.c.l.b16 %v454
  %v1754 = vunpack.c.l.b16 %v455
  %v1755 = vunpack.c.l.b16 %v456
  %v1756 = vunpack.c.l.b16 %v457
  %v1757 = vunpack.c.l.b16 %v458
  %v1758 = vunpack.c.l.b16 %v459
  %v1759 = vunpack.c.l.b16 %v460
  %v1760 = vunpack.c.l.b16 %v461
  %v1761 = vunpack.c.l.b16 %v462
  %v1762 = vunpack.c.l.b16 %v463
  %v1763 = vunpack.c.l.b16 %v464
  %v1764 = vunpack.c.l.b16 %v465
  %v1765 = vunpack.c.l.b16 %v466
  %v1766 = vunpack.c.l.b16 %v467
  %v1767 = vunpack.c.l.b16 %v468
  %v1768 = vunpack.c.l.b16 %v469
  %v1769 = vunpack.c.l.b16 %v470
  %v1770 = vunpack.c.l.b16 %v471
  %v1771 = vunpack.c.l.b16 %v472
  %v1772 = vunpack.c.l.b16 %v473
  %v1773 = vunpack.c.l.b16 %v474
  %v1774 = vunpack.c.l.b16 %v475
  %v1775 = vunpack.c.l.b16 %v476
  %v1776 = vunpack.c.l.b16 %v477
  %v1777 = vunpack.c.l.b16 %v478
  %v1778 = vunpack.c.l.b16 %v479
  %v1779 = vunpack.c.l.b16 %v480
  %v1780 = vunpack.c.l.b16 %v481
  %v1781 = vunpack.c.l.b16 %v482
  %v1782 = vunpack.c.l.b16 %v483
  %v1783 = vunpack.c.l.b16 %v484
  %v1784 = vunpack.c.l.b16 %v485
  %v1785 = vunpack.c.l.b16 %v486
  %v1786 = vunpack.c.l.b16 %v487
  %v1787 = vunpack.c.l.b16 %v488
  %v1788 = vunpack.c.l.b16 %v489
  %v1789 = vunpack.c.l.b16 %v490
  %v1790 = vunpack.c.l.b16 %v491
  %v1791 = vunpack.c.l.b16 %v492
  %v1792 = vunpack.c.l.b16 %v493
  %v1793 = vunpack.c.l.b16 %v494
  %v1794 = vunpack.c.l.b16 %v495
  %v1795 = vunpack.c.l.b16 %v496
  %v1796 = vunpack.c.l.b16 %v497
  %v1797 = vunpack.c.l.b16 %v498
  %v1798 = vunpack.c.l.b16 %v499
  %v1799 = vunpack.c.l.b16 %v500
  %v1800 = vunpack.c.l.b16 %v501
  %v1801 = vunpack.c.l.b16 %v502
  %v1802 = vunpack.c.l.b16 %v503
  %v1803 = vunpack.c.l.b16 %v504
  %v1804 = vunpack.c.l.b16 %v505
  %v1805 = vunpack.c.l.b16 %v506
  %v1806 = vunpack.c.l.b16 %v507
  %v1807 = vunpack.c.l.b16 %v508
  %v1808 = vunpack.c.l.b16 %v509
  %v1809 = vunpack.c.l.b16 %v510
  %v1810 = vunpack.c.l.b16 %v511
  %v1811 = vunpack.c.l.b16 %v512
  %v1812 = vunpack.c.l.b16 %v513
  %v1813 = vunpack.c.l.b16 %v514
  %v1814 = vunpack.c.l.b16 %v515
  %v1815 = vunpack.c.l.b16 %v516
  %v1816 = vunpack.c.l.b16 %v517
  %v1817 = vunpack.c.l.b16 %v518
  %v1818 = vunpack.c.l.b16 %v519
  %v1819 = vunpack.c.l.b16 %v520
  %v1820 = vunpack.c.l.b16 %v521
  %v1821 = vunpack.c.l.b16 %v522
  %v1822 = vunpack.c.l.b16 %v523
  %v1823 = vunpack.c.l.b16 %v524
  %v1824 = vunpack.c.l.b16 %v525
  %v1825 = vunpack.c.l.b16 %v526
  %v1826 = vunpack.c.l.b16 %v527
  %v1827 = vunpack.c.l.b16 %v528
  %v1828 = vunpack.c.l.b16 %v529
  %v1829 = vunpack.c.l.b16 %v530
  %v1830 = vunpack.c.l.b16 %v531
  %v1831 = vunpack.c.l.b16 %v532
  %v1832 = vunpack.c.l.b16 %v533
  %v1833 = vunpack.c.l.b16 %v534
  %v1834 = vunpack.c.l.b16 %v535
  %v1835 = vunpack.c.l.b16 %v536
  %v1836 = vunpack.c.l.b16 %v537
  %v1837 = vunpack.c.l.b16 %v538
  %v1838 = vunpack.c.l.b16 %v539
  %v1839 = vunpack.c.l.b16 %v540
  %v1840 = vunpack.c.l.b16 %v541
  %v1841 = vunpack.c.l.b16 %v542
  %v1842 = vunpack.c.l.b16 %v543
  %v1843 = vunpack.c.l.b16 %v544
  %v1844 = vunpack.c.l.b16 %v545
  %v1845 = vpack.c.b16 %v1320, %v1319
  %v1846 = vpack.c.b16 %v1322, %v1321
  %v1847 = vpack.c.b16 %v1324, %v1323
  %v1848 = vpack.c.b16 %v1326, %v1325
  %v1849 = vpack.c.b16 %v1328, %v1327
  %v1850 = vpack.c.b16 %v1330, %v1329
  %v1851 = vpack.c.b16 %v1332, %v1331
  %v1852 = vpack.c.b16 %v1334, %v1333
  %v1853 = vpack.c.b16 %v1336, %v1335
  %v1854 = vpack.c.b16 %v1338, %v1337
  %v1855 = vpack.c.b16 %v1340, %v1339
  %v1856 = vpack.c.b16 %v1342, %v1341
  %v1857 = vpack.c.b16 %v1344, %v1343
  %v1858 = vpack.c.b16 %v1346, %v1345
  %v1859 = vpack.c.b16 %v1348, %v1347
  %v1860 = vpack.c.b16 %v1350, %v1349
  %v1861 = vpack.c.b16 %v1352, %v1351
  %v1862 = vpack.c.b16 %v1354, %v1353
  %v1863 = vpack.c.b16 %v1356, %v1355
  %v1864 = vpack.c.b16 %v1358, %v1357
  %v1865 = vpack.c.b16 %v1360, %v1359
  %v1866 = vpack.c.b16 %v1362, %v1361
  %v1867 = vpack.c.b16 %v1364, %v1363
  %v1868 = vpack.c.b16 %v1366, %v1365
  %v1869 = vpack.c.b16 %v1368, %v1367
  %v1870 = vpack.c.b16 %v1370, %v1369
  %v1871 = vpack.c.b16 %v1372, %v1371
  %v1872 = vpack.c.b16 %v1374, %v1373
  %v1873 = vpack.c.b16 %v1376, %v1375
  %v1874 = vpack.c.b16 %v1378, %v1377
  %v1875 = vpack.c.b16 %v1380, %v1379
  %v1876 = vpack.c.b16 %v1382, %v1381
  %v1877 = vpack.c.b16 %v1384, %v1383
  %v1878 = vpack.c.b16 %v1386, %v1385
  %v1879 = vpack.c.b16 %v1388, %v1387
  %v1880 = vpack.c.b16 %v1390, %v1389
  %v1881 = vpack.c.b16 %v1392, %v1391
  %v1882 = vpack.c.b16 %v1394, %v1393
  %v1883 = vpack.c.b16 %v1396, %v1395
  %v1884 = vpack.c.b16 %v1398, %v1397
  %v1885 = vpack.c.b16 %v1400, %v1399
  %v1886 = vpack.c.b16 %v1402, %v1401
  %v1887 = vpack.c.b16 %v1404, %v1403
  %v1888 = vpack.c.b16 %v1406, %v1405
  %v1889 = vpack.c.b16 %v1408, %v1407
  %v1890 = vpack.c.b16 %v1410, %v1409
  %v1891 = vpack.c.b16 %v1412, %v1411
  %v1892 = vpack.c.b16 %v1414, %v1413
  %v1893 = vpack.c.b16 %v1416, %v1415
  %v1894 = vpack.c.b16 %v1418, %v1417
  %v1895 = vpack.c.b16 %v1420, %v1419
  %v1896 = vpack.c.b16 %v1422, %v1421
  %v1897 = vpack.c.b16 %v1424, %v1423
  %v1898 = vpack.c.b16 %v1426, %v1425
  %v1899 = vpack.c.b16 %v1428, %v1427
  %v1900 = vpack.c.b16 %v1430, %v1429
  %v1901 = vpack.c.b16 %v1432, %v1431
  %v1902 = vpack.c.b16 %v1434, %v1433
  %v1903 = vpack.c.b16 %v1436, %v1435
  %v1904 = vpack.c.b16 %v1438, %v1437
  %v1905 = vpack.c.b16 %v1440, %v1439
  %v1906 = vpack.c.b16 %v1442, %v1441
  %v1907 = vpack.c.b16 %v1444, %v1443
  %v1908 = vpack.c.b16 %v1446, %v1445
  %v1909 = vpack.c.b16 %v1448, %v1447
  %v1910 = vpack.c.b16 %v1450, %v1449
  %v1911 = vpack.c.b16 %v1452, %v1451
  %v1912 = vpack.c.b16 %v1454, %v1453
  %v1913 = vpack.c.b16 %v1456, %v1455
  %v1914 = vpack.c.b16 %v1458, %v1457
  %v1915 = vpack.c.b16 %v1460, %v1459
  %v1916 = vpack.c.b16 %v1462, %v1461
  %v1917 = vpack.c.b16 %v1464, %v1463
  %v1918 = vpack.c.b16 %v1466, %v1465
  %v1919 = vpack.c.b16 %v1468, %v1467
  %v1920 = vpack.c.b16 %v1470, %v1469
  %v1921 = vpack.c.b16 %v1472, %v1471
  %v1922 = vpack.c.b16 %v1474, %v1473
  %v1923 = vpack.c.b16 %v1476, %v1475
  %v1924 = vpack.c.b16 %v1478, %v1477
  %v1925 = vpack.c.b16 %v1480, %v1479
  %v1926 = vpack.c.b16 %v1482, %v1481
  %v1927 = vpack.c.b16 %v1484, %v1483
  %v1928 = vpack.c.b16 %v1486, %v1485
  %v1929 = vpack.c.b16 %v1488, %v1487
  %v1930 = vpack.c.b16 %v1490, %v1489
  %v1931 = vpack.c.b16 %v1492, %v1491
  %v1932 = vpack.c.b16 %v1494, %v1493
  %v1933 = vpack.c.b16 %v1496, %v1495
  %v1934 = vpack.c.b16 %v1498, %v1497
  %v1935 = vpack.c.b16 %v1500, %v1499
  %v1936 = vpack.c.b16 %v1502, %v1501
  %v1937 = vpack.c.b16 %v1504, %v1503
  %v1938 = vpack.c.b16 %v1506, %v1505
  %v1939 = vpack.c.b16 %v1508, %v1507
  %v1940 = vpack.c.b16 %v1510, %v1509
  %v1941 = vpack.c.b16 %v1512, %v1511
  %v1942 = vpack.c.b16 %v1514, %v1513
  %v1943 = vpack.c.b16 %v1516, %v1515
  %v1944 = vpack.c.b16 %v1518, %v1517
  %v1945 = vpack.c.b16 %v1520, %v1519
  %v1946 = vpack.c.b16 %v1522, %v1521
  %v1947 = vpack.c.b16 %v1524, %v1523
  %v1948 = vpack.c.b16 %v1526, %v1525
  %v1949 = vpack.c.b16 %v1528, %v1527
  %v1950 = vpack.c.b16 %v1530, %v1529
  %v1951 = vpack.c.b16 %v1532, %v1531
  %v1952 = vpack.c.b16 %v1534, %v1533
  %v1953 = vpack.c.b16 %v1536, %v1535
  %v1954 = vpack.c.b16 %v1538, %v1537
  %v1955 = vpack.c.b16 %v1540, %v1539
  %v1956 = vpack.c.b16 %v1542, %v1541
  %v1957 = vpack.c.b16 %v1544, %v1543
  %v1958 = vpack.c.b16 %v1546, %v1545
  %v1959 = vpack.c.b16 %v1548, %v1547
  %v1960 = vpack.c.b16 %v1550, %v1549
  %v1961 = vpack.c.b16 %v1552, %v1551
  %v1962 = vpack.c.b16 %v1554, %v1553
  %v1963 = vpack.c.b16 %v1556, %v1555
  %v1964 = vpack.c.b16 %v1558, %v1557
  %v1965 = vpack.c.b16 %v1560, %v1559
  %v1966 = vpack.c.b16 %v1562, %v1561
  %v1967 = vpack.c.b16 %v1564, %v1563
  %v1968 = vpack.c.b16 %v1566, %v1565
  %v1969 = vpack.c.b16 %v1568, %v1567
  %v1970 = vpack.c.b16 %v1570, %v1569
  %v1971 = vpack.c.b16 %v1572, %v1571
  %v1972 = vpack.c.b16 %v1574, %v1573
  %v1973 = vpack.c.b16 %v1576, %v1575
  %v1974 = vpack.c.b16 %v1578, %v1577
  %v1975 = vpack.c.b16 %v1580, %v1579
  %v1976 = vpack.c.b16 %v1582, %v1581
  %v1977 = vpack.c.b16 %v1584, %v1583
  %v1978 = vpack.c.b16 %v1586, %v1585
  %v1979 = vpack.c.b16 %v1588, %v1587
  %v1980 = vpack.c.b16 %v1590, %v1589
  %v1981 = vpack.c.b16 %v1592, %v1591
  %v1982 = vpack.c.b16 %v1594, %v1593
  %v1983 = vpack.c.b16 %v1596, %v1595
  %v1984 = vpack.c.b16 %v1598, %v1597
  %v1985 = vpack.c.b16 %v1600, %v1599
  %v1986 = vpack.c.b16 %v1602, %v1601
  %v1987 = vpack.c.b16 %v1604, %v1603
  %v1988 = vpack.c.b16 %v1606, %v1605
  %v1989 = vpack.c.b16 %v1608, %v1607
  %v1990 = vpack.c.b16 %v1610, %v1609
  %v1991 = vpack.c.b16 %v1612, %v1611
  %v1992 = vpack.c.b16 %v1614, %v1613
  %v1993 = vpack.c.b16 %v1616, %v1615
  %v1994 = vpack.c.b16 %v1618, %v1617
  %v1995 = vpack.c.b16 %v1620, %v1619
  %v1996 = vpack.c.b16 %v1622, %v1621
  %v1997 = vpack.c.b16 %v1624, %v1623
  %v1998 = vpack.c.b16 %v1626, %v1625
  %v1999 = vpack.c.b16 %v1628, %v1627
  %v2000 = vpack.c.b16 %v1630, %v1629
  %v2001 = vpack.c.b16 %v1632, %v1631
  %v2002 = vpack.c.b16 %v1634, %v1633
  %v2003 = vpack.c.b16 %v1636, %v1635
  %v2004 = vpack.c.b16 %v1638, %v1637
  %v2005 = vpack.c.b16 %v1640, %v1639
  %v2006 = vpack.c.b16 %v1642, %v1641
  %v2007 = vpack.c.b16 %v1644, %v1643
  %v2008 = vpack.c.b16 %v1646, %v1645
  %v2009 = vpack.c.b16 %v1648, %v1647
  %v2010 = vpack.c.b16 %v1650, %v1649
  %v2011 = vpack.c.b16 %v1652, %v1651
  %v2012 = vpack.c.b16 %v1654, %v1653
  %v2013 = vpack.c.b16 %v1656, %v1655
  %v2014 = vpack.c.b16 %v1658, %v1657
  %v2015 = vpack.c.b16 %v1660, %v1659
  %v2016 = vpack.c.b16 %v1662, %v1661
  %v2017 = vpack.c.b16 %v1664, %v1663
  %v2018 = vpack.c.b16 %v1666, %v1665
  %v2019 = vpack.c.b16 %v1668, %v1667
  %v2020 = vpack.c.b16 %v1670, %v1669
  %v2021 = vpack.c.b16 %v1672, %v1671
  %v2022 = vpack.c.b16 %v1674, %v1673
  %v2023 = vpack.c.b16 %v1676, %v1675
  %v2024 = vpack.c.b16 %v1678, %v1677
  %v2025 = vpack.c.b16 %v1680, %v1679
  %v2026 = vpack.c.b16 %v1682, %v1681
  %v2027 = vpack.c.b16 %v1684, %v1683
  %v2028 = vpack.c.b16 %v1686, %v1685
  %v2029 = vpack.c.b16 %v1688, %v1687
  %v2030 = vpack.c.b16 %v1690, %v1689
  %v2031 = vpack.c.b16 %v1692, %v1691
  %v2032 = vpack.c.b16 %v1694, %v1693
  %v2033 = vpack.c.b16 %v1696, %v1695
  %v2034 = vpack.c.b16 %v1698, %v1697
  %v2035 = vpack.c.b16 %v1700, %v1699
  %v2036 = vpack.c.b16 %v1702, %v1701
  %v2037 = vpack.c.b16 %v1704, %v1703
  %v2038 = vpack.c.b16 %v1706, %v1705
  %v2039 = vpack.c.b16 %v1708, %v1707
  %v2040 = vpack.c.b16 %v1710, %v1709
  %v2041 = vpack.c.b16 %v1712, %v1711
  %v2042 = vpack.c.b16 %v1714, %v1713
  %v2043 = vpack.c.b16 %v1716, %v1715
  %v2044 = vpack.c.b16 %v1718, %v1717
  %v2045 = vpack.c.b16 %v1720, %v1719
  %v2046 = vpack.c.b16 %v1722, %v1721
  %v2047 = vpack.c.b16 %v1724, %v1723
  %v2048 = vpack.c.b16 %v1726, %v1725
  %v2049 = vpack.c.b16 %v1728, %v1727
  %v2050 = vpack.c.b16 %v1730, %v1729
  %v2051 = vpack.c.b16 %v1732, %v1731
  %v2052 = vpack.c.b16 %v1734, %v1733
  %v2053 = vpack.c.b16 %v1736, %v1735
  %v2054 = vpack.c.b16 %v1738, %v1737
  %v2055 = vpack.c.b16 %v1740, %v1739
  %v2056 = vpack.c.b16 %v1742, %v1741
  %v2057 = vpack.c.b16 %v1744, %v1743
  %v2058 = vpack.c.b16 %v1746, %v1745
  %v2059 = vpack.c.b16 %v1748, %v1747
  %v2060 = vpack.c.b16 %v1750, %v1749
  %v2061 = vpack.c.b16 %v1752, %v1751
  %v2062 = vpack.c.b16 %v1754, %v1753
  %v2063 = vpack.c.b16 %v1756, %v1755
  %v2064 = vpack.c.b16 %v1758, %v1757
  %v2065 = vpack.c.b16 %v1760, %v1759
  %v2066 = vpack.c.b16 %v1762, %v1761
  %v2067 = vpack.c.b16 %v1764, %v1763
  %v2068 = vpack.c.b16 %v1766, %v1765
  %v2069 = vpack.c.b16 %v1768, %v1767
  %v2070 = vpack.c.b16 %v1770, %v1769
  %v2071 = vpack.c.b16 %v1772, %v1771
  %v2072 = vpack.c.b16 %v1774, %v1773
  %v2073 = vpack.c.b16 %v1776, %v1775
  %v2074 = vpack.c.b16 %v1778, %v1777
  %v2075 = vpack.c.b16 %v1780, %v1779
  %v2076 = vpack.c.b16 %v1782, %v1781
  %v2077 = vpack.c.b16 %v1784, %v1783
  %v2078 = vpack.c.b16 %v1786, %v1785
  %v2079 = vpack.c.b16 %v1788, %v1787
  %v2080 = vpack.c.b16 %v1790, %v1789
  %v2081 = vpack.c.b16 %v1792, %v1791
  %v2082 = vpack.c.b16 %v1794, %v1793
  %v2083 = vpack.c.b16 %v1796, %v1795
  %v2084 = vpack.c.b16 %v1798, %v1797
  %v2085 = vpack.c.b16 %v1800, %v1799
  %v2086 = vpack.c.b16 %v1802, %v1801
  %v2087 = vpack.c.b16 %v1804, %v1803
  %v2088 = vpack.c.b16 %v1806, %v1805
  %v2089 = vpack.c.b16 %v1808, %v1807
  %v2090 = vpack.c.b16 %v1810, %v1809
  %v2091 = vpack.c.b16 %v1812, %v1811
  %v2092 = vpack.c.b16 %v1814, %v1813
  %v2093 = vpack.c.b16 %v1816, %v1815
  %v2094 = vpack.c.b16 %v1818, %v1817
  %v2095 = vpack.c.b16 %v1820, %v1819
  %v2096 = vpack.c.b16 %v1822, %v1821
  %v2097 = vpack.c.b16 %v1824, %v1823
  %v2098 = vpack.c.b16 %v1826, %v1825
  %v2099 = vpack.c.b16 %v1828, %v1827
  %v2100 = vpack.c.b16 %v1830, %v1829
  %v2101 = vpack.c.b16 %v1832, %v1831
  %v2102 = vpack.c.b16 %v1834, %v1833
  %v2103 = vpack.c.b16 %v1836, %v1835
  %v2104 = vpack.c.b16 %v1838, %v1837
  %v2105 = vpack.c.b16 %v1840, %v1839
  %v2106 = vpack.c.b16 %v1842, %v1841
  %v2107 = vpack.c.b16 %v1844, %v1843
  %vm2371 = vcmask 916480
  %v2373 = vsel %vm2371, %v760, 0
  %2375 = vmatprep.subr.bf16.mxu0 0
  %2376 = vmatpush1.bf16.msra.mxu0 %v1845
  %2377 = vmatprep.subr.bf16.mxu0 0
  %2378 = vmatpush1.bf16.msra.mxu0 %v1846
  %2379 = vmatprep.subr.bf16.mxu0 0
  %2380 = vmatpush1.bf16.msra.mxu0 %v1847
  %2381 = vmatprep.subr.bf16.mxu0 0
  %2382 = vmatpush1.bf16.msra.mxu0 %v1848
  %2383 = vmatprep.subr.bf16.mxu0 0
  %2384 = vmatpush1.bf16.msra.mxu0 %v1849
  %2385 = vmatprep.subr.bf16.mxu0 0
  %2386 = vmatpush1.bf16.msra.mxu0 %v1850
  %2387 = vmatprep.subr.bf16.mxu0 0
  %2388 = vmatpush1.bf16.msra.mxu0 %v1851
  %2389 = vmatprep.subr.bf16.mxu0 0
  %2390 = vmatpush1.bf16.msra.mxu0 %v1852
  %2391 = vmatprep.subr.bf16.mxu0 0
  %2392 = vmatpush1.bf16.msra.mxu0 %v1853
  %2393 = vmatprep.subr.bf16.mxu0 0
  %2394 = vmatpush1.bf16.msra.mxu0 %v1854
  %2395 = vmatprep.subr.bf16.mxu0 0
  %2396 = vmatpush1.bf16.msra.mxu0 %v1855
  %2397 = vmatprep.subr.bf16.mxu0 0
  %2398 = vmatpush1.bf16.msra.mxu0 %v1856
  %2399 = vmatprep.subr.bf16.mxu0 0
  %2400 = vmatpush1.bf16.msra.mxu0 %v1857
  %2401 = vmatprep.subr.bf16.mxu0 0
  %2402 = vmatpush1.bf16.msra.mxu0 %v1858
  %2403 = vmatprep.subr.bf16.mxu0 0
  %2404 = vmatpush1.bf16.msra.mxu0 %v1859
  %2405 = vmatprep.subr.bf16.mxu0 0
  %2406 = vmatpush1.bf16.msra.mxu0 %v1860
  %2407 = vmatprep.mubr.bf16.mxu0 %v588
  %2408 = vmatmul.mubr.bf16.gmra.mrb[0].mxu0 %v574
  %v2409 = vpop.f32.mrb[0].mxu0
  %v2410 = vadd.f32 0.0, %v2409
  %v2411 = vpop.f32.mrb[0].mxu0
  %v2412 = vpop.f32.mrb[0].mxu0
  %v2413 = vpop.f32.mrb[0].mxu0
  %2414 = vdwg.mxu0
  %2415 = vmatprep.subr.bf16.mxu0 0
  %2416 = vmatpush1.bf16.msra.mxu0 %v1861
  %2417 = vmatprep.subr.bf16.mxu0 0
  %2418 = vmatpush1.bf16.msra.mxu0 %v1862
  %2419 = vmatprep.subr.bf16.mxu0 0
  %2420 = vmatpush1.bf16.msra.mxu0 %v1863
  %2421 = vmatprep.subr.bf16.mxu0 0
  %2422 = vmatpush1.bf16.msra.mxu0 %v1864
  %2423 = vmatprep.subr.bf16.mxu0 0
  %2424 = vmatpush1.bf16.msra.mxu0 %v1865
  %2425 = vmatprep.subr.bf16.mxu0 0
  %2426 = vmatpush1.bf16.msra.mxu0 %v1866
  %2427 = vmatprep.subr.bf16.mxu0 0
  %2428 = vmatpush1.bf16.msra.mxu0 %v1867
  %2429 = vmatprep.subr.bf16.mxu0 0
  %2430 = vmatpush1.bf16.msra.mxu0 %v1868
  %2431 = vmatprep.subr.bf16.mxu0 0
  %2432 = vmatpush1.bf16.msra.mxu0 %v1869
  %2433 = vmatprep.subr.bf16.mxu0 0
  %2434 = vmatpush1.bf16.msra.mxu0 %v1870
  %2435 = vmatprep.subr.bf16.mxu0 0
  %2436 = vmatpush1.bf16.msra.mxu0 %v1871
  %2437 = vmatprep.subr.bf16.mxu0 0
  %2438 = vmatpush1.bf16.msra.mxu0 %v1872
  %2439 = vmatprep.subr.bf16.mxu0 0
  %2440 = vmatpush1.bf16.msra.mxu0 %v1873
  %2441 = vmatprep.subr.bf16.mxu0 0
  %2442 = vmatpush1.bf16.msra.mxu0 %v1874
  %2443 = vmatprep.subr.bf16.mxu0 0
  %2444 = vmatpush1.bf16.msra.mxu0 %v1875
  %2445 = vmatprep.subr.bf16.mxu0 0
  %2446 = vmatpush1.bf16.msra.mxu0 %v1876
  %2447 = vmatprep.mubr.bf16.mxu0 %v598
  %2448 = vmatmul.mubr.bf16.gmra.mrb[0].mxu0 %v596
  %v2449 = vpop.f32.mrb[0].mxu0
  %v2450 = vadd.f32 %v2410, %v2449
  %v2451 = vpop.f32.mrb[0].mxu0
  %v2452 = vpop.f32.mrb[0].mxu0
  %v2453 = vpop.f32.mrb[0].mxu0
  %2454 = vdwg.mxu0
  %2455 = vmatprep.subr.bf16.mxu0 0
  %2456 = vmatpush1.bf16.msra.mxu0 %v1877
  %2457 = vmatprep.subr.bf16.mxu0 0
  %2458 = vmatpush1.bf16.msra.mxu0 %v1878
  %2459 = vmatprep.subr.bf16.mxu0 0
  %2460 = vmatpush1.bf16.msra.mxu0 %v1879
  %2461 = vmatprep.subr.bf16.mxu0 0
  %2462 = vmatpush1.bf16.msra.mxu0 %v1880
  %2463 = vmatprep.subr.bf16.mxu0 0
  %2464 = vmatpush1.bf16.msra.mxu0 %v1881
  %2465 = vmatprep.subr.bf16.mxu0 0
  %2466 = vmatpush1.bf16.msra.mxu0 %v1882
  %2467 = vmatprep.subr.bf16.mxu0 0
  %2468 = vmatpush1.bf16.msra.mxu0 %v1883
  %2469 = vmatprep.subr.bf16.mxu0 0
  %2470 = vmatpush1.bf16.msra.mxu0 %v1884
  %2471 = vmatprep.subr.bf16.mxu0 0
  %2472 = vmatpush1.bf16.msra.mxu0 %v1885
  %2473 = vmatprep.subr.bf16.mxu0 0
  %2474 = vmatpush1.bf16.msra.mxu0 %v1886
  %2475 = vmatprep.subr.bf16.mxu0 0
  %2476 = vmatpush1.bf16.msra.mxu0 %v1887
  %2477 = vmatprep.subr.bf16.mxu0 0
  %2478 = vmatpush1.bf16.msra.mxu0 %v1888
  %2479 = vmatprep.subr.bf16.mxu0 0
  %2480 = vmatpush1.bf16.msra.mxu0 %v1889
  %2481 = vmatprep.subr.bf16.mxu0 0
  %2482 = vmatpush1.bf16.msra.mxu0 %v1890
  %2483 = vmatprep.subr.bf16.mxu0 0
  %2484 = vmatpush1.bf16.msra.mxu0 %v1891
  %2485 = vmatprep.subr.bf16.mxu0 0
  %2486 = vmatpush1.bf16.msra.mxu0 %v1892
  %2487 = vmatprep.mubr.bf16.mxu0 %v595
  %2488 = vmatmul.mubr.bf16.gmra.mrb[0].mxu0 %v581
  %v2489 = vpop.f32.mrb[0].mxu0
  %v2490 = vadd.f32 %v2450, %v2489
  %v2491 = vpop.f32.mrb[0].mxu0
  %v2492 = vpop.f32.mrb[0].mxu0
  %v2493 = vpop.f32.mrb[0].mxu0
  %2494 = vdwg.mxu0
  %2495 = vmatprep.subr.bf16.mxu0 0
  %2496 = vmatpush1.bf16.msra.mxu0 %v1893
  %2497 = vmatprep.subr.bf16.mxu0 0
  %2498 = vmatpush1.bf16.msra.mxu0 %v1894
  %2499 = vmatprep.subr.bf16.mxu0 0
  %2500 = vmatpush1.bf16.msra.mxu0 %v1895
  %2501 = vmatprep.subr.bf16.mxu0 0
  %2502 = vmatpush1.bf16.msra.mxu0 %v1896
  %2503 = vmatprep.subr.bf16.mxu0 0
  %2504 = vmatpush1.bf16.msra.mxu0 %v1897
  %2505 = vmatprep.subr.bf16.mxu0 0
  %2506 = vmatpush1.bf16.msra.mxu0 %v1898
  %2507 = vmatprep.subr.bf16.mxu0 0
  %2508 = vmatpush1.bf16.msra.mxu0 %v1899
  %2509 = vmatprep.subr.bf16.mxu0 0
  %2510 = vmatpush1.bf16.msra.mxu0 %v1900
  %2511 = vmatprep.subr.bf16.mxu0 0
  %2512 = vmatpush1.bf16.msra.mxu0 %v1901
  %2513 = vmatprep.subr.bf16.mxu0 0
  %2514 = vmatpush1.bf16.msra.mxu0 %v1902
  %2515 = vmatprep.subr.bf16.mxu0 0
  %2516 = vmatpush1.bf16.msra.mxu0 %v1903
  %2517 = vmatprep.subr.bf16.mxu0 0
  %2518 = vmatpush1.bf16.msra.mxu0 %v1904
  %2519 = vmatprep.subr.bf16.mxu0 0
  %2520 = vmatpush1.bf16.msra.mxu0 %v1905
  %2521 = vmatprep.subr.bf16.mxu0 0
  %2522 = vmatpush1.bf16.msra.mxu0 %v1906
  %2523 = vmatprep.subr.bf16.mxu0 0
  %2524 = vmatpush1.bf16.msra.mxu0 %v1907
  %2525 = vmatprep.subr.bf16.mxu0 0
  %2526 = vmatpush1.bf16.msra.mxu0 %v1908
  %2527 = vmatprep.mubr.bf16.mxu0 %v599
  %2528 = vmatmul.mubr.bf16.gmra.mrb[0].mxu0 %v597
  %v2529 = vpop.f32.mrb[0].mxu0
  %v2530 = vadd.f32 %v2490, %v2529
  %v2531 = vpop.f32.mrb[0].mxu0
  %v2532 = vpop.f32.mrb[0].mxu0
  %v2533 = vpop.f32.mrb[0].mxu0
  %2534 = vdwg.mxu0
  %2535 = vmatprep.subr.bf16.mxu0 0
  %2536 = vmatpush1.bf16.msra.mxu0 %v1909
  %2537 = vmatprep.subr.bf16.mxu0 0
  %2538 = vmatpush1.bf16.msra.mxu0 %v1910
  %2539 = vmatprep.subr.bf16.mxu0 0
  %2540 = vmatpush1.bf16.msra.mxu0 %v1911
  %2541 = vmatprep.subr.bf16.mxu0 0
  %2542 = vmatpush1.bf16.msra.mxu0 %v1912
  %2543 = vmatprep.subr.bf16.mxu0 0
  %2544 = vmatpush1.bf16.msra.mxu0 %v1913
  %2545 = vmatprep.subr.bf16.mxu0 0
  %2546 = vmatpush1.bf16.msra.mxu0 %v1914
  %2547 = vmatprep.subr.bf16.mxu0 0
  %2548 = vmatpush1.bf16.msra.mxu0 %v1915
  %2549 = vmatprep.subr.bf16.mxu0 0
  %2550 = vmatpush1.bf16.msra.mxu0 %v1916
  %2551 = vmatprep.subr.bf16.mxu0 0
  %2552 = vmatpush1.bf16.msra.mxu0 %v1917
  %2553 = vmatprep.subr.bf16.mxu0 0
  %2554 = vmatpush1.bf16.msra.mxu0 %v1918
  %2555 = vmatprep.subr.bf16.mxu0 0
  %2556 = vmatpush1.bf16.msra.mxu0 %v1919
  %2557 = vmatprep.subr.bf16.mxu0 0
  %2558 = vmatpush1.bf16.msra.mxu0 %v1920
  %2559 = vmatprep.subr.bf16.mxu0 0
  %2560 = vmatpush1.bf16.msra.mxu0 %v1921
  %2561 = vmatprep.subr.bf16.mxu0 0
  %2562 = vmatpush1.bf16.msra.mxu0 %v1922
  %2563 = vmatprep.subr.bf16.mxu0 0
  %2564 = vmatpush1.bf16.msra.mxu0 %v1923
  %2565 = vmatprep.subr.bf16.mxu0 0
  %2566 = vmatpush1.bf16.msra.mxu0 %v1924
  %2567 = vmatprep.mubr.bf16.mxu0 %v637
  %2568 = vmatmul.mubr.bf16.gmra.mrb[0].mxu0 %v623
  %v2569 = vpop.f32.mrb[0].mxu0
  %v2570 = vadd.f32 %v2530, %v2569
  %v2571 = vpop.f32.mrb[0].mxu0
  %v2572 = vpop.f32.mrb[0].mxu0
  %v2573 = vpop.f32.mrb[0].mxu0
  %2574 = vdwg.mxu0
  %2575 = vmatprep.subr.bf16.mxu0 0
  %2576 = vmatpush1.bf16.msra.mxu0 %v1925
  %2577 = vmatprep.subr.bf16.mxu0 0
  %2578 = vmatpush1.bf16.msra.mxu0 %v1926
  %2579 = vmatprep.subr.bf16.mxu0 0
  %2580 = vmatpush1.bf16.msra.mxu0 %v1927
  %2581 = vmatprep.subr.bf16.mxu0 0
  %2582 = vmatpush1.bf16.msra.mxu0 %v1928
  %2583 = vmatprep.subr.bf16.mxu0 0
  %2584 = vmatpush1.bf16.msra.mxu0 %v1929
  %2585 = vmatprep.subr.bf16.mxu0 0
  %2586 = vmatpush1.bf16.msra.mxu0 %v1930
  %2587 = vmatprep.subr.bf16.mxu0 0
  %2588 = vmatpush1.bf16.msra.mxu0 %v1931
  %2589 = vmatprep.subr.bf16.mxu0 0
  %2590 = vmatpush1.bf16.msra.mxu0 %v1932
  %2591 = vmatprep.subr.bf16.mxu0 0
  %2592 = vmatpush1.bf16.msra.mxu0 %v1933
  %2593 = vmatprep.subr.bf16.mxu0 0
  %2594 = vmatpush1.bf16.msra.mxu0 %v1934
  %2595 = vmatprep.subr.bf16.mxu0 0
  %2596 = vmatpush1.bf16.msra.mxu0 %v1935
  %2597 = vmatprep.subr.bf16.mxu0 0
  %2598 = vmatpush1.bf16.msra.mxu0 %v1936
  %2599 = vmatprep.subr.bf16.mxu0 0
  %2600 = vmatpush1.bf16.msra.mxu0 %v1937
  %2601 = vmatprep.subr.bf16.mxu0 0
  %2602 = vmatpush1.bf16.msra.mxu0 %v1938
  %2603 = vmatprep.subr.bf16.mxu0 0
  %2604 = vmatpush1.bf16.msra.mxu0 %v1939
  %2605 = vmatprep.subr.bf16.mxu0 0
  %2606 = vmatpush1.bf16.msra.mxu0 %v1940
  %2607 = vmatprep.mubr.bf16.mxu0 %v647
  %2608 = vmatmul.mubr.bf16.gmra.mrb[0].mxu0 %v645
  %v2609 = vpop.f32.mrb[0].mxu0
  %v2610 = vadd.f32 %v2570, %v2609
  %v2611 = vpop.f32.mrb[0].mxu0
  %v2612 = vpop.f32.mrb[0].mxu0
  %v2613 = vpop.f32.mrb[0].mxu0
  %2614 = vdwg.mxu0
  %2615 = vmatprep.subr.bf16.mxu0 0
  %2616 = vmatpush1.bf16.msra.mxu0 %v1941
  %2617 = vmatprep.subr.bf16.mxu0 0
  %2618 = vmatpush1.bf16.msra.mxu0 %v1942
  %2619 = vmatprep.subr.bf16.mxu0 0
  %2620 = vmatpush1.bf16.msra.mxu0 %v1943
  %2621 = vmatprep.subr.bf16.mxu0 0
  %2622 = vmatpush1.bf16.msra.mxu0 %v1944
  %2623 = vmatprep.subr.bf16.mxu0 0
  %2624 = vmatpush1.bf16.msra.mxu0 %v1945
  %2625 = vmatprep.subr.bf16.mxu0 0
  %2626 = vmatpush1.bf16.msra.mxu0 %v1946
  %2627 = vmatprep.subr.bf16.mxu0 0
  %2628 = vmatpush1.bf16.msra.mxu0 %v1947
  %2629 = vmatprep.subr.bf16.mxu0 0
  %2630 = vmatpush1.bf16.msra.mxu0 %v1948
  %2631 = vmatprep.subr.bf16.mxu0 0
  %2632 = vmatpush1.bf16.msra.mxu0 %v1949
  %2633 = vmatprep.subr.bf16.mxu0 0
  %2634 = vmatpush1.bf16.msra.mxu0 %v1950
  %2635 = vmatprep.subr.bf16.mxu0 0
  %2636 = vmatpush1.bf16.msra.mxu0 %v1951
  %2637 = vmatprep.subr.bf16.mxu0 0
  %2638 = vmatpush1.bf16.msra.mxu0 %v1952
  %2639 = vmatprep.subr.bf16.mxu0 0
  %2640 = vmatpush1.bf16.msra.mxu0 %v1953
  %2641 = vmatprep.subr.bf16.mxu0 0
  %2642 = vmatpush1.bf16.msra.mxu0 %v1954
  %2643 = vmatprep.subr.bf16.mxu0 0
  %2644 = vmatpush1.bf16.msra.mxu0 %v1955
  %2645 = vmatprep.subr.bf16.mxu0 0
  %2646 = vmatpush1.bf16.msra.mxu0 %v1956
  %2647 = vmatprep.mubr.bf16.mxu0 %v644
  %2648 = vmatmul.mubr.bf16.gmra.mrb[0].mxu0 %v630
  %v2649 = vpop.f32.mrb[0].mxu0
  %v2650 = vadd.f32 %v2610, %v2649
  %v2651 = vpop.f32.mrb[0].mxu0
  %v2652 = vpop.f32.mrb[0].mxu0
  %v2653 = vpop.f32.mrb[0].mxu0
  %2654 = vdwg.mxu0
  %2655 = vmatprep.subr.bf16.mxu0 0
  %2656 = vmatpush1.bf16.msra.mxu0 %v1957
  %2657 = vmatprep.subr.bf16.mxu0 0
  %2658 = vmatpush1.bf16.msra.mxu0 %v1958
  %2659 = vmatprep.subr.bf16.mxu0 0
  %2660 = vmatpush1.bf16.msra.mxu0 %v1959
  %2661 = vmatprep.subr.bf16.mxu0 0
  %2662 = vmatpush1.bf16.msra.mxu0 %v1960
  %2663 = vmatprep.subr.bf16.mxu0 0
  %2664 = vmatpush1.bf16.msra.mxu0 %v1961
  %2665 = vmatprep.subr.bf16.mxu0 0
  %2666 = vmatpush1.bf16.msra.mxu0 %v1962
  %2667 = vmatprep.subr.bf16.mxu0 0
  %2668 = vmatpush1.bf16.msra.mxu0 %v1963
  %2669 = vmatprep.subr.bf16.mxu0 0
  %2670 = vmatpush1.bf16.msra.mxu0 %v1964
  %2671 = vmatprep.subr.bf16.mxu0 0
  %2672 = vmatpush1.bf16.msra.mxu0 %v1965
  %2673 = vmatprep.subr.bf16.mxu0 0
  %2674 = vmatpush1.bf16.msra.mxu0 %v1966
  %2675 = vmatprep.subr.bf16.mxu0 0
  %2676 = vmatpush1.bf16.msra.mxu0 %v1967
  %2677 = vmatprep.subr.bf16.mxu0 0
  %2678 = vmatpush1.bf16.msra.mxu0 %v1968
  %2679 = vmatprep.subr.bf16.mxu0 0
  %2680 = vmatpush1.bf16.msra.mxu0 %v1969
  %2681 = vmatprep.subr.bf16.mxu0 0
  %2682 = vmatpush1.bf16.msra.mxu0 %v1970
  %2683 = vmatprep.subr.bf16.mxu0 0
  %2684 = vmatpush1.bf16.msra.mxu0 %v1971
  %2685 = vmatprep.subr.bf16.mxu0 0
  %2686 = vmatpush1.bf16.msra.mxu0 %v1972
  %2687 = vmatprep.mubr.bf16.mxu0 %v648
  %2688 = vmatmul.mubr.bf16.gmra.mrb[0].mxu0 %v646
  %v2689 = vpop.f32.mrb[0].mxu0
  %v2690 = vadd.f32 %v2650, %v2689
  %v2691 = vpop.f32.mrb[0].mxu0
  %v2692 = vpop.f32.mrb[0].mxu0
  %v2693 = vpop.f32.mrb[0].mxu0
  %2694 = vdwg.mxu0
  %2695 = vmatprep.subr.bf16.mxu0 0
  %2696 = vmatpush1.bf16.msra.mxu0 %v1973
  %2697 = vmatprep.subr.bf16.mxu0 0
  %2698 = vmatpush1.bf16.msra.mxu0 %v1974
  %2699 = vmatprep.subr.bf16.mxu0 0
  %2700 = vmatpush1.bf16.msra.mxu0 %v1975
  %2701 = vmatprep.subr.bf16.mxu0 0
  %2702 = vmatpush1.bf16.msra.mxu0 %v1976
  %2703 = vmatprep.subr.bf16.mxu0 0
  %2704 = vmatpush1.bf16.msra.mxu0 %v1977
  %2705 = vmatprep.subr.bf16.mxu0 0
  %2706 = vmatpush1.bf16.msra.mxu0 %v1978
  %2707 = vmatprep.subr.bf16.mxu0 0
  %2708 = vmatpush1.bf16.msra.mxu0 %v1979
  %2709 = vmatprep.subr.bf16.mxu0 0
  %2710 = vmatpush1.bf16.msra.mxu0 %v1980
  %2711 = vmatprep.subr.bf16.mxu0 0
  %2712 = vmatpush1.bf16.msra.mxu0 %v1981
  %2713 = vmatprep.subr.bf16.mxu0 0
  %2714 = vmatpush1.bf16.msra.mxu0 %v1982
  %2715 = vmatprep.subr.bf16.mxu0 0
  %2716 = vmatpush1.bf16.msra.mxu0 %v1983
  %2717 = vmatprep.subr.bf16.mxu0 0
  %2718 = vmatpush1.bf16.msra.mxu0 %v1984
  %2719 = vmatprep.subr.bf16.mxu0 0
  %2720 = vmatpush1.bf16.msra.mxu0 %v1985
  %2721 = vmatprep.subr.bf16.mxu0 0
  %2722 = vmatpush1.bf16.msra.mxu0 %v1986
  %2723 = vmatprep.subr.bf16.mxu0 0
  %2724 = vmatpush1.bf16.msra.mxu0 %v1987
  %2725 = vmatprep.subr.bf16.mxu0 0
  %2726 = vmatpush1.bf16.msra.mxu0 %v1988
  %2727 = vmatprep.mubr.bf16.mxu0 %v686
  %2728 = vmatmul.mubr.bf16.gmra.mrb[0].mxu0 %v672
  %v2729 = vpop.f32.mrb[0].mxu0
  %v2730 = vadd.f32 %v2690, %v2729
  %v2731 = vpop.f32.mrb[0].mxu0
  %v2732 = vpop.f32.mrb[0].mxu0
  %v2733 = vpop.f32.mrb[0].mxu0
  %2734 = vdwg.mxu0
  %2735 = vmatprep.subr.bf16.mxu0 0
  %2736 = vmatpush1.bf16.msra.mxu0 %v1989
  %2737 = vmatprep.subr.bf16.mxu0 0
  %2738 = vmatpush1.bf16.msra.mxu0 %v1990
  %2739 = vmatprep.subr.bf16.mxu0 0
  %2740 = vmatpush1.bf16.msra.mxu0 %v1991
  %2741 = vmatprep.subr.bf16.mxu0 0
  %2742 = vmatpush1.bf16.msra.mxu0 %v1992
  %2743 = vmatprep.subr.bf16.mxu0 0
  %2744 = vmatpush1.bf16.msra.mxu0 %v1993
  %2745 = vmatprep.subr.bf16.mxu0 0
  %2746 = vmatpush1.bf16.msra.mxu0 %v1994
  %2747 = vmatprep.subr.bf16.mxu0 0
  %2748 = vmatpush1.bf16.msra.mxu0 %v1995
  %2749 = vmatprep.subr.bf16.mxu0 0
  %2750 = vmatpush1.bf16.msra.mxu0 %v1996
  %2751 = vmatprep.subr.bf16.mxu0 0
  %2752 = vmatpush1.bf16.msra.mxu0 %v1997
  %2753 = vmatprep.subr.bf16.mxu0 0
  %2754 = vmatpush1.bf16.msra.mxu0 %v1998
  %2755 = vmatprep.subr.bf16.mxu0 0
  %2756 = vmatpush1.bf16.msra.mxu0 %v1999
  %2757 = vmatprep.subr.bf16.mxu0 0
  %2758 = vmatpush1.bf16.msra.mxu0 %v2000
  %2759 = vmatprep.subr.bf16.mxu0 0
  %2760 = vmatpush1.bf16.msra.mxu0 %v2001
  %2761 = vmatprep.subr.bf16.mxu0 0
  %2762 = vmatpush1.bf16.msra.mxu0 %v2002
  %2763 = vmatprep.subr.bf16.mxu0 0
  %2764 = vmatpush1.bf16.msra.mxu0 %v2003
  %2765 = vmatprep.subr.bf16.mxu0 0
  %2766 = vmatpush1.bf16.msra.mxu0 %v2004
  %2767 = vmatprep.mubr.bf16.mxu0 %v696
  %2768 = vmatmul.mubr.bf16.gmra.mrb[0].mxu0 %v694
  %v2769 = vpop.f32.mrb[0].mxu0
  %v2770 = vadd.f32 %v2730, %v2769
  %v2771 = vpop.f32.mrb[0].mxu0
  %v2772 = vpop.f32.mrb[0].mxu0
  %v2773 = vpop.f32.mrb[0].mxu0
  %2774 = vdwg.mxu0
  %2775 = vmatprep.subr.bf16.mxu0 0
  %2776 = vmatpush1.bf16.msra.mxu0 %v2005
  %2777 = vmatprep.subr.bf16.mxu0 0
  %2778 = vmatpush1.bf16.msra.mxu0 %v2006
  %2779 = vmatprep.subr.bf16.mxu0 0
  %2780 = vmatpush1.bf16.msra.mxu0 %v2007
  %2781 = vmatprep.subr.bf16.mxu0 0
  %2782 = vmatpush1.bf16.msra.mxu0 %v2008
  %2783 = vmatprep.subr.bf16.mxu0 0
  %2784 = vmatpush1.bf16.msra.mxu0 %v2009
  %2785 = vmatprep.subr.bf16.mxu0 0
  %2786 = vmatpush1.bf16.msra.mxu0 %v2010
  %2787 = vmatprep.subr.bf16.mxu0 0
  %2788 = vmatpush1.bf16.msra.mxu0 %v2011
  %2789 = vmatprep.subr.bf16.mxu0 0
  %2790 = vmatpush1.bf16.msra.mxu0 %v2012
  %2791 = vmatprep.subr.bf16.mxu0 0
  %2792 = vmatpush1.bf16.msra.mxu0 %v2013
  %2793 = vmatprep.subr.bf16.mxu0 0
  %2794 = vmatpush1.bf16.msra.mxu0 %v2014
  %2795 = vmatprep.subr.bf16.mxu0 0
  %2796 = vmatpush1.bf16.msra.mxu0 %v2015
  %2797 = vmatprep.subr.bf16.mxu0 0
  %2798 = vmatpush1.bf16.msra.mxu0 %v2016
  %2799 = vmatprep.subr.bf16.mxu0 0
  %2800 = vmatpush1.bf16.msra.mxu0 %v2017
  %2801 = vmatprep.subr.bf16.mxu0 0
  %2802 = vmatpush1.bf16.msra.mxu0 %v2018
  %2803 = vmatprep.subr.bf16.mxu0 0
  %2804 = vmatpush1.bf16.msra.mxu0 %v2019
  %2805 = vmatprep.subr.bf16.mxu0 0
  %2806 = vmatpush1.bf16.msra.mxu0 %v2020
  %2807 = vmatprep.mubr.bf16.mxu0 %v693
  %2808 = vmatmul.mubr.bf16.gmra.mrb[0].mxu0 %v679
  %v2809 = vpop.f32.mrb[0].mxu0
  %v2810 = vadd.f32 %v2770, %v2809
  %v2811 = vpop.f32.mrb[0].mxu0
  %v2812 = vpop.f32.mrb[0].mxu0
  %v2813 = vpop.f32.mrb[0].mxu0
  %2814 = vdwg.mxu0
  %2815 = vmatprep.subr.bf16.mxu0 0
  %2816 = vmatpush1.bf16.msra.mxu0 %v2021
  %2817 = vmatprep.subr.bf16.mxu0 0
  %2818 = vmatpush1.bf16.msra.mxu0 %v2022
  %2819 = vmatprep.subr.bf16.mxu0 0
  %2820 = vmatpush1.bf16.msra.mxu0 %v2023
  %2821 = vmatprep.subr.bf16.mxu0 0
  %2822 = vmatpush1.bf16.msra.mxu0 %v2024
  %2823 = vmatprep.subr.bf16.mxu0 0
  %2824 = vmatpush1.bf16.msra.mxu0 %v2025
  %2825 = vmatprep.subr.bf16.mxu0 0
  %2826 = vmatpush1.bf16.msra.mxu0 %v2026
  %2827 = vmatprep.subr.bf16.mxu0 0
  %2828 = vmatpush1.bf16.msra.mxu0 %v2027
  %2829 = vmatprep.subr.bf16.mxu0 0
  %2830 = vmatpush1.bf16.msra.mxu0 %v2028
  %2831 = vmatprep.subr.bf16.mxu0 0
  %2832 = vmatpush1.bf16.msra.mxu0 %v2029
  %2833 = vmatprep.subr.bf16.mxu0 0
  %2834 = vmatpush1.bf16.msra.mxu0 %v2030
  %2835 = vmatprep.subr.bf16.mxu0 0
  %2836 = vmatpush1.bf16.msra.mxu0 %v2031
  %2837 = vmatprep.subr.bf16.mxu0 0
  %2838 = vmatpush1.bf16.msra.mxu0 %v2032
  %2839 = vmatprep.subr.bf16.mxu0 0
  %2840 = vmatpush1.bf16.msra.mxu0 %v2033
  %2841 = vmatprep.subr.bf16.mxu0 0
  %2842 = vmatpush1.bf16.msra.mxu0 %v2034
  %2843 = vmatprep.subr.bf16.mxu0 0
  %2844 = vmatpush1.bf16.msra.mxu0 %v2035
  %2845 = vmatprep.subr.bf16.mxu0 0
  %2846 = vmatpush1.bf16.msra.mxu0 %v2036
  %2847 = vmatprep.mubr.bf16.mxu0 %v697
  %2848 = vmatmul.mubr.bf16.gmra.mrb[0].mxu0 %v695
  %v2849 = vpop.f32.mrb[0].mxu0
  %v2850 = vadd.f32 %v2810, %v2849
  %v2851 = vpop.f32.mrb[0].mxu0
  %v2852 = vpop.f32.mrb[0].mxu0
  %v2853 = vpop.f32.mrb[0].mxu0
  %2854 = vdwg.mxu0
  %2855 = vmatprep.subr.bf16.mxu0 0
  %2856 = vmatpush1.bf16.msra.mxu0 %v2037
  %2857 = vmatprep.subr.bf16.mxu0 0
  %2858 = vmatpush1.bf16.msra.mxu0 %v2038
  %2859 = vmatprep.subr.bf16.mxu0 0
  %2860 = vmatpush1.bf16.msra.mxu0 %v2039
  %2861 = vmatprep.subr.bf16.mxu0 0
  %2862 = vmatpush1.bf16.msra.mxu0 %v2040
  %2863 = vmatprep.subr.bf16.mxu0 0
  %2864 = vmatpush1.bf16.msra.mxu0 %v2041
  %2865 = vmatprep.subr.bf16.mxu0 0
  %2866 = vmatpush1.bf16.msra.mxu0 %v2042
  %2867 = vmatprep.subr.bf16.mxu0 0
  %2868 = vmatpush1.bf16.msra.mxu0 %v2043
  %2869 = vmatprep.subr.bf16.mxu0 0
  %2870 = vmatpush1.bf16.msra.mxu0 %v2044
  %2871 = vmatprep.subr.bf16.mxu0 0
  %2872 = vmatpush1.bf16.msra.mxu0 %v2045
  %2873 = vmatprep.subr.bf16.mxu0 0
  %2874 = vmatpush1.bf16.msra.mxu0 %v2046
  %2875 = vmatprep.subr.bf16.mxu0 0
  %2876 = vmatpush1.bf16.msra.mxu0 %v2047
  %2877 = vmatprep.subr.bf16.mxu0 0
  %2878 = vmatpush1.bf16.msra.mxu0 %v2048
  %2879 = vmatprep.subr.bf16.mxu0 0
  %2880 = vmatpush1.bf16.msra.mxu0 %v2049
  %2881 = vmatprep.subr.bf16.mxu0 0
  %2882 = vmatpush1.bf16.msra.mxu0 %v2050
  %2883 = vmatprep.subr.bf16.mxu0 0
  %2884 = vmatpush1.bf16.msra.mxu0 %v2051
  %2885 = vmatprep.subr.bf16.mxu0 0
  %2886 = vmatpush1.bf16.msra.mxu0 %v2052
  %2887 = vmatprep.mubr.bf16.mxu0 %v735
  %2888 = vmatmul.mubr.bf16.gmra.mrb[0].mxu0 %v721
  %v2889 = vpop.f32.mrb[0].mxu0
  %v2890 = vadd.f32 %v2850, %v2889
  %v2891 = vpop.f32.mrb[0].mxu0
  %v2892 = vpop.f32.mrb[0].mxu0
  %v2893 = vpop.f32.mrb[0].mxu0
  %2894 = vdwg.mxu0
  %2895 = vmatprep.subr.bf16.mxu0 0
  %2896 = vmatpush1.bf16.msra.mxu0 %v2053
  %2897 = vmatprep.subr.bf16.mxu0 0
  %2898 = vmatpush1.bf16.msra.mxu0 %v2054
  %2899 = vmatprep.subr.bf16.mxu0 0
  %2900 = vmatpush1.bf16.msra.mxu0 %v2055
  %2901 = vmatprep.subr.bf16.mxu0 0
  %2902 = vmatpush1.bf16.msra.mxu0 %v2056
  %2903 = vmatprep.subr.bf16.mxu0 0
  %2904 = vmatpush1.bf16.msra.mxu0 %v2057
  %2905 = vmatprep.subr.bf16.mxu0 0
  %2906 = vmatpush1.bf16.msra.mxu0 %v2058
  %2907 = vmatprep.subr.bf16.mxu0 0
  %2908 = vmatpush1.bf16.msra.mxu0 %v2059
  %2909 = vmatprep.subr.bf16.mxu0 0
  %2910 = vmatpush1.bf16.msra.mxu0 %v2060
  %2911 = vmatprep.subr.bf16.mxu0 0
  %2912 = vmatpush1.bf16.msra.mxu0 %v2061
  %2913 = vmatprep.subr.bf16.mxu0 0
  %2914 = vmatpush1.bf16.msra.mxu0 %v2062
  %2915 = vmatprep.subr.bf16.mxu0 0
  %2916 = vmatpush1.bf16.msra.mxu0 %v2063
  %2917 = vmatprep.subr.bf16.mxu0 0
  %2918 = vmatpush1.bf16.msra.mxu0 %v2064
  %2919 = vmatprep.subr.bf16.mxu0 0
  %2920 = vmatpush1.bf16.msra.mxu0 %v2065
  %2921 = vmatprep.subr.bf16.mxu0 0
  %2922 = vmatpush1.bf16.msra.mxu0 %v2066
  %2923 = vmatprep.subr.bf16.mxu0 0
  %2924 = vmatpush1.bf16.msra.mxu0 %v2067
  %2925 = vmatprep.subr.bf16.mxu0 0
  %2926 = vmatpush1.bf16.msra.mxu0 %v2068
  %2927 = vmatprep.mubr.bf16.mxu0 %v745
  %2928 = vmatmul.mubr.bf16.gmra.mrb[0].mxu0 %v743
  %v2929 = vpop.f32.mrb[0].mxu0
  %v2930 = vadd.f32 %v2890, %v2929
  %v2931 = vpop.f32.mrb[0].mxu0
  %v2932 = vpop.f32.mrb[0].mxu0
  %v2933 = vpop.f32.mrb[0].mxu0
  %2934 = vdwg.mxu0
  %2935 = vmatprep.subr.bf16.mxu0 0
  %2936 = vmatpush1.bf16.msra.mxu0 %v2069
  %2937 = vmatprep.subr.bf16.mxu0 0
  %2938 = vmatpush1.bf16.msra.mxu0 %v2070
  %2939 = vmatprep.subr.bf16.mxu0 0
  %2940 = vmatpush1.bf16.msra.mxu0 %v2071
  %2941 = vmatprep.subr.bf16.mxu0 0
  %2942 = vmatpush1.bf16.msra.mxu0 %v2072
  %2943 = vmatprep.subr.bf16.mxu0 0
  %2944 = vmatpush1.bf16.msra.mxu0 %v2073
  %2945 = vmatprep.subr.bf16.mxu0 0
  %2946 = vmatpush1.bf16.msra.mxu0 %v2074
  %2947 = vmatprep.subr.bf16.mxu0 0
  %2948 = vmatpush1.bf16.msra.mxu0 %v2075
  %2949 = vmatprep.subr.bf16.mxu0 0
  %2950 = vmatpush1.bf16.msra.mxu0 %v2076
  %2951 = vmatprep.subr.bf16.mxu0 0
  %2952 = vmatpush1.bf16.msra.mxu0 %v2077
  %2953 = vmatprep.subr.bf16.mxu0 0
  %2954 = vmatpush1.bf16.msra.mxu0 %v2078
  %2955 = vmatprep.subr.bf16.mxu0 0
  %2956 = vmatpush1.bf16.msra.mxu0 %v2079
  %2957 = vmatprep.subr.bf16.mxu0 0
  %2958 = vmatpush1.bf16.msra.mxu0 %v2080
  %2959 = vmatprep.subr.bf16.mxu0 0
  %2960 = vmatpush1.bf16.msra.mxu0 %v2081
  %2961 = vmatprep.subr.bf16.mxu0 0
  %2962 = vmatpush1.bf16.msra.mxu0 %v2082
  %2963 = vmatprep.subr.bf16.mxu0 0
  %2964 = vmatpush1.bf16.msra.mxu0 %v2083
  %2965 = vmatprep.subr.bf16.mxu0 0
  %2966 = vmatpush1.bf16.msra.mxu0 %v2084
  %2967 = vmatprep.mubr.bf16.mxu0 %v742
  %2968 = vmatmul.mubr.bf16.gmra.mrb[0].mxu0 %v728
  %v2969 = vpop.f32.mrb[0].mxu0
  %v2970 = vadd.f32 %v2930, %v2969
  %v2971 = vpop.f32.mrb[0].mxu0
  %v2972 = vpop.f32.mrb[0].mxu0
  %v2973 = vpop.f32.mrb[0].mxu0
  %2974 = vdwg.mxu0
  %2975 = vmatprep.subr.bf16.mxu0 0
  %2976 = vmatpush1.bf16.msra.mxu0 %v2085
  %2977 = vmatprep.subr.bf16.mxu0 0
  %2978 = vmatpush1.bf16.msra.mxu0 %v2086
  %2979 = vmatprep.subr.bf16.mxu0 0
  %2980 = vmatpush1.bf16.msra.mxu0 %v2087
  %2981 = vmatprep.subr.bf16.mxu0 0
  %2982 = vmatpush1.bf16.msra.mxu0 %v2088
  %2983 = vmatprep.subr.bf16.mxu0 0
  %2984 = vmatpush1.bf16.msra.mxu0 %v2089
  %2985 = vmatprep.subr.bf16.mxu0 0
  %2986 = vmatpush1.bf16.msra.mxu0 %v2090
  %2987 = vmatprep.subr.bf16.mxu0 0
  %2988 = vmatpush1.bf16.msra.mxu0 %v2091
  %2989 = vmatprep.subr.bf16.mxu0 0
  %2990 = vmatpush1.bf16.msra.mxu0 %v2092
  %2991 = vmatprep.subr.bf16.mxu0 0
  %2992 = vmatpush1.bf16.msra.mxu0 %v2093
  %2993 = vmatprep.subr.bf16.mxu0 0
  %2994 = vmatpush1.bf16.msra.mxu0 %v2094
  %2995 = vmatprep.subr.bf16.mxu0 0
  %2996 = vmatpush1.bf16.msra.mxu0 %v2095
  %2997 = vmatprep.subr.bf16.mxu0 0
  %2998 = vmatpush1.bf16.msra.mxu0 %v2096
  %2999 = vmatprep.subr.bf16.mxu0 0
  %3000 = vmatpush1.bf16.msra.mxu0 %v2097
  %3001 = vmatprep.subr.bf16.mxu0 0
  %3002 = vmatpush1.bf16.msra.mxu0 %v2098
  %3003 = vmatprep.subr.bf16.mxu0 0
  %3004 = vmatpush1.bf16.msra.mxu0 %v2099
  %3005 = vmatprep.subr.bf16.mxu0 0
  %3006 = vmatpush1.bf16.msra.mxu0 %v2100
  %3007 = vmatprep.mubr.bf16.mxu0 %v746
  %3008 = vmatmul.mubr.bf16.gmra.mrb[0].mxu0 %v744
  %v3009 = vpop.f32.mrb[0].mxu0
  %v3010 = vadd.f32 %v2970, %v3009
  %v3011 = vpop.f32.mrb[0].mxu0
  %v3012 = vpop.f32.mrb[0].mxu0
  %v3013 = vpop.f32.mrb[0].mxu0
  %3014 = vdwg.mxu0
  %3015 = vmatprep.subr.bf16.mxu0 0
  %3016 = vmatpush1.bf16.msra.mxu0 %v2101
  %3017 = vmatprep.subr.bf16.mxu0 0
  %3018 = vmatpush1.bf16.msra.mxu0 %v2102
  %3019 = vmatprep.subr.bf16.mxu0 0
  %3020 = vmatpush1.bf16.msra.mxu0 %v2103
  %3021 = vmatprep.subr.bf16.mxu0 0
  %3022 = vmatpush1.bf16.msra.mxu0 %v2104
  %3023 = vmatprep.subr.bf16.mxu0 0
  %3024 = vmatpush1.bf16.msra.mxu0 %v2105
  %3025 = vmatprep.subr.bf16.mxu0 0
  %3026 = vmatpush1.bf16.msra.mxu0 %v2106
  %3027 = vmatprep.subr.bf16.mxu0 0
  %3028 = vmatpush1.bf16.msra.mxu0 %v2107
  %3029 = vmatprep.subr.bf16.mxu0 0
  %3030 = vmatpush1.bf16.msra.mxu0 0
  %3031 = vmatprep.subr.bf16.mxu0 0
  %3032 = vmatpush1.bf16.msra.mxu0 0
  %3033 = vmatprep.subr.bf16.mxu0 0
  %3034 = vmatpush1.bf16.msra.mxu0 0
  %3035 = vmatprep.subr.bf16.mxu0 0
  %3036 = vmatpush1.bf16.msra.mxu0 0
  %3037 = vmatprep.subr.bf16.mxu0 0
  %3038 = vmatpush1.bf16.msra.mxu0 0
  %3039 = vmatprep.subr.bf16.mxu0 0
  %3040 = vmatpush1.bf16.msra.mxu0 0
  %3041 = vmatprep.subr.bf16.mxu0 0
  %3042 = vmatpush1.bf16.msra.mxu0 0
  %3043 = vmatprep.subr.bf16.mxu0 0
  %3044 = vmatpush1.bf16.msra.mxu0 0
  %3045 = vmatprep.subr.bf16.mxu0 0
  %3046 = vmatpush1.bf16.msra.mxu0 0
  %3047 = vmatprep.mubr.bf16.mxu0 0
  %3048 = vmatmul.mubr.bf16.gmra.mrb[0].mxu0 %v2373
  %v3049 = vpop.f32.mrb[0].mxu0
  %v3050 = vadd.f32 %v3010, %v3049
  %v3051 = vpop.f32.mrb[0].mxu0
  %v3052 = vpop.f32.mrb[0].mxu0
  %v3053 = vpop.f32.mrb[0].mxu0
  %3054 = vdwg.mxu0
  %v3055 = vtanh.pop %v3050
  %v3056 = vand.u32 2147483647, %v3055
  %v3057 = vlaneseq
  %v3058 = vand.u32 %v3057, 127
  %vm3059 = vcmp.eq.s32.totalorder %v3058, 15
  %v3060 = vsel %vm3059, 1.0, %v3056
  %v3061 = vpack.c.bf16 %v3060, %v3060
  %v3062 = vld [vmem:[%s2] sm:$0xff]
  %v3063 = vld [vmem:[%s2 + $0x8] sm:$0xf]
  %v3064 = vld [vmem:[%s2 + $0xc] sm:$0xff]
  %v3065 = vld [vmem:[%s2 + $0x14] sm:$0xf]
  %v3070 = vunpack.c.l.b16 %v3062
  %v3071 = vunpack.c.h.b16 %v3062
  %v3072 = vunpack.c.l.b16 %v3063
  %v3073 = vunpack.c.l.b16 %v3064
  %v3074 = vunpack.c.h.b16 %v3064
  %v3075 = vunpack.c.l.b16 %v3065
  %v3076 = vpack.c.b16 %v3073, %v3070
  %v3077 = vpack.c.b16 %v3074, %v3071
  %v3078 = vpack.c.b16 %v3075, %v3072
  %vm3082 = vcmask 130048
  %v3084 = vsel %vm3082, %v3061, 0
  %3086 = vmatprep.subr.bf16.mxu0 %v3077
  %3087 = vmatpush1.bf16.msra.mxu0 %v3076
  %3088 = vmatprep.subr.bf16.mxu0 0
  %3089 = vmatpush1.bf16.msra.mxu0 0
  %3090 = vmatprep.subr.bf16.mxu0 0
  %3091 = vmatpush1.bf16.msra.mxu0 0
  %3092 = vmatprep.subr.bf16.mxu0 0
  %3093 = vmatpush1.bf16.msra.mxu0 0
  %3094 = vmatprep.subr.bf16.mxu0 0
  %3095 = vmatpush1.bf16.msra.mxu0 0
  %3096 = vmatprep.subr.bf16.mxu0 0
  %3097 = vmatpush1.bf16.msra.mxu0 0
  %3098 = vmatprep.subr.bf16.mxu0 0
  %3099 = vmatpush1.bf16.msra.mxu0 0
  %3100 = vmatprep.subr.bf16.mxu0 0
  %3101 = vmatpush1.bf16.msra.mxu0 0
  %3102 = vmatprep.subr.bf16.mxu0 0
  %3103 = vmatpush1.bf16.msra.mxu0 0
  %3104 = vmatprep.subr.bf16.mxu0 0
  %3105 = vmatpush1.bf16.msra.mxu0 0
  %3106 = vmatprep.subr.bf16.mxu0 0
  %3107 = vmatpush1.bf16.msra.mxu0 0
  %3108 = vmatprep.subr.bf16.mxu0 0
  %3109 = vmatpush1.bf16.msra.mxu0 0
  %3110 = vmatprep.subr.bf16.mxu0 0
  %3111 = vmatpush1.bf16.msra.mxu0 0
  %3112 = vmatprep.subr.bf16.mxu0 0
  %3113 = vmatpush1.bf16.msra.mxu0 0
  %3114 = vmatprep.subr.bf16.mxu0 0
  %3115 = vmatpush1.bf16.msra.mxu0 0
  %3116 = vmatprep.subr.bf16.mxu0 0
  %3117 = vmatpush1.bf16.msra.mxu0 0
  %3118 = vmatprep.mubr.bf16.mxu0 0
  %3119 = vmatmul.mubr.bf16.gmra.mrb[0].mxu0 %v3084
  %v3120 = vpop.f32.mrb[0].mxu0
  %v3121 = vadd.f32 0.0, %v3120
  %v3122 = vpop.f32.mrb[0].mxu0
  %v3123 = vadd.f32 0.0, %v3122
  %v3124 = vpop.f32.mrb[0].mxu0
  %v3125 = vpop.f32.mrb[0].mxu0
  %3126 = vdwg.mxu0
  %3127 = vmatprep.subr.bf16.mxu0 0
  %3128 = vmatpush1.bf16.msra.mxu0 %v3078
  %3129 = vmatprep.subr.bf16.mxu0 0
  %3130 = vmatpush1.bf16.msra.mxu0 0
  %3131 = vmatprep.subr.bf16.mxu0 0
  %3132 = vmatpush1.bf16.msra.mxu0 0
  %3133 = vmatprep.subr.bf16.mxu0 0
  %3134 = vmatpush1.bf16.msra.mxu0 0
  %3135 = vmatprep.subr.bf16.mxu0 0
  %3136 = vmatpush1.bf16.msra.mxu0 0
  %3137 = vmatprep.subr.bf16.mxu0 0
  %3138 = vmatpush1.bf16.msra.mxu0 0
  %3139 = vmatprep.subr.bf16.mxu0 0
  %3140 = vmatpush1.bf16.msra.mxu0 0
  %3141 = vmatprep.subr.bf16.mxu0 0
  %3142 = vmatpush1.bf16.msra.mxu0 0
  %3143 = vmatprep.subr.bf16.mxu0 0
  %3144 = vmatpush1.bf16.msra.mxu0 0
  %3145 = vmatprep.subr.bf16.mxu0 0
  %3146 = vmatpush1.bf16.msra.mxu0 0
  %3147 = vmatprep.subr.bf16.mxu0 0
  %3148 = vmatpush1.bf16.msra.mxu0 0
  %3149 = vmatprep.subr.bf16.mxu0 0
  %3150 = vmatpush1.bf16.msra.mxu0 0
  %3151 = vmatprep.subr.bf16.mxu0 0
  %3152 = vmatpush1.bf16.msra.mxu0 0
  %3153 = vmatprep.subr.bf16.mxu0 0
  %3154 = vmatpush1.bf16.msra.mxu0 0
  %3155 = vmatprep.subr.bf16.mxu0 0
  %3156 = vmatpush1.bf16.msra.mxu0 0
  %3157 = vmatprep.subr.bf16.mxu0 0
  %3158 = vmatpush1.bf16.msra.mxu0 0
  %3159 = vmatprep.mubr.bf16.mxu0 0
  %3160 = vmatmul.mubr.bf16.gmra.mrb[0].mxu0 %v3084
  %v3161 = vpop.f32.mrb[0].mxu0
  %v3162 = vadd.f32 0.0, %v3161
  %v3163 = vpop.f32.mrb[0].mxu0
  %v3164 = vpop.f32.mrb[0].mxu0
  %v3165 = vpop.f32.mrb[0].mxu0
  %3166 = vdwg.mxu0
  %v3167 = vld [vmem:[%s2 + $0x18] sm:$0xff]
  %v3168 = vld [vmem:[%s2 + $0x20] sm:$0xf]
  %v3169 = vld [vmem:[%s2 + $0x24] sm:$0xff]
  %v3170 = vld [vmem:[%s2 + $0x2c] sm:$0xf]
  %v3175 = vunpack.c.l.b16 %v3167
  %v3176 = vunpack.c.h.b16 %v3167
  %v3177 = vunpack.c.l.b16 %v3168
  %v3178 = vunpack.c.l.b16 %v3169
  %v3179 = vunpack.c.h.b16 %v3169
  %v3180 = vunpack.c.l.b16 %v3170
  %v3181 = vpack.c.b16 %v3178, %v3175
  %v3182 = vpack.c.b16 %v3179, %v3176
  %v3183 = vpack.c.b16 %v3180, %v3177
  %3187 = vmatprep.subr.bf16.mxu0 %v3182
  %3188 = vmatpush1.bf16.msra.mxu0 %v3181
  %3189 = vmatprep.subr.bf16.mxu0 0
  %3190 = vmatpush1.bf16.msra.mxu0 0
  %3191 = vmatprep.subr.bf16.mxu0 0
  %3192 = vmatpush1.bf16.msra.mxu0 0
  %3193 = vmatprep.subr.bf16.mxu0 0
  %3194 = vmatpush1.bf16.msra.mxu0 0
  %3195 = vmatprep.subr.bf16.mxu0 0
  %3196 = vmatpush1.bf16.msra.mxu0 0
  %3197 = vmatprep.subr.bf16.mxu0 0
  %3198 = vmatpush1.bf16.msra.mxu0 0
  %3199 = vmatprep.subr.bf16.mxu0 0
  %3200 = vmatpush1.bf16.msra.mxu0 0
  %3201 = vmatprep.subr.bf16.mxu0 0
  %3202 = vmatpush1.bf16.msra.mxu0 0
  %3203 = vmatprep.subr.bf16.mxu0 0
  %3204 = vmatpush1.bf16.msra.mxu0 0
  %3205 = vmatprep.subr.bf16.mxu0 0
  %3206 = vmatpush1.bf16.msra.mxu0 0
  %3207 = vmatprep.subr.bf16.mxu0 0
  %3208 = vmatpush1.bf16.msra.mxu0 0
  %3209 = vmatprep.subr.bf16.mxu0 0
  %3210 = vmatpush1.bf16.msra.mxu0 0
  %3211 = vmatprep.subr.bf16.mxu0 0
  %3212 = vmatpush1.bf16.msra.mxu0 0
  %3213 = vmatprep.subr.bf16.mxu0 0
  %3214 = vmatpush1.bf16.msra.mxu0 0
  %3215 = vmatprep.subr.bf16.mxu0 0
  %3216 = vmatpush1.bf16.msra.mxu0 0
  %3217 = vmatprep.subr.bf16.mxu0 0
  %3218 = vmatpush1.bf16.msra.mxu0 0
  %3219 = vmatprep.mubr.bf16.mxu0 0
  %3220 = vmatmul.mubr.bf16.gmra.mrb[0].mxu0 %v3084
  %v3221 = vpop.f32.mrb[0].mxu0
  %v3222 = vadd.f32 0.0, %v3221
  %v3223 = vpop.f32.mrb[0].mxu0
  %v3224 = vadd.f32 0.0, %v3223
  %v3225 = vpop.f32.mrb[0].mxu0
  %v3226 = vpop.f32.mrb[0].mxu0
  %3227 = vdwg.mxu0
  %3228 = vmatprep.subr.bf16.mxu0 0
  %3229 = vmatpush1.bf16.msra.mxu0 %v3183
  %3230 = vmatprep.subr.bf16.mxu0 0
  %3231 = vmatpush1.bf16.msra.mxu0 0
  %3232 = vmatprep.subr.bf16.mxu0 0
  %3233 = vmatpush1.bf16.msra.mxu0 0
  %3234 = vmatprep.subr.bf16.mxu0 0
  %3235 = vmatpush1.bf16.msra.mxu0 0
  %3236 = vmatprep.subr.bf16.mxu0 0
  %3237 = vmatpush1.bf16.msra.mxu0 0
  %3238 = vmatprep.subr.bf16.mxu0 0
  %3239 = vmatpush1.bf16.msra.mxu0 0
  %3240 = vmatprep.subr.bf16.mxu0 0
  %3241 = vmatpush1.bf16.msra.mxu0 0
  %3242 = vmatprep.subr.bf16.mxu0 0
  %3243 = vmatpush1.bf16.msra.mxu0 0
  %3244 = vmatprep.subr.bf16.mxu0 0
  %3245 = vmatpush1.bf16.msra.mxu0 0
  %3246 = vmatprep.subr.bf16.mxu0 0
  %3247 = vmatpush1.bf16.msra.mxu0 0
  %3248 = vmatprep.subr.bf16.mxu0 0
  %3249 = vmatpush1.bf16.msra.mxu0 0
  %3250 = vmatprep.subr.bf16.mxu0 0
  %3251 = vmatpush1.bf16.msra.mxu0 0
  %3252 = vmatprep.subr.bf16.mxu0 0
  %3253 = vmatpush1.bf16.msra.mxu0 0
  %3254 = vmatprep.subr.bf16.mxu0 0
  %3255 = vmatpush1.bf16.msra.mxu0 0
  %3256 = vmatprep.subr.bf16.mxu0 0
  %3257 = vmatpush1.bf16.msra.mxu0 0
  %3258 = vmatprep.subr.bf16.mxu0 0
  %3259 = vmatpush1.bf16.msra.mxu0 0
  %3260 = vmatprep.mubr.bf16.mxu0 0
  %3261 = vmatmul.mubr.bf16.gmra.mrb[0].mxu0 %v3084
  %v3262 = vpop.f32.mrb[0].mxu0
  %v3263 = vadd.f32 0.0, %v3262
  %v3264 = vpop.f32.mrb[0].mxu0
  %v3265 = vpop.f32.mrb[0].mxu0
  %v3266 = vpop.f32.mrb[0].mxu0
  %3267 = vdwg.mxu0
  %v3268 = vlaneseq
  %v3269 = vshrl.u32 %v3268, 7
  %vm3270 = vcmp.eq.s32.totalorder %v3269, 1
  %v3271 = vlaneseq
  %v3272 = vshrl.u32 %v3271, 7
  %v3273 = vsub.s32 0, %v3272
  %v3274 = vrot.slane %v3222, %v3273
  %v3275 = vlaneseq
  %v3276 = vshrl.u32 %v3275, 7
  %v3277 = vsub.s32 0, %v3276
  %v3278 = vrot.slane %v3224, %v3277
  %v3279 = vlaneseq
  %v3280 = vshrl.u32 %v3279, 7
  %v3281 = vsub.s32 0, %v3280
  %v3282 = vrot.slane %v3263, %v3281
  %v3283 = vlaneseq
  %v3284 = vshrl.u32 %v3283, 7
  %v3285 = vsub.s32 0, %v3284
  %v3286 = vrot.slane %v3121, %v3285
  %v3287 = vlaneseq
  %v3288 = vshrl.u32 %v3287, 7
  %v3289 = vsub.s32 0, %v3288
  %v3290 = vrot.slane %v3123, %v3289
  %v3291 = vlaneseq
  %v3292 = vshrl.u32 %v3291, 7
  %v3293 = vsub.s32 0, %v3292
  %v3294 = vrot.slane %v3162, %v3293
  %v3295 = vsel %vm3270, %v3274, %v3286
  %v3296 = vsel %vm3270, %v3278, %v3290
  %v3297 = vsel %vm3270, %v3282, %v3294
  %v3298 = vmax.f32 %v3295, 0.0
  %v3299 = vmax.f32 %v3296, 0.0
  %v3300 = vmax.f32 %v3297, 0.0
  %v3301 = vld [vmem:[%s2 + $0x30] sm:$0xff]
  %v3302 = vld [vmem:[%s2 + $0x38] sm:$0xf]
  %v3303 = vld [vmem:[%s2 + $0x3c] sm:$0xff]
  %v3304 = vld [vmem:[%s2 + $0x44] sm:$0xf]
  %v3305 = vld [vmem:[%s2 + $0x48] sm:$0xff]
  %v3306 = vld [vmem:[%s2 + $0x50] sm:$0xf]
  %v3307 = vld [vmem:[%s2 + $0x54] sm:$0xff]
  %v3308 = vld [vmem:[%s2 + $0x5c] sm:$0xf]
  %v3309 = vld [vmem:[%s2 + $0x60] sm:$0xff]
  %v3310 = vld [vmem:[%s2 + $0x68] sm:$0xf]
  %v3311 = vld [vmem:[%s2 + $0x6c] sm:$0xff]
  %v3312 = vld [vmem:[%s2 + $0x74] sm:$0xf]
  %v3313 = vld [vmem:[%s2 + $0x78] sm:$0xff]
  %v3314 = vld [vmem:[%s2 + $0x80] sm:$0xf]
  %v3315 = vld [vmem:[%s2 + $0x84] sm:$0xff]
  %v3316 = vld [vmem:[%s2 + $0x8c] sm:$0xf]
  %v3317 = vld [vmem:[%s2 + $0x90] sm:$0xff]
  %v3318 = vld [vmem:[%s2 + $0x98] sm:$0xf]
  %v3319 = vld [vmem:[%s2 + $0x9c] sm:$0xff]
  %v3320 = vld [vmem:[%s2 + $0xa4] sm:$0xf]
  %v3321 = vld [vmem:[%s2 + $0xa8] sm:$0xff]
  %v3322 = vld [vmem:[%s2 + $0xb0] sm:$0xf]
  %v3323 = vld [vmem:[%s2 + $0xb4] sm:$0xff]
  %v3324 = vld [vmem:[%s2 + $0xbc] sm:$0xf]
  %v3325 = vld [vmem:[%s2 + $0xc0] sm:$0xff]
  %v3326 = vld [vmem:[%s2 + $0xc8] sm:$0xf]
  %v3327 = vld [vmem:[%s2 + $0xcc] sm:$0xff]
  %v3328 = vld [vmem:[%s2 + $0xd4] sm:$0xf]
  %v3329 = vld [vmem:[%s2 + $0xd8] sm:$0xff]
  %v3330 = vld [vmem:[%s2 + $0xe0] sm:$0xf]
  %v3331 = vld [vmem:[%s2 + $0xe4] sm:$0xff]
  %v3332 = vld [vmem:[%s2 + $0xec] sm:$0xf]
  %v3333 = vld [vmem:[%s2 + $0xf0] sm:$0xff]
  %v3334 = vld [vmem:[%s2 + $0xf8] sm:$0xf]
  %v3335 = vld [vmem:[%s2 + $0xfc] sm:$0xff]
  %v3336 = vld [vmem:[%s2 + $0x104] sm:$0xf]
  %v3337 = vld [vmem:[%s2 + $0x108] sm:$0xff]
  %v3338 = vld [vmem:[%s2 + $0x110] sm:$0xf]
  %v3339 = vld [vmem:[%s2 + $0x114] sm:$0xff]
  %v3340 = vld [vmem:[%s2 + $0x11c] sm:$0xf]
  %v3341 = vld [vmem:[%s2 + $0x120] sm:$0xff]
  %v3342 = vld [vmem:[%s2 + $0x128] sm:$0xf]
  %v3343 = vld [vmem:[%s2 + $0x12c] sm:$0xff]
  %v3344 = vld [vmem:[%s2 + $0x134] sm:$0xf]
  %v3345 = vld [vmem:[%s2 + $0x138] sm:$0xff]
  %v3346 = vld [vmem:[%s2 + $0x140] sm:$0xf]
  %v3347 = vld [vmem:[%s2 + $0x144] sm:$0xff]
  %v3348 = vld [vmem:[%s2 + $0x14c] sm:$0xf]
  %v3349 = vld [vmem:[%s2 + $0x150] sm:$0xff]
  %v3350 = vld [vmem:[%s2 + $0x158] sm:$0xf]
  %v3351 = vld [vmem:[%s2 + $0x15c] sm:$0xff]
  %v3352 = vld [vmem:[%s2 + $0x164] sm:$0xf]
  %v3353 = vld [vmem:[%s2 + $0x168] sm:$0xff]
  %v3354 = vld [vmem:[%s2 + $0x170] sm:$0xf]
  %v3355 = vld [vmem:[%s2 + $0x174] sm:$0xff]
  %v3356 = vld [vmem:[%s2 + $0x17c] sm:$0xf]
  %v3357 = vld [vmem:[%s2 + $0x180] sm:$0xff]
  %v3358 = vld [vmem:[%s2 + $0x188] sm:$0xf]
  %v3359 = vld [vmem:[%s2 + $0x18c] sm:$0xff]
  %v3360 = vld [vmem:[%s2 + $0x194] sm:$0xf]
  %v3361 = vld [vmem:[%s2 + $0x198] sm:$0xff]
  %v3362 = vld [vmem:[%s2 + $0x1a0] sm:$0xf]
  %v3363 = vld [vmem:[%s2 + $0x1a4] sm:$0xff]
  %v3364 = vld [vmem:[%s2 + $0x1ac] sm:$0xf]
  %v3365 = vld [vmem:[%s2 + $0x1b0] sm:$0xff]
  %v3366 = vld [vmem:[%s2 + $0x1b8] sm:$0xf]
  %v3367 = vld [vmem:[%s2 + $0x1bc] sm:$0xff]
  %v3368 = vld [vmem:[%s2 + $0x1c4] sm:$0xf]
  %v3369 = vld [vmem:[%s2 + $0x1c8] sm:$0xff]
  %v3370 = vld [vmem:[%s2 + $0x1d0] sm:$0xf]
  %v3371 = vld [vmem:[%s2 + $0x1d4] sm:$0xff]
  %v3372 = vld [vmem:[%s2 + $0x1dc] sm:$0xf]
  %v3373 = vld [vmem:[%s2 + $0x1e0] sm:$0xff]
  %v3374 = vld [vmem:[%s2 + $0x1e8] sm:$0xf]
  %v3375 = vld [vmem:[%s2 + $0x1ec] sm:$0xff]
  %v3376 = vld [vmem:[%s2 + $0x1f4] sm:$0xf]
  %v3377 = vpack.c.bf16 %v3298, %v3298
  %v3378 = vpack.c.bf16 %v3299, %v3299
  %v3379 = vpack.c.bf16 %v3300, %v3300
  %v3456 = vunpack.c.l.b16 %v3301
  %v3457 = vunpack.c.h.b16 %v3301
  %v3458 = vunpack.c.l.b16 %v3302
  %v3459 = vunpack.c.l.b16 %v3303
  %v3460 = vunpack.c.h.b16 %v3303
  %v3461 = vunpack.c.l.b16 %v3304
  %v3462 = vunpack.c.l.b16 %v3305
  %v3463 = vunpack.c.h.b16 %v3305
  %v3464 = vunpack.c.l.b16 %v3306
  %v3465 = vunpack.c.l.b16 %v3307
  %v3466 = vunpack.c.h.b16 %v3307
  %v3467 = vunpack.c.l.b16 %v3308
  %v3468 = vunpack.c.l.b16 %v3309
  %v3469 = vunpack.c.h.b16 %v3309
  %v3470 = vunpack.c.l.b16 %v3310
  %v3471 = vunpack.c.l.b16 %v3311
  %v3472 = vunpack.c.h.b16 %v3311
  %v3473 = vunpack.c.l.b16 %v3312
  %v3474 = vunpack.c.l.b16 %v3313
  %v3475 = vunpack.c.h.b16 %v3313
  %v3476 = vunpack.c.l.b16 %v3314
  %v3477 = vunpack.c.l.b16 %v3315
  %v3478 = vunpack.c.h.b16 %v3315
  %v3479 = vunpack.c.l.b16 %v3316
  %v3480 = vunpack.c.l.b16 %v3317
  %v3481 = vunpack.c.h.b16 %v3317
  %v3482 = vunpack.c.l.b16 %v3318
  %v3483 = vunpack.c.l.b16 %v3319
  %v3484 = vunpack.c.h.b16 %v3319
  %v3485 = vunpack.c.l.b16 %v3320
  %v3486 = vunpack.c.l.b16 %v3321
  %v3487 = vunpack.c.h.b16 %v3321
  %v3488 = vunpack.c.l.b16 %v3322
  %v3489 = vunpack.c.l.b16 %v3323
  %v3490 = vunpack.c.h.b16 %v3323
  %v3491 = vunpack.c.l.b16 %v3324
  %v3492 = vunpack.c.l.b16 %v3325
  %v3493 = vunpack.c.h.b16 %v3325
  %v3494 = vunpack.c.l.b16 %v3326
  %v3495 = vunpack.c.l.b16 %v3327
  %v3496 = vunpack.c.h.b16 %v3327
  %v3497 = vunpack.c.l.b16 %v3328
  %v3498 = vunpack.c.l.b16 %v3329
  %v3499 = vunpack.c.h.b16 %v3329
  %v3500 = vunpack.c.l.b16 %v3330
  %v3501 = vunpack.c.l.b16 %v3331
  %v3502 = vunpack.c.h.b16 %v3331
  %v3503 = vunpack.c.l.b16 %v3332
  %v3504 = vunpack.c.l.b16 %v3333
  %v3505 = vunpack.c.h.b16 %v3333
  %v3506 = vunpack.c.l.b16 %v3334
  %v3507 = vunpack.c.l.b16 %v3335
  %v3508 = vunpack.c.h.b16 %v3335
  %v3509 = vunpack.c.l.b16 %v3336
  %v3510 = vunpack.c.l.b16 %v3337
  %v3511 = vunpack.c.h.b16 %v3337
  %v3512 = vunpack.c.l.b16 %v3338
  %v3513 = vunpack.c.l.b16 %v3339
  %v3514 = vunpack.c.h.b16 %v3339
  %v3515 = vunpack.c.l.b16 %v3340
  %v3516 = vunpack.c.l.b16 %v3341
  %v3517 = vunpack.c.h.b16 %v3341
  %v3518 = vunpack.c.l.b16 %v3342
  %v3519 = vunpack.c.l.b16 %v3343
  %v3520 = vunpack.c.h.b16 %v3343
  %v3521 = vunpack.c.l.b16 %v3344
  %v3522 = vunpack.c.l.b16 %v3345
  %v3523 = vunpack.c.h.b16 %v3345
  %v3524 = vunpack.c.l.b16 %v3346
  %v3525 = vunpack.c.l.b16 %v3347
  %v3526 = vunpack.c.h.b16 %v3347
  %v3527 = vunpack.c.l.b16 %v3348
  %v3528 = vunpack.c.l.b16 %v3349
  %v3529 = vunpack.c.h.b16 %v3349
  %v3530 = vunpack.c.l.b16 %v3350
  %v3531 = vunpack.c.l.b16 %v3351
  %v3532 = vunpack.c.h.b16 %v3351
  %v3533 = vunpack.c.l.b16 %v3352
  %v3534 = vunpack.c.l.b16 %v3353
  %v3535 = vunpack.c.h.b16 %v3353
  %v3536 = vunpack.c.l.b16 %v3354
  %v3537 = vunpack.c.l.b16 %v3355
  %v3538 = vunpack.c.h.b16 %v3355
  %v3539 = vunpack.c.l.b16 %v3356
  %v3540 = vunpack.c.l.b16 %v3357
  %v3541 = vunpack.c.h.b16 %v3357
  %v3542 = vunpack.c.l.b16 %v3358
  %v3543 = vunpack.c.l.b16 %v3359
  %v3544 = vunpack.c.h.b16 %v3359
  %v3545 = vunpack.c.l.b16 %v3360
  %v3546 = vunpack.c.l.b16 %v3361
  %v3547 = vunpack.c.h.b16 %v3361
  %v3548 = vunpack.c.l.b16 %v3362
  %v3549 = vunpack.c.l.b16 %v3363
  %v3550 = vunpack.c.h.b16 %v3363
  %v3551 = vunpack.c.l.b16 %v3364
  %v3552 = vunpack.c.l.b16 %v3365
  %v3553 = vunpack.c.h.b16 %v3365
  %v3554 = vunpack.c.l.b16 %v3366
  %v3555 = vunpack.c.l.b16 %v3367
  %v3556 = vunpack.c.h.b16 %v3367
  %v3557 = vunpack.c.l.b16 %v3368
  %v3558 = vunpack.c.l.b16 %v3369
  %v3559 = vunpack.c.h.b16 %v3369
  %v3560 = vunpack.c.l.b16 %v3370
  %v3561 = vunpack.c.l.b16 %v3371
  %v3562 = vunpack.c.h.b16 %v3371
  %v3563 = vunpack.c.l.b16 %v3372
  %v3564 = vunpack.c.l.b16 %v3373
  %v3565 = vunpack.c.h.b16 %v3373
  %v3566 = vunpack.c.l.b16 %v3374
  %v3567 = vunpack.c.l.b16 %v3375
  %v3568 = vunpack.c.h.b16 %v3375
  %v3569 = vunpack.c.l.b16 %v3376
  %v3570 = vpack.c.b16 %v3459, %v3456
  %v3571 = vpack.c.b16 %v3460, %v3457
  %v3572 = vpack.c.b16 %v3461, %v3458
  %v3573 = vpack.c.b16 %v3465, %v3462
  %v3574 = vpack.c.b16 %v3466, %v3463
  %v3575 = vpack.c.b16 %v3467, %v3464
  %v3576 = vpack.c.b16 %v3471, %v3468
  %v3577 = vpack.c.b16 %v3472, %v3469
  %v3578 = vpack.c.b16 %v3473, %v3470
  %v3579 = vpack.c.b16 %v3477, %v3474
  %v3580 = vpack.c.b16 %v3478, %v3475
  %v3581 = vpack.c.b16 %v3479, %v3476
  %v3582 = vpack.c.b16 %v3483, %v3480
  %v3583 = vpack.c.b16 %v3484, %v3481
  %v3584 = vpack.c.b16 %v3485, %v3482
  %v3585 = vpack.c.b16 %v3489, %v3486
  %v3586 = vpack.c.b16 %v3490, %v3487
  %v3587 = vpack.c.b16 %v3491, %v3488
  %v3588 = vpack.c.b16 %v3495, %v3492
  %v3589 = vpack.c.b16 %v3496, %v3493
  %v3590 = vpack.c.b16 %v3497, %v3494
  %v3591 = vpack.c.b16 %v3501, %v3498
  %v3592 = vpack.c.b16 %v3502, %v3499
  %v3593 = vpack.c.b16 %v3503, %v3500
  %v3594 = vpack.c.b16 %v3507, %v3504
  %v3595 = vpack.c.b16 %v3508, %v3505
  %v3596 = vpack.c.b16 %v3509, %v3506
  %v3597 = vpack.c.b16 %v3513, %v3510
  %v3598 = vpack.c.b16 %v3514, %v3511
  %v3599 = vpack.c.b16 %v3515, %v3512
  %v3600 = vpack.c.b16 %v3519, %v3516
  %v3601 = vpack.c.b16 %v3520, %v3517
  %v3602 = vpack.c.b16 %v3521, %v3518
  %v3603 = vpack.c.b16 %v3525, %v3522
  %v3604 = vpack.c.b16 %v3526, %v3523
  %v3605 = vpack.c.b16 %v3527, %v3524
  %v3606 = vpack.c.b16 %v3531, %v3528
  %v3607 = vpack.c.b16 %v3532, %v3529
  %v3608 = vpack.c.b16 %v3533, %v3530
  %v3609 = vpack.c.b16 %v3537, %v3534
  %v3610 = vpack.c.b16 %v3538, %v3535
  %v3611 = vpack.c.b16 %v3539, %v3536
  %v3612 = vpack.c.b16 %v3543, %v3540
  %v3613 = vpack.c.b16 %v3544, %v3541
  %v3614 = vpack.c.b16 %v3545, %v3542
  %v3615 = vpack.c.b16 %v3549, %v3546
  %v3616 = vpack.c.b16 %v3550, %v3547
  %v3617 = vpack.c.b16 %v3551, %v3548
  %v3618 = vpack.c.b16 %v3555, %v3552
  %v3619 = vpack.c.b16 %v3556, %v3553
  %v3620 = vpack.c.b16 %v3557, %v3554
  %v3621 = vpack.c.b16 %v3561, %v3558
  %v3622 = vpack.c.b16 %v3562, %v3559
  %v3623 = vpack.c.b16 %v3563, %v3560
  %v3624 = vpack.c.b16 %v3567, %v3564
  %v3625 = vpack.c.b16 %v3568, %v3565
  %v3626 = vpack.c.b16 %v3569, %v3566
  %vm3684 = vcmask 392192
  %v3686 = vsel %vm3684, %v3379, 0
  %3688 = vmatprep.subr.bf16.mxu0 %v3571
  %3689 = vmatpush1.bf16.msra.mxu0 %v3570
  %3690 = vmatprep.subr.bf16.mxu0 %v3574
  %3691 = vmatpush1.bf16.msra.mxu0 %v3573
  %3692 = vmatprep.subr.bf16.mxu0 %v3577
  %3693 = vmatpush1.bf16.msra.mxu0 %v3576
  %3694 = vmatprep.subr.bf16.mxu0 %v3580
  %3695 = vmatpush1.bf16.msra.mxu0 %v3579
  %3696 = vmatprep.subr.bf16.mxu0 %v3583
  %3697 = vmatpush1.bf16.msra.mxu0 %v3582
  %3698 = vmatprep.subr.bf16.mxu0 %v3586
  %3699 = vmatpush1.bf16.msra.mxu0 %v3585
  %3700 = vmatprep.subr.bf16.mxu0 %v3589
  %3701 = vmatpush1.bf16.msra.mxu0 %v3588
  %3702 = vmatprep.subr.bf16.mxu0 %v3592
  %3703 = vmatpush1.bf16.msra.mxu0 %v3591
  %3704 = vmatprep.subr.bf16.mxu0 %v3595
  %3705 = vmatpush1.bf16.msra.mxu0 %v3594
  %3706 = vmatprep.subr.bf16.mxu0 %v3598
  %3707 = vmatpush1.bf16.msra.mxu0 %v3597
  %3708 = vmatprep.subr.bf16.mxu0 %v3601
  %3709 = vmatpush1.bf16.msra.mxu0 %v3600
  %3710 = vmatprep.subr.bf16.mxu0 %v3604
  %3711 = vmatpush1.bf16.msra.mxu0 %v3603
  %3712 = vmatprep.subr.bf16.mxu0 %v3607
  %3713 = vmatpush1.bf16.msra.mxu0 %v3606
  %3714 = vmatprep.subr.bf16.mxu0 %v3610
  %3715 = vmatpush1.bf16.msra.mxu0 %v3609
  %3716 = vmatprep.subr.bf16.mxu0 %v3613
  %3717 = vmatpush1.bf16.msra.mxu0 %v3612
  %3718 = vmatprep.subr.bf16.mxu0 %v3616
  %3719 = vmatpush1.bf16.msra.mxu0 %v3615
  %3720 = vmatprep.mubr.bf16.mxu0 %v3378
  %3721 = vmatmul.mubr.bf16.gmra.mrb[0].mxu0 %v3377
  %v3722 = vpop.f32.mrb[0].mxu0
  %v3723 = vadd.f32 0.0, %v3722
  %v3724 = vpop.f32.mrb[0].mxu0
  %v3725 = vadd.f32 0.0, %v3724
  %v3726 = vpop.f32.mrb[0].mxu0
  %v3727 = vpop.f32.mrb[0].mxu0
  %3728 = vdwg.mxu0
  %3729 = vmatprep.subr.bf16.mxu0 %v3619
  %3730 = vmatpush1.bf16.msra.mxu0 %v3618
  %3731 = vmatprep.subr.bf16.mxu0 %v3622
  %3732 = vmatpush1.bf16.msra.mxu0 %v3621
  %3733 = vmatprep.subr.bf16.mxu0 %v3625
  %3734 = vmatpush1.bf16.msra.mxu0 %v3624
  %3735 = vmatprep.subr.bf16.mxu0 0
  %3736 = vmatpush1.bf16.msra.mxu0 0
  %3737 = vmatprep.subr.bf16.mxu0 0
  %3738 = vmatpush1.bf16.msra.mxu0 0
  %3739 = vmatprep.subr.bf16.mxu0 0
  %3740 = vmatpush1.bf16.msra.mxu0 0
  %3741 = vmatprep.subr.bf16.mxu0 0
  %3742 = vmatpush1.bf16.msra.mxu0 0
  %3743 = vmatprep.subr.bf16.mxu0 0
  %3744 = vmatpush1.bf16.msra.mxu0 0
  %3745 = vmatprep.subr.bf16.mxu0 0
  %3746 = vmatpush1.bf16.msra.mxu0 0
  %3747 = vmatprep.subr.bf16.mxu0 0
  %3748 = vmatpush1.bf16.msra.mxu0 0
  %3749 = vmatprep.subr.bf16.mxu0 0
  %3750 = vmatpush1.bf16.msra.mxu0 0
  %3751 = vmatprep.subr.bf16.mxu0 0
  %3752 = vmatpush1.bf16.msra.mxu0 0
  %3753 = vmatprep.subr.bf16.mxu0 0
  %3754 = vmatpush1.bf16.msra.mxu0 0
  %3755 = vmatprep.subr.bf16.mxu0 0
  %3756 = vmatpush1.bf16.msra.mxu0 0
  %3757 = vmatprep.subr.bf16.mxu0 0
  %3758 = vmatpush1.bf16.msra.mxu0 0
  %3759 = vmatprep.subr.bf16.mxu0 0
  %3760 = vmatpush1.bf16.msra.mxu0 0
  %3761 = vmatprep.mubr.bf16.mxu0 0
  %3762 = vmatmul.mubr.bf16.gmra.mrb[0].mxu0 %v3686
  %v3763 = vpop.f32.mrb[0].mxu0
  %v3764 = vadd.f32 %v3723, %v3763
  %v3765 = vpop.f32.mrb[0].mxu0
  %v3766 = vadd.f32 %v3725, %v3765
  %v3767 = vpop.f32.mrb[0].mxu0
  %v3768 = vpop.f32.mrb[0].mxu0
  %3769 = vdwg.mxu0
  %3770 = vmatprep.subr.bf16.mxu0 0
  %3771 = vmatpush1.bf16.msra.mxu0 %v3572
  %3772 = vmatprep.subr.bf16.mxu0 0
  %3773 = vmatpush1.bf16.msra.mxu0 %v3575
  %3774 = vmatprep.subr.bf16.mxu0 0
  %3775 = vmatpush1.bf16.msra.mxu0 %v3578
  %3776 = vmatprep.subr.bf16.mxu0 0
  %3777 = vmatpush1.bf16.msra.mxu0 %v3581
  %3778 = vmatprep.subr.bf16.mxu0 0
  %3779 = vmatpush1.bf16.msra.mxu0 %v3584
  %3780 = vmatprep.subr.bf16.mxu0 0
  %3781 = vmatpush1.bf16.msra.mxu0 %v3587
  %3782 = vmatprep.subr.bf16.mxu0 0
  %3783 = vmatpush1.bf16.msra.mxu0 %v3590
  %3784 = vmatprep.subr.bf16.mxu0 0
  %3785 = vmatpush1.bf16.msra.mxu0 %v3593
  %3786 = vmatprep.subr.bf16.mxu0 0
  %3787 = vmatpush1.bf16.msra.mxu0 %v3596
  %3788 = vmatprep.subr.bf16.mxu0 0
  %3789 = vmatpush1.bf16.msra.mxu0 %v3599
  %3790 = vmatprep.subr.bf16.mxu0 0
  %3791 = vmatpush1.bf16.msra.mxu0 %v3602
  %3792 = vmatprep.subr.bf16.mxu0 0
  %3793 = vmatpush1.bf16.msra.mxu0 %v3605
  %3794 = vmatprep.subr.bf16.mxu0 0
  %3795 = vmatpush1.bf16.msra.mxu0 %v3608
  %3796 = vmatprep.subr.bf16.mxu0 0
  %3797 = vmatpush1.bf16.msra.mxu0 %v3611
  %3798 = vmatprep.subr.bf16.mxu0 0
  %3799 = vmatpush1.bf16.msra.mxu0 %v3614
  %3800 = vmatprep.subr.bf16.mxu0 0
  %3801 = vmatpush1.bf16.msra.mxu0 %v3617
  %3802 = vmatprep.mubr.bf16.mxu0 %v3378
  %3803 = vmatmul.mubr.bf16.gmra.mrb[0].mxu0 %v3377
  %v3804 = vpop.f32.mrb[0].mxu0
  %v3805 = vadd.f32 0.0, %v3804
  %v3806 = vpop.f32.mrb[0].mxu0
  %v3807 = vpop.f32.mrb[0].mxu0
  %v3808 = vpop.f32.mrb[0].mxu0
  %3809 = vdwg.mxu0
  %3810 = vmatprep.subr.bf16.mxu0 0
  %3811 = vmatpush1.bf16.msra.mxu0 %v3620
  %3812 = vmatprep.subr.bf16.mxu0 0
  %3813 = vmatpush1.bf16.msra.mxu0 %v3623
  %3814 = vmatprep.subr.bf16.mxu0 0
  %3815 = vmatpush1.bf16.msra.mxu0 %v3626
  %3816 = vmatprep.subr.bf16.mxu0 0
  %3817 = vmatpush1.bf16.msra.mxu0 0
  %3818 = vmatprep.subr.bf16.mxu0 0
  %3819 = vmatpush1.bf16.msra.mxu0 0
  %3820 = vmatprep.subr.bf16.mxu0 0
  %3821 = vmatpush1.bf16.msra.mxu0 0
  %3822 = vmatprep.subr.bf16.mxu0 0
  %3823 = vmatpush1.bf16.msra.mxu0 0
  %3824 = vmatprep.subr.bf16.mxu0 0
  %3825 = vmatpush1.bf16.msra.mxu0 0
  %3826 = vmatprep.subr.bf16.mxu0 0
  %3827 = vmatpush1.bf16.msra.mxu0 0
  %3828 = vmatprep.subr.bf16.mxu0 0
  %3829 = vmatpush1.bf16.msra.mxu0 0
  %3830 = vmatprep.subr.bf16.mxu0 0
  %3831 = vmatpush1.bf16.msra.mxu0 0
  %3832 = vmatprep.subr.bf16.mxu0 0
  %3833 = vmatpush1.bf16.msra.mxu0 0
  %3834 = vmatprep.subr.bf16.mxu0 0
  %3835 = vmatpush1.bf16.msra.mxu0 0
  %3836 = vmatprep.subr.bf16.mxu0 0
  %3837 = vmatpush1.bf16.msra.mxu0 0
  %3838 = vmatprep.subr.bf16.mxu0 0
  %3839 = vmatpush1.bf16.msra.mxu0 0
  %3840 = vmatprep.subr.bf16.mxu0 0
  %3841 = vmatpush1.bf16.msra.mxu0 0
  %3842 = vmatprep.mubr.bf16.mxu0 0
  %3843 = vmatmul.mubr.bf16.gmra.mrb[0].mxu0 %v3686
  %v3844 = vpop.f32.mrb[0].mxu0
  %v3845 = vadd.f32 %v3805, %v3844
  %v3846 = vpop.f32.mrb[0].mxu0
  %v3847 = vpop.f32.mrb[0].mxu0
  %v3848 = vpop.f32.mrb[0].mxu0
  %3849 = vdwg.mxu0
  %v3850 = vmax.f32 %v3764, 0.0
  %v3851 = vmax.f32 %v3766, 0.0
  %v3852 = vmax.f32 %v3845, 0.0
  %v3853 = vld [vmem:[%s2 + $0x1f8] sm:$0xff]
  %v3854 = vld [vmem:[%s2 + $0x200] sm:$0xf]
  %v3855 = vld [vmem:[%s2 + $0x204] sm:$0xff]
  %v3856 = vld [vmem:[%s2 + $0x20c] sm:$0xf]
  %v3857 = vld [vmem:[%s2 + $0x210] sm:$0xff]
  %v3858 = vld [vmem:[%s2 + $0x218] sm:$0xf]
  %v3859 = vld [vmem:[%s2 + $0x21c] sm:$0xff]
  %v3860 = vld [vmem:[%s2 + $0x224] sm:$0xf]
  %v3861 = vld [vmem:[%s2 + $0x228] sm:$0xff]
  %v3862 = vld [vmem:[%s2 + $0x230] sm:$0xf]
  %v3863 = vld [vmem:[%s2 + $0x234] sm:$0xff]
  %v3864 = vld [vmem:[%s2 + $0x23c] sm:$0xf]
  %v3865 = vld [vmem:[%s2 + $0x240] sm:$0xff]
  %v3866 = vld [vmem:[%s2 + $0x248] sm:$0xf]
  %v3867 = vld [vmem:[%s2 + $0x24c] sm:$0xff]
  %v3868 = vld [vmem:[%s2 + $0x254] sm:$0xf]
  %v3869 = vld [vmem:[%s2 + $0x258] sm:$0xff]
  %v3870 = vld [vmem:[%s2 + $0x260] sm:$0xf]
  %v3871 = vld [vmem:[%s2 + $0x264] sm:$0xff]
  %v3872 = vld [vmem:[%s2 + $0x26c] sm:$0xf]
  %v3873 = vld [vmem:[%s2 + $0x270] sm:$0xff]
  %v3874 = vld [vmem:[%s2 + $0x278] sm:$0xf]
  %v3875 = vld [vmem:[%s2 + $0x27c] sm:$0xff]
  %v3876 = vld [vmem:[%s2 + $0x284] sm:$0xf]
  %v3877 = vld [vmem:[%s2 + $0x288] sm:$0xff]
  %v3878 = vld [vmem:[%s2 + $0x290] sm:$0xf]
  %v3879 = vld [vmem:[%s2 + $0x294] sm:$0xff]
  %v3880 = vld [vmem:[%s2 + $0x29c] sm:$0xf]
  %v3881 = vld [vmem:[%s2 + $0x2a0] sm:$0xff]
  %v3882 = vld [vmem:[%s2 + $0x2a8] sm:$0xf]
  %v3883 = vld [vmem:[%s2 + $0x2ac] sm:$0xff]
  %v3884 = vld [vmem:[%s2 + $0x2b4] sm:$0xf]
  %v3885 = vld [vmem:[%s2 + $0x2b8] sm:$0xff]
  %v3886 = vld [vmem:[%s2 + $0x2c0] sm:$0xf]
  %v3887 = vld [vmem:[%s2 + $0x2c4] sm:$0xff]
  %v3888 = vld [vmem:[%s2 + $0x2cc] sm:$0xf]
  %v3889 = vld [vmem:[%s2 + $0x2d0] sm:$0xff]
  %v3890 = vld [vmem:[%s2 + $0x2d8] sm:$0xf]
  %v3891 = vld [vmem:[%s2 + $0x2dc] sm:$0xff]
  %v3892 = vld [vmem:[%s2 + $0x2e4] sm:$0xf]
  %v3893 = vld [vmem:[%s2 + $0x2e8] sm:$0xff]
  %v3894 = vld [vmem:[%s2 + $0x2f0] sm:$0xf]
  %v3895 = vld [vmem:[%s2 + $0x2f4] sm:$0xff]
  %v3896 = vld [vmem:[%s2 + $0x2fc] sm:$0xf]
  %v3897 = vld [vmem:[%s2 + $0x300] sm:$0xff]
  %v3898 = vld [vmem:[%s2 + $0x308] sm:$0xf]
  %v3899 = vld [vmem:[%s2 + $0x30c] sm:$0xff]
  %v3900 = vld [vmem:[%s2 + $0x314] sm:$0xf]
  %v3901 = vld [vmem:[%s2 + $0x318] sm:$0xff]
  %v3902 = vld [vmem:[%s2 + $0x320] sm:$0xf]
  %v3903 = vld [vmem:[%s2 + $0x324] sm:$0xff]
  %v3904 = vld [vmem:[%s2 + $0x32c] sm:$0xf]
  %v3905 = vld [vmem:[%s2 + $0x330] sm:$0xff]
  %v3906 = vld [vmem:[%s2 + $0x338] sm:$0xf]
  %v3907 = vld [vmem:[%s2 + $0x33c] sm:$0xff]
  %v3908 = vld [vmem:[%s2 + $0x344] sm:$0xf]
  %v3909 = vld [vmem:[%s2 + $0x348] sm:$0xff]
  %v3910 = vld [vmem:[%s2 + $0x350] sm:$0xf]
  %v3911 = vld [vmem:[%s2 + $0x354] sm:$0xff]
  %v3912 = vld [vmem:[%s2 + $0x35c] sm:$0xf]
  %v3913 = vld [vmem:[%s2 + $0x360] sm:$0xff]
  %v3914 = vld [vmem:[%s2 + $0x368] sm:$0xf]
  %v3915 = vld [vmem:[%s2 + $0x36c] sm:$0xff]
  %v3916 = vld [vmem:[%s2 + $0x374] sm:$0xf]
  %v3917 = vld [vmem:[%s2 + $0x378] sm:$0xff]
  %v3918 = vld [vmem:[%s2 + $0x380] sm:$0xf]
  %v3919 = vld [vmem:[%s2 + $0x384] sm:$0xff]
  %v3920 = vld [vmem:[%s2 + $0x38c] sm:$0xf]
  %v3921 = vld [vmem:[%s2 + $0x390] sm:$0xff]
  %v3922 = vld [vmem:[%s2 + $0x398] sm:$0xf]
  %v3923 = vld [vmem:[%s2 + $0x39c] sm:$0xff]
  %v3924 = vld [vmem:[%s2 + $0x3a4] sm:$0xf]
  %v3925 = vld [vmem:[%s2 + $0x3a8] sm:$0xff]
  %v3926 = vld [vmem:[%s2 + $0x3b0] sm:$0xf]
  %v3927 = vld [vmem:[%s2 + $0x3b4] sm:$0xff]
  %v3928 = vld [vmem:[%s2 + $0x3bc] sm:$0xf]
  %v3929 = vpack.c.bf16 %v3850, %v3850
  %v3930 = vpack.c.bf16 %v3851, %v3851
  %v3931 = vpack.c.bf16 %v3852, %v3852
  %v4008 = vunpack.c.l.b16 %v3853
  %v4009 = vunpack.c.h.b16 %v3853
  %v4010 = vunpack.c.l.b16 %v3854
  %v4011 = vunpack.c.l.b16 %v3855
  %v4012 = vunpack.c.h.b16 %v3855
  %v4013 = vunpack.c.l.b16 %v3856
  %v4014 = vunpack.c.l.b16 %v3857
  %v4015 = vunpack.c.h.b16 %v3857
  %v4016 = vunpack.c.l.b16 %v3858
  %v4017 = vunpack.c.l.b16 %v3859
  %v4018 = vunpack.c.h.b16 %v3859
  %v4019 = vunpack.c.l.b16 %v3860
  %v4020 = vunpack.c.l.b16 %v3861
  %v4021 = vunpack.c.h.b16 %v3861
  %v4022 = vunpack.c.l.b16 %v3862
  %v4023 = vunpack.c.l.b16 %v3863
  %v4024 = vunpack.c.h.b16 %v3863
  %v4025 = vunpack.c.l.b16 %v3864
  %v4026 = vunpack.c.l.b16 %v3865
  %v4027 = vunpack.c.h.b16 %v3865
  %v4028 = vunpack.c.l.b16 %v3866
  %v4029 = vunpack.c.l.b16 %v3867
  %v4030 = vunpack.c.h.b16 %v3867
  %v4031 = vunpack.c.l.b16 %v3868
  %v4032 = vunpack.c.l.b16 %v3869
  %v4033 = vunpack.c.h.b16 %v3869
  %v4034 = vunpack.c.l.b16 %v3870
  %v4035 = vunpack.c.l.b16 %v3871
  %v4036 = vunpack.c.h.b16 %v3871
  %v4037 = vunpack.c.l.b16 %v3872
  %v4038 = vunpack.c.l.b16 %v3873
  %v4039 = vunpack.c.h.b16 %v3873
  %v4040 = vunpack.c.l.b16 %v3874
  %v4041 = vunpack.c.l.b16 %v3875
  %v4042 = vunpack.c.h.b16 %v3875
  %v4043 = vunpack.c.l.b16 %v3876
  %v4044 = vunpack.c.l.b16 %v3877
  %v4045 = vunpack.c.h.b16 %v3877
  %v4046 = vunpack.c.l.b16 %v3878
  %v4047 = vunpack.c.l.b16 %v3879
  %v4048 = vunpack.c.h.b16 %v3879
  %v4049 = vunpack.c.l.b16 %v3880
  %v4050 = vunpack.c.l.b16 %v3881
  %v4051 = vunpack.c.h.b16 %v3881
  %v4052 = vunpack.c.l.b16 %v3882
  %v4053 = vunpack.c.l.b16 %v3883
  %v4054 = vunpack.c.h.b16 %v3883
  %v4055 = vunpack.c.l.b16 %v3884
  %v4056 = vunpack.c.l.b16 %v3885
  %v4057 = vunpack.c.h.b16 %v3885
  %v4058 = vunpack.c.l.b16 %v3886
  %v4059 = vunpack.c.l.b16 %v3887
  %v4060 = vunpack.c.h.b16 %v3887
  %v4061 = vunpack.c.l.b16 %v3888
  %v4062 = vunpack.c.l.b16 %v3889
  %v4063 = vunpack.c.h.b16 %v3889
  %v4064 = vunpack.c.l.b16 %v3890
  %v4065 = vunpack.c.l.b16 %v3891
  %v4066 = vunpack.c.h.b16 %v3891
  %v4067 = vunpack.c.l.b16 %v3892
  %v4068 = vunpack.c.l.b16 %v3893
  %v4069 = vunpack.c.h.b16 %v3893
  %v4070 = vunpack.c.l.b16 %v3894
  %v4071 = vunpack.c.l.b16 %v3895
  %v4072 = vunpack.c.h.b16 %v3895
  %v4073 = vunpack.c.l.b16 %v3896
  %v4074 = vunpack.c.l.b16 %v3897
  %v4075 = vunpack.c.h.b16 %v3897
  %v4076 = vunpack.c.l.b16 %v3898
  %v4077 = vunpack.c.l.b16 %v3899
  %v4078 = vunpack.c.h.b16 %v3899
  %v4079 = vunpack.c.l.b16 %v3900
  %v4080 = vunpack.c.l.b16 %v3901
  %v4081 = vunpack.c.h.b16 %v3901
  %v4082 = vunpack.c.l.b16 %v3902
  %v4083 = vunpack.c.l.b16 %v3903
  %v4084 = vunpack.c.h.b16 %v3903
  %v4085 = vunpack.c.l.b16 %v3904
  %v4086 = vunpack.c.l.b16 %v3905
  %v4087 = vunpack.c.h.b16 %v3905
  %v4088 = vunpack.c.l.b16 %v3906
  %v4089 = vunpack.c.l.b16 %v3907
  %v4090 = vunpack.c.h.b16 %v3907
  %v4091 = vunpack.c.l.b16 %v3908
  %v4092 = vunpack.c.l.b16 %v3909
  %v4093 = vunpack.c.h.b16 %v3909
  %v4094 = vunpack.c.l.b16 %v3910
  %v4095 = vunpack.c.l.b16 %v3911
  %v4096 = vunpack.c.h.b16 %v3911
  %v4097 = vunpack.c.l.b16 %v3912
  %v4098 = vunpack.c.l.b16 %v3913
  %v4099 = vunpack.c.h.b16 %v3913
  %v4100 = vunpack.c.l.b16 %v3914
  %v4101 = vunpack.c.l.b16 %v3915
  %v4102 = vunpack.c.h.b16 %v3915
  %v4103 = vunpack.c.l.b16 %v3916
  %v4104 = vunpack.c.l.b16 %v3917
  %v4105 = vunpack.c.h.b16 %v3917
  %v4106 = vunpack.c.l.b16 %v3918
  %v4107 = vunpack.c.l.b16 %v3919
  %v4108 = vunpack.c.h.b16 %v3919
  %v4109 = vunpack.c.l.b16 %v3920
  %v4110 = vunpack.c.l.b16 %v3921
  %v4111 = vunpack.c.h.b16 %v3921
  %v4112 = vunpack.c.l.b16 %v3922
  %v4113 = vunpack.c.l.b16 %v3923
  %v4114 = vunpack.c.h.b16 %v3923
  %v4115 = vunpack.c.l.b16 %v3924
  %v4116 = vunpack.c.l.b16 %v3925
  %v4117 = vunpack.c.h.b16 %v3925
  %v4118 = vunpack.c.l.b16 %v3926
  %v4119 = vunpack.c.l.b16 %v3927
  %v4120 = vunpack.c.h.b16 %v3927
  %v4121 = vunpack.c.l.b16 %v3928
  %v4122 = vpack.c.b16 %v4011, %v4008
  %v4123 = vpack.c.b16 %v4012, %v4009
  %v4124 = vpack.c.b16 %v4013, %v4010
  %v4125 = vpack.c.b16 %v4017, %v4014
  %v4126 = vpack.c.b16 %v4018, %v4015
  %v4127 = vpack.c.b16 %v4019, %v4016
  %v4128 = vpack.c.b16 %v4023, %v4020
  %v4129 = vpack.c.b16 %v4024, %v4021
  %v4130 = vpack.c.b16 %v4025, %v4022
  %v4131 = vpack.c.b16 %v4029, %v4026
  %v4132 = vpack.c.b16 %v4030, %v4027
  %v4133 = vpack.c.b16 %v4031, %v4028
  %v4134 = vpack.c.b16 %v4035, %v4032
  %v4135 = vpack.c.b16 %v4036, %v4033
  %v4136 = vpack.c.b16 %v4037, %v4034
  %v4137 = vpack.c.b16 %v4041, %v4038
  %v4138 = vpack.c.b16 %v4042, %v4039
  %v4139 = vpack.c.b16 %v4043, %v4040
  %v4140 = vpack.c.b16 %v4047, %v4044
  %v4141 = vpack.c.b16 %v4048, %v4045
  %v4142 = vpack.c.b16 %v4049, %v4046
  %v4143 = vpack.c.b16 %v4053, %v4050
  %v4144 = vpack.c.b16 %v4054, %v4051
  %v4145 = vpack.c.b16 %v4055, %v4052
  %v4146 = vpack.c.b16 %v4059, %v4056
  %v4147 = vpack.c.b16 %v4060, %v4057
  %v4148 = vpack.c.b16 %v4061, %v4058
  %v4149 = vpack.c.b16 %v4065, %v4062
  %v4150 = vpack.c.b16 %v4066, %v4063
  %v4151 = vpack.c.b16 %v4067, %v4064
  %v4152 = vpack.c.b16 %v4071, %v4068
  %v4153 = vpack.c.b16 %v4072, %v4069
  %v4154 = vpack.c.b16 %v4073, %v4070
  %v4155 = vpack.c.b16 %v4077, %v4074
  %v4156 = vpack.c.b16 %v4078, %v4075
  %v4157 = vpack.c.b16 %v4079, %v4076
  %v4158 = vpack.c.b16 %v4083, %v4080
  %v4159 = vpack.c.b16 %v4084, %v4081
  %v4160 = vpack.c.b16 %v4085, %v4082
  %v4161 = vpack.c.b16 %v4089, %v4086
  %v4162 = vpack.c.b16 %v4090, %v4087
  %v4163 = vpack.c.b16 %v4091, %v4088
  %v4164 = vpack.c.b16 %v4095, %v4092
  %v4165 = vpack.c.b16 %v4096, %v4093
  %v4166 = vpack.c.b16 %v4097, %v4094
  %v4167 = vpack.c.b16 %v4101, %v4098
  %v4168 = vpack.c.b16 %v4102, %v4099
  %v4169 = vpack.c.b16 %v4103, %v4100
  %v4170 = vpack.c.b16 %v4107, %v4104
  %v4171 = vpack.c.b16 %v4108, %v4105
  %v4172 = vpack.c.b16 %v4109, %v4106
  %v4173 = vpack.c.b16 %v4113, %v4110
  %v4174 = vpack.c.b16 %v4114, %v4111
  %v4175 = vpack.c.b16 %v4115, %v4112
  %v4176 = vpack.c.b16 %v4119, %v4116
  %v4177 = vpack.c.b16 %v4120, %v4117
  %v4178 = vpack.c.b16 %v4121, %v4118
  %v4237 = vsel %vm3684, %v3931, 0
  %4239 = vmatprep.subr.bf16.mxu0 %v4123
  %4240 = vmatpush1.bf16.msra.mxu0 %v4122
  %4241 = vmatprep.subr.bf16.mxu0 %v4126
  %4242 = vmatpush1.bf16.msra.mxu0 %v4125
  %4243 = vmatprep.subr.bf16.mxu0 %v4129
  %4244 = vmatpush1.bf16.msra.mxu0 %v4128
  %4245 = vmatprep.subr.bf16.mxu0 %v4132
  %4246 = vmatpush1.bf16.msra.mxu0 %v4131
  %4247 = vmatprep.subr.bf16.mxu0 %v4135
  %4248 = vmatpush1.bf16.msra.mxu0 %v4134
  %4249 = vmatprep.subr.bf16.mxu0 %v4138
  %4250 = vmatpush1.bf16.msra.mxu0 %v4137
  %4251 = vmatprep.subr.bf16.mxu0 %v4141
  %4252 = vmatpush1.bf16.msra.mxu0 %v4140
  %4253 = vmatprep.subr.bf16.mxu0 %v4144
  %4254 = vmatpush1.bf16.msra.mxu0 %v4143
  %4255 = vmatprep.subr.bf16.mxu0 %v4147
  %4256 = vmatpush1.bf16.msra.mxu0 %v4146
  %4257 = vmatprep.subr.bf16.mxu0 %v4150
  %4258 = vmatpush1.bf16.msra.mxu0 %v4149
  %4259 = vmatprep.subr.bf16.mxu0 %v4153
  %4260 = vmatpush1.bf16.msra.mxu0 %v4152
  %4261 = vmatprep.subr.bf16.mxu0 %v4156
  %4262 = vmatpush1.bf16.msra.mxu0 %v4155
  %4263 = vmatprep.subr.bf16.mxu0 %v4159
  %4264 = vmatpush1.bf16.msra.mxu0 %v4158
  %4265 = vmatprep.subr.bf16.mxu0 %v4162
  %4266 = vmatpush1.bf16.msra.mxu0 %v4161
  %4267 = vmatprep.subr.bf16.mxu0 %v4165
  %4268 = vmatpush1.bf16.msra.mxu0 %v4164
  %4269 = vmatprep.subr.bf16.mxu0 %v4168
  %4270 = vmatpush1.bf16.msra.mxu0 %v4167
  %4271 = vmatprep.mubr.bf16.mxu0 %v3930
  %4272 = vmatmul.mubr.bf16.gmra.mrb[0].mxu0 %v3929
  %v4273 = vpop.f32.mrb[0].mxu0
  %v4274 = vadd.f32 0.0, %v4273
  %v4275 = vpop.f32.mrb[0].mxu0
  %v4276 = vadd.f32 0.0, %v4275
  %v4277 = vpop.f32.mrb[0].mxu0
  %v4278 = vpop.f32.mrb[0].mxu0
  %4279 = vdwg.mxu0
  %4280 = vmatprep.subr.bf16.mxu0 %v4171
  %4281 = vmatpush1.bf16.msra.mxu0 %v4170
  %4282 = vmatprep.subr.bf16.mxu0 %v4174
  %4283 = vmatpush1.bf16.msra.mxu0 %v4173
  %4284 = vmatprep.subr.bf16.mxu0 %v4177
  %4285 = vmatpush1.bf16.msra.mxu0 %v4176
  %4286 = vmatprep.subr.bf16.mxu0 0
  %4287 = vmatpush1.bf16.msra.mxu0 0
  %4288 = vmatprep.subr.bf16.mxu0 0
  %4289 = vmatpush1.bf16.msra.mxu0 0
  %4290 = vmatprep.subr.bf16.mxu0 0
  %4291 = vmatpush1.bf16.msra.mxu0 0
  %4292 = vmatprep.subr.bf16.mxu0 0
  %4293 = vmatpush1.bf16.msra.mxu0 0
  %4294 = vmatprep.subr.bf16.mxu0 0
  %4295 = vmatpush1.bf16.msra.mxu0 0
  %4296 = vmatprep.subr.bf16.mxu0 0
  %4297 = vmatpush1.bf16.msra.mxu0 0
  %4298 = vmatprep.subr.bf16.mxu0 0
  %4299 = vmatpush1.bf16.msra.mxu0 0
  %4300 = vmatprep.subr.bf16.mxu0 0
  %4301 = vmatpush1.bf16.msra.mxu0 0
  %4302 = vmatprep.subr.bf16.mxu0 0
  %4303 = vmatpush1.bf16.msra.mxu0 0
  %4304 = vmatprep.subr.bf16.mxu0 0
  %4305 = vmatpush1.bf16.msra.mxu0 0
  %4306 = vmatprep.subr.bf16.mxu0 0
  %4307 = vmatpush1.bf16.msra.mxu0 0
  %4308 = vmatprep.subr.bf16.mxu0 0
  %4309 = vmatpush1.bf16.msra.mxu0 0
  %4310 = vmatprep.subr.bf16.mxu0 0
  %4311 = vmatpush1.bf16.msra.mxu0 0
  %4312 = vmatprep.mubr.bf16.mxu0 0
  %4313 = vmatmul.mubr.bf16.gmra.mrb[0].mxu0 %v4237
  %v4314 = vpop.f32.mrb[0].mxu0
  %v4315 = vadd.f32 %v4274, %v4314
  %v4316 = vpop.f32.mrb[0].mxu0
  %v4317 = vadd.f32 %v4276, %v4316
  %v4318 = vpop.f32.mrb[0].mxu0
  %v4319 = vpop.f32.mrb[0].mxu0
  %4320 = vdwg.mxu0
  %4321 = vmatprep.subr.bf16.mxu0 0
  %4322 = vmatpush1.bf16.msra.mxu0 %v4124
  %4323 = vmatprep.subr.bf16.mxu0 0
  %4324 = vmatpush1.bf16.msra.mxu0 %v4127
  %4325 = vmatprep.subr.bf16.mxu0 0
  %4326 = vmatpush1.bf16.msra.mxu0 %v4130
  %4327 = vmatprep.subr.bf16.mxu0 0
  %4328 = vmatpush1.bf16.msra.mxu0 %v4133
  %4329 = vmatprep.subr.bf16.mxu0 0
  %4330 = vmatpush1.bf16.msra.mxu0 %v4136
  %4331 = vmatprep.subr.bf16.mxu0 0
  %4332 = vmatpush1.bf16.msra.mxu0 %v4139
  %4333 = vmatprep.subr.bf16.mxu0 0
  %4334 = vmatpush1.bf16.msra.mxu0 %v4142
  %4335 = vmatprep.subr.bf16.mxu0 0
  %4336 = vmatpush1.bf16.msra.mxu0 %v4145
  %4337 = vmatprep.subr.bf16.mxu0 0
  %4338 = vmatpush1.bf16.msra.mxu0 %v4148
  %4339 = vmatprep.subr.bf16.mxu0 0
  %4340 = vmatpush1.bf16.msra.mxu0 %v4151
  %4341 = vmatprep.subr.bf16.mxu0 0
  %4342 = vmatpush1.bf16.msra.mxu0 %v4154
  %4343 = vmatprep.subr.bf16.mxu0 0
  %4344 = vmatpush1.bf16.msra.mxu0 %v4157
  %4345 = vmatprep.subr.bf16.mxu0 0
  %4346 = vmatpush1.bf16.msra.mxu0 %v4160
  %4347 = vmatprep.subr.bf16.mxu0 0
  %4348 = vmatpush1.bf16.msra.mxu0 %v4163
  %4349 = vmatprep.subr.bf16.mxu0 0
  %4350 = vmatpush1.bf16.msra.mxu0 %v4166
  %4351 = vmatprep.subr.bf16.mxu0 0
  %4352 = vmatpush1.bf16.msra.mxu0 %v4169
  %4353 = vmatprep.mubr.bf16.mxu0 %v3930
  %4354 = vmatmul.mubr.bf16.gmra.mrb[0].mxu0 %v3929
  %v4355 = vpop.f32.mrb[0].mxu0
  %v4356 = vadd.f32 0.0, %v4355
  %v4357 = vpop.f32.mrb[0].mxu0
  %v4358 = vpop.f32.mrb[0].mxu0
  %v4359 = vpop.f32.mrb[0].mxu0
  %4360 = vdwg.mxu0
  %4361 = vmatprep.subr.bf16.mxu0 0
  %4362 = vmatpush1.bf16.msra.mxu0 %v4172
  %4363 = vmatprep.subr.bf16.mxu0 0
  %4364 = vmatpush1.bf16.msra.mxu0 %v4175
  %4365 = vmatprep.subr.bf16.mxu0 0
  %4366 = vmatpush1.bf16.msra.mxu0 %v4178
  %4367 = vmatprep.subr.bf16.mxu0 0
  %4368 = vmatpush1.bf16.msra.mxu0 0
  %4369 = vmatprep.subr.bf16.mxu0 0
  %4370 = vmatpush1.bf16.msra.mxu0 0
  %4371 = vmatprep.subr.bf16.mxu0 0
  %4372 = vmatpush1.bf16.msra.mxu0 0
  %4373 = vmatprep.subr.bf16.mxu0 0
  %4374 = vmatpush1.bf16.msra.mxu0 0
  %4375 = vmatprep.subr.bf16.mxu0 0
  %4376 = vmatpush1.bf16.msra.mxu0 0
  %4377 = vmatprep.subr.bf16.mxu0 0
  %4378 = vmatpush1.bf16.msra.mxu0 0
  %4379 = vmatprep.subr.bf16.mxu0 0
  %4380 = vmatpush1.bf16.msra.mxu0 0
  %4381 = vmatprep.subr.bf16.mxu0 0
  %4382 = vmatpush1.bf16.msra.mxu0 0
  %4383 = vmatprep.subr.bf16.mxu0 0
  %4384 = vmatpush1.bf16.msra.mxu0 0
  %4385 = vmatprep.subr.bf16.mxu0 0
  %4386 = vmatpush1.bf16.msra.mxu0 0
  %4387 = vmatprep.subr.bf16.mxu0 0
  %4388 = vmatpush1.bf16.msra.mxu0 0
  %4389 = vmatprep.subr.bf16.mxu0 0
  %4390 = vmatpush1.bf16.msra.mxu0 0
  %4391 = vmatprep.subr.bf16.mxu0 0
  %4392 = vmatpush1.bf16.msra.mxu0 0
  %4393 = vmatprep.mubr.bf16.mxu0 0
  %4394 = vmatmul.mubr.bf16.gmra.mrb[0].mxu0 %v4237
  %v4395 = vpop.f32.mrb[0].mxu0
  %v4396 = vadd.f32 %v4356, %v4395
  %v4397 = vpop.f32.mrb[0].mxu0
  %v4398 = vpop.f32.mrb[0].mxu0
  %v4399 = vpop.f32.mrb[0].mxu0
  %4400 = vdwg.mxu0
  %v4404 = vcombine.low %v4315, %v4317
  %v4406 = vunpack.c.l.s4 1983009808
  %v4407 = vunpack.c.0.s8 %v4406
  %v4408 = vlaneseq
  %v4409 = vshrl.u32 %v4408, 7
  %v4410 = vsub.s32 %v4407, %v4409
  %v4411 = vrot.slane %v4404, %v4410
  %v4413 = vunpack.c.l.s4 1983009808
  %v4414 = vunpack.c.0.s8 %v4413
  %v4415 = vlaneseq
  %v4416 = vshrl.u32 %v4415, 7
  %v4417 = vsub.s32 %v4414, %v4416
  %v4418 = vrot.slane %v4396, %v4417
  %v4419 = vcombine.low %v4411, %v4418
  %vm4421 = vcmask 1041408
  %vm4422 = vcmask 1043458
  %vm4423 = vmor %vm4422, %vm4421
  %vm4424 = vcmask 390148
  %vm4425 = vmor %vm4424, %vm4423
  %4426 = vst.msk [vmem:[%s3] sm:$0x3f] %vm4425, %v4419
  // Predicated region
  $region14: #{net_forward.1} parent=0 // pred_check
    _
  $region15: #{net_forward.1} parent=0 // pred_check_branch
    %4428 = sbr.rel (0) target = $region17
  $region16: #{net_forward.1} parent=0 // pred_region
    _
  $region17: #{net_forward.1} parent=0 // pred_fallthru
    _
  // Predicated region
  $region18: #{net_forward.1} parent=0 // pred_check
    _
  $region19: #{net_forward.1} parent=0 // pred_check_branch
    %4430 = sbr.rel (0) target = $region21
  $region20: #{net_forward.1} parent=0 // pred_region
    _
  $region21: #{net_forward.1} parent=0 // pred_fallthru
    _

</llo_original>
